<compile_context>
chip_gen: v6e
topology: v6e:2x2x1
jax: 0.10.0
libtpu: 0.0.40
codegen_flags: <defaults>
</compile_context>

<pallas_src>
import functools
import numpy as np
import jax
import jax.numpy as jnp
from jax import lax
from jax.experimental import pallas as pl
from jax.experimental.pallas import tpu as pltpu

# ---- demo-scale hyper-parameters (small versions of the torch defaults) ----------------
N_INPUT_DIMS = 2
N_LEVELS = 8            # torch default 16
N_FEATURES = 2          # F
LOG2_T = 8              # torch default 22 (scaled down so the table fits VMEM)
T_SIZE = 2 ** LOG2_T
BASE_RES = 4            # torch default 16
PER_LEVEL_SCALE = 1.26
WIDTH = N_LEVELS * N_FEATURES

PI2 = np.int32(-1640531535)   # == 2654435761 mod 2**32 (two's complement int32)


def _encoding_cubic_kernel(nl_ref, x_ref, tab_ref, out_ref, *, t_chunk, t_mask):
    n_chunks = tab_ref.shape[0]
    tile_n = x_ref.shape[1]
    level = pl.program_id(0)
    nl = nl_ref[level]                       # f32 scalar: N_l for this level (SMEM read)

    x = x_ref[...]                           # (2, tile_n)   points on the lane axis
    tx = x[0:1, :] * nl                      # (1, tile_n)   torch: xNL
    ty = x[1:2, :] * nl
    ix = tx.astype(jnp.int32)                # trunc toward zero == floor for x >= 0
    iy = ty.astype(jnp.int32)
    lx = tx - ix.astype(jnp.float32)         # torch: local_coords, in [0, 1)
    ly = ty - iy.astype(jnp.float32)

    # 1-D Catmull-Rom weights == bicubic Hermite basis with central-difference derivatives
    def catmull_rom(t):
        t2 = t * t
        t3 = t2 * t
        return (0.5 * (-t3 + 2.0 * t2 - t),        # node offset -1
                0.5 * (3.0 * t3 - 5.0 * t2 + 2.0),  # node offset  0
                0.5 * (-3.0 * t3 + 4.0 * t2 + t),   # node offset  1
                0.5 * (t3 - t2))                    # node offset  2

    wx = catmull_rom(lx)                     # 4 x (1, tile_n)
    wy = catmull_rom(ly)

    # Per-tap hashes + HOISTED weight products, computed once per tile and reused by every
    # T-chunk below.  (*PI1 dropped: multiply by 1.)  Colliding taps sum their weights in
    # one bucket — identical to the reference fetching the same bucket twice.
    hys = [(iy + j) * PI2 for j in range(4)]        # int32 wrap == low bits of int64 prod
    taps = []
    for i in range(4):
        hx = ix + i
        for j in range(4):
            h = jnp.bitwise_and(jnp.bitwise_xor(hx, hys[j]), t_mask)   # (1, tile_n) int32
            taps.append((h, wx[i] * wy[j]))                            # weight hoisted

    # Column iota only — the == below broadcasts (t_chunk, 1) vs (1, tile_n) implicitly,
    # so no (T, tile_n) iota constant is ever materialized.
    iota_col = lax.broadcasted_iota(jnp.int32, (t_chunk, 1), 0)

    def chunk_body(c, acc):
        # Buckets [c*t_chunk, (c+1)*t_chunk):  W_chunk[r, n] = sum_taps [h(n)==c*tc+r]*w(n)
        iota_c = iota_col + c * t_chunk                           # (t_chunk, 1)
        w_chunk = jnp.zeros((t_chunk, tile_n), jnp.float32)
        for h, w in taps:                                         # f32 accumulation
            w_chunk = w_chunk + jnp.where(h == iota_c, w, 0.0)    # implicit broadcasts

        # bf16-split matmul-accumulate against this chunk's table columns.  Cast to bf16
        # only at the operand boundary (v5e: no bf16 VALU).  4 tiny dots; MXU is <1%
        # utilized so the lo*lo term is free precision margin.
        tab_c = tab_ref[c]                                        # (F, t_chunk) f32
        tab_hi = tab_c.astype(jnp.bfloat16)
        tab_lo = (tab_c - tab_hi.astype(jnp.float32)).astype(jnp.bfloat16)
        w_hi = w_chunk.astype(jnp.bfloat16)
        w_lo = (w_chunk - w_hi.astype(jnp.float32)).astype(jnp.bfloat16)
        acc = acc + jnp.dot(tab_hi, w_hi, preferred_element_type=jnp.float32)
        acc = acc + jnp.dot(tab_hi, w_lo, preferred_element_type=jnp.float32)
        acc = acc + jnp.dot(tab_lo, w_hi, preferred_element_type=jnp.float32)
        acc = acc + jnp.dot(tab_lo, w_lo, preferred_element_type=jnp.float32)
        return acc

    acc0 = jnp.zeros(out_ref.shape, jnp.float32)                  # (F, tile_n)
    out_ref[...] = lax.fori_loop(0, n_chunks, chunk_body, acc0)   # lane-dense store


def my_encoding_cubic_forward(x, hash_table, nl, *, tile_n=1024, t_chunk=16):
    """x: (N, 2) f32 in [0,1); hash_table: (T, F, L) f32; nl: (L,) f32.  -> (N, L*F) f32."""
    N = x.shape[0]
    L, F, T = N_LEVELS, N_FEATURES, T_SIZE
    assert T & (T - 1) == 0, "hash uses & (T-1); T must be a power of two"
    assert T % t_chunk == 0
    n_chunks = T // t_chunk

    n_pad = pl.cdiv(N, tile_n) * tile_n
    xT = jnp.transpose(x)                                    # (2, N): points -> lane axis
    if n_pad != N:
        xT = jnp.pad(xT, ((0, 0), (0, n_pad - N)))           # pad with 0.0 (valid coord)

    # (T, F, L) -> (L, n_chunks, F, t_chunk): per-level, per-T-chunk slabs so the kernel's
    # dynamic chunk index is a cheap leading-axis read (no unaligned lane slicing).
    table = jnp.transpose(hash_table, (2, 1, 0)).reshape(L, F, n_chunks, t_chunk)
    table = jnp.transpose(table, (0, 2, 1, 3))               # (L, n_chunks, F, t_chunk)

    kern = functools.partial(_encoding_cubic_kernel, t_chunk=t_chunk, t_mask=T - 1)
    out = pl.pallas_call(
        kern,
        out_shape=jax.ShapeDtypeStruct((L, F, n_pad), jnp.float32),
        grid=(L, n_pad // tile_n),                            # level OUTER: table block
        in_specs=[                                            # stays resident across tiles
            pl.BlockSpec(memory_space=pltpu.MemorySpace.SMEM),        # nl: (L,) scalars
            pl.BlockSpec((2, tile_n), lambda l, i: (0, i)),           # x tile (lane-dense)
            pl.BlockSpec((None, n_chunks, F, t_chunk), lambda l, i: (l, 0, 0, 0)),
        ],
        out_specs=pl.BlockSpec((None, F, tile_n), lambda l, i: (l, 0, i)),
        compiler_params=pltpu.CompilerParams(
            dimension_semantics=("parallel", "parallel")),    # no vmem cap: ~few MiB used
    )(nl.astype(jnp.float32), xT, table)

    out = out[:, :, :N]                                      # (L, F, N)
    # Production consumers should take the (L, F, N) layout directly; this transpose is
    # pure layout plumbing kept only for torch-output parity in the check below.
    return jnp.transpose(out, (2, 0, 1)).reshape(N, L * F)   # level-major, feature-minor


def reference_forward(x, hash_table, nl):
    """Pure numpy replica of the torch forward (int64 hash, fancy-index gather, einsums)."""
    N = x.shape[0]
    L, F, T = N_LEVELS, N_FEATURES, T_SIZE
    xNL = x[:, :, None].astype(np.float32) * nl[None, None, :]          # (N, 2, L)
    xfloor = xNL.astype(np.int64)
    local = (xNL - xfloor.astype(np.float32)).astype(np.float32)
    gx, gy = xfloor[:, 0, :], xfloor[:, 1, :]
    hij = np.zeros((N, 4, 4, L), dtype=np.int64)
    for i in range(4):          # local_node + 1  ->  offsets 0..3
        for j in range(4):
            hij[:, i, j, :] = np.bitwise_xor((gx + i) * 1, (gy + j) * 2654435761) % T
    f = np.zeros((N, 4, 4, L, F), dtype=np.float32)
    for l in range(L):
        f[:, :, :, l, :] = hash_table[hij[:, :, :, l], :, l]
    fyy = (f[:, :, 2:, :, :] - f[:, :, :2, :, :]) / 2
    fxx = (f[:, 2:, :, :, :] - f[:, :2, :, :, :]) / 2
    fxy = (fyy[:, 2:, :, :, :] - fyy[:, :2, :, :, :]
           + fxx[:, :, 2:, :, :] - fxx[:, :, :2, :, :]) / 4
    fi = f[:, 1:3, 1:3, :, :]
    fiy = fyy[:, 1:3, :, :, :]
    fix = fxx[:, :, 1:3, :, :]
    Fm = np.concatenate((np.concatenate((fi, fiy), 2),
                         np.concatenate((fix, fxy), 2)), 1)             # (N, 4, 4, L, F)
    B = np.array([[1, 0, 0, 0], [0, 0, 1, 0], [-3, 3, -2, -1], [2, -2, 1, 1]], np.float32)
    powers = np.arange(4, dtype=np.float32)
    xp = local[:, 0, :][:, None, :] ** powers[None, :, None]            # (N, 4, L)
    yp = local[:, 1, :][:, None, :] ** powers[None, :, None]
    Mab = np.einsum('ac,ncdlf,bd->nablf', B, Fm, B)
    out = np.einsum('nal,nablf,nbl->nlf', xp, Mab, yp)
    return out.reshape(N, L * F).astype(np.float32)


if __name__ == "__main__":
    key = jax.random.PRNGKey(0)
    k1, k2 = jax.random.split(key)

    # deterministic parameter init (same shapes/scale as the torch module __init__)
    hash_table = (jax.random.uniform(k1, (T_SIZE, N_FEATURES, N_LEVELS),
                                     dtype=jnp.float32) * 0.0002 - 0.0001)
    NL = np.floor(np.float32(BASE_RES)
                  * np.float32(PER_LEVEL_SCALE) ** np.arange(N_LEVELS, dtype=np.float32)
                  ).astype(np.float32)

    n_points = 2000         # 2 point tiles (tile_n=1024, ragged tail) x 8 levels
    x = jax.random.uniform(k2, (n_points, N_INPUT_DIMS), dtype=jnp.float32)

    fwd = jax.jit(my_encoding_cubic_forward)
    y = jax.block_until_ready(fwd(x, hash_table, jnp.asarray(NL)))
    assert y.shape == (n_points, WIDTH) and y.dtype == jnp.float32

    y_ref = reference_forward(np.asarray(x), np.asarray(hash_table), NL)
    if not np.allclose(np.asarray(y), y_ref, rtol=1e-3, atol=5e-7):
        raise AssertionError(
            f"mismatch vs reference, max abs err {np.max(np.abs(np.asarray(y) - y_ref))}")

    print("KERNEL_OK")
</pallas_src>

<mosaic_0001>
module attributes {stable_mosaic.version = 11 : i64} {
  func.func @_encoding_cubic_kernel(%arg0: i32, %arg1: i32, %arg2: memref<8xf32, #tpu.memory_space<smem>>, %arg3: memref<2x1024xf32, #tpu.memory_space<vmem>>, %arg4: memref<1x16x2x16xf32, #tpu.memory_space<vmem>>, %arg5: memref<1x2x1024xf32, #tpu.memory_space<vmem>>) attributes {dimension_semantics = [#tpu.dimension_semantics<parallel>, #tpu.dimension_semantics<parallel>], iteration_bounds = array<i64: 8, 2>, scalar_prefetch = 0 : i64, scratch_operands = 0 : i64, tpu.core_type = #tpu.core_type<tc>, window_params = [{transform_indices = @transform_0, window_bounds = array<i64: 8>}, {transform_indices = @transform_1, window_bounds = array<i64: 2, 1024>}, {transform_indices = @transform_2, window_bounds = array<i64: 1, 16, 2, 16>}, {transform_indices = @transform_3, window_bounds = array<i64: 1, 2, 1024>}]} {
    %0 = arith.index_cast %arg0 : i32 to index
    %1 = memref.load %arg2[%0] : memref<8xf32, #tpu.memory_space<smem>>
    %c0 = arith.constant 0 : index
    %c0_0 = arith.constant 0 : index
    %2 = vector.load %arg3[%c0, %c0_0] : memref<2x1024xf32, #tpu.memory_space<vmem>>, vector<2x1024xf32>
    %3 = vector.extract_strided_slice %2 {offsets = [0, 0], sizes = [1, 1024], strides = [1, 1]} : vector<2x1024xf32> to vector<1x1024xf32>
    %4 = vector.broadcast %1 : f32 to vector<1x1024xf32>
    %5 = arith.mulf %3, %4 : vector<1x1024xf32>
    %6 = vector.extract_strided_slice %2 {offsets = [1, 0], sizes = [1, 1024], strides = [1, 1]} : vector<2x1024xf32> to vector<1x1024xf32>
    %7 = vector.broadcast %1 : f32 to vector<1x1024xf32>
    %8 = arith.mulf %6, %7 : vector<1x1024xf32>
    %9 = arith.fptosi %5 : vector<1x1024xf32> to vector<1x1024xi32>
    %10 = arith.fptosi %8 : vector<1x1024xf32> to vector<1x1024xi32>
    %11 = arith.sitofp %9 : vector<1x1024xi32> to vector<1x1024xf32>
    %12 = arith.subf %5, %11 : vector<1x1024xf32>
    %13 = arith.sitofp %10 : vector<1x1024xi32> to vector<1x1024xf32>
    %14 = arith.subf %8, %13 : vector<1x1024xf32>
    %15 = arith.mulf %12, %12 : vector<1x1024xf32>
    %16 = arith.mulf %15, %12 : vector<1x1024xf32>
    %cst = arith.constant 0.000000e+00 : f32
    %17 = vector.broadcast %cst : f32 to vector<1x1024xf32>
    %18 = arith.subf %17, %16 : vector<1x1024xf32>
    %cst_1 = arith.constant 2.000000e+00 : f32
    %19 = vector.broadcast %cst_1 : f32 to vector<1x1024xf32>
    %20 = arith.mulf %19, %15 : vector<1x1024xf32>
    %21 = arith.addf %18, %20 : vector<1x1024xf32>
    %22 = arith.subf %21, %12 : vector<1x1024xf32>
    %cst_2 = arith.constant 5.000000e-01 : f32
    %23 = vector.broadcast %cst_2 : f32 to vector<1x1024xf32>
    %24 = arith.mulf %23, %22 : vector<1x1024xf32>
    %cst_3 = arith.constant 3.000000e+00 : f32
    %25 = vector.broadcast %cst_3 : f32 to vector<1x1024xf32>
    %26 = arith.mulf %25, %16 : vector<1x1024xf32>
    %cst_4 = arith.constant 5.000000e+00 : f32
    %27 = vector.broadcast %cst_4 : f32 to vector<1x1024xf32>
    %28 = arith.mulf %27, %15 : vector<1x1024xf32>
    %29 = arith.subf %26, %28 : vector<1x1024xf32>
    %cst_5 = arith.constant 2.000000e+00 : f32
    %30 = vector.broadcast %cst_5 : f32 to vector<1x1024xf32>
    %31 = arith.addf %29, %30 : vector<1x1024xf32>
    %cst_6 = arith.constant 5.000000e-01 : f32
    %32 = vector.broadcast %cst_6 : f32 to vector<1x1024xf32>
    %33 = arith.mulf %32, %31 : vector<1x1024xf32>
    %cst_7 = arith.constant -3.000000e+00 : f32
    %34 = vector.broadcast %cst_7 : f32 to vector<1x1024xf32>
    %35 = arith.mulf %34, %16 : vector<1x1024xf32>
    %cst_8 = arith.constant 4.000000e+00 : f32
    %36 = vector.broadcast %cst_8 : f32 to vector<1x1024xf32>
    %37 = arith.mulf %36, %15 : vector<1x1024xf32>
    %38 = arith.addf %35, %37 : vector<1x1024xf32>
    %39 = arith.addf %38, %12 : vector<1x1024xf32>
    %cst_9 = arith.constant 5.000000e-01 : f32
    %40 = vector.broadcast %cst_9 : f32 to vector<1x1024xf32>
    %41 = arith.mulf %40, %39 : vector<1x1024xf32>
    %42 = arith.subf %16, %15 : vector<1x1024xf32>
    %cst_10 = arith.constant 5.000000e-01 : f32
    %43 = vector.broadcast %cst_10 : f32 to vector<1x1024xf32>
    %44 = arith.mulf %43, %42 : vector<1x1024xf32>
    %45 = arith.mulf %14, %14 : vector<1x1024xf32>
    %46 = arith.mulf %45, %14 : vector<1x1024xf32>
    %cst_11 = arith.constant 0.000000e+00 : f32
    %47 = vector.broadcast %cst_11 : f32 to vector<1x1024xf32>
    %48 = arith.subf %47, %46 : vector<1x1024xf32>
    %cst_12 = arith.constant 2.000000e+00 : f32
    %49 = vector.broadcast %cst_12 : f32 to vector<1x1024xf32>
    %50 = arith.mulf %49, %45 : vector<1x1024xf32>
    %51 = arith.addf %48, %50 : vector<1x1024xf32>
    %52 = arith.subf %51, %14 : vector<1x1024xf32>
    %cst_13 = arith.constant 5.000000e-01 : f32
    %53 = vector.broadcast %cst_13 : f32 to vector<1x1024xf32>
    %54 = arith.mulf %53, %52 : vector<1x1024xf32>
    %cst_14 = arith.constant 3.000000e+00 : f32
    %55 = vector.broadcast %cst_14 : f32 to vector<1x1024xf32>
    %56 = arith.mulf %55, %46 : vector<1x1024xf32>
    %cst_15 = arith.constant 5.000000e+00 : f32
    %57 = vector.broadcast %cst_15 : f32 to vector<1x1024xf32>
    %58 = arith.mulf %57, %45 : vector<1x1024xf32>
    %59 = arith.subf %56, %58 : vector<1x1024xf32>
    %cst_16 = arith.constant 2.000000e+00 : f32
    %60 = vector.broadcast %cst_16 : f32 to vector<1x1024xf32>
    %61 = arith.addf %59, %60 : vector<1x1024xf32>
    %cst_17 = arith.constant 5.000000e-01 : f32
    %62 = vector.broadcast %cst_17 : f32 to vector<1x1024xf32>
    %63 = arith.mulf %62, %61 : vector<1x1024xf32>
    %cst_18 = arith.constant -3.000000e+00 : f32
    %64 = vector.broadcast %cst_18 : f32 to vector<1x1024xf32>
    %65 = arith.mulf %64, %46 : vector<1x1024xf32>
    %cst_19 = arith.constant 4.000000e+00 : f32
    %66 = vector.broadcast %cst_19 : f32 to vector<1x1024xf32>
    %67 = arith.mulf %66, %45 : vector<1x1024xf32>
    %68 = arith.addf %65, %67 : vector<1x1024xf32>
    %69 = arith.addf %68, %14 : vector<1x1024xf32>
    %cst_20 = arith.constant 5.000000e-01 : f32
    %70 = vector.broadcast %cst_20 : f32 to vector<1x1024xf32>
    %71 = arith.mulf %70, %69 : vector<1x1024xf32>
    %72 = arith.subf %46, %45 : vector<1x1024xf32>
    %cst_21 = arith.constant 5.000000e-01 : f32
    %73 = vector.broadcast %cst_21 : f32 to vector<1x1024xf32>
    %74 = arith.mulf %73, %72 : vector<1x1024xf32>
    %c0_i32 = arith.constant 0 : i32
    %75 = vector.broadcast %c0_i32 : i32 to vector<1x1024xi32>
    %76 = arith.addi %10, %75 : vector<1x1024xi32>
    %c-1640531535_i32 = arith.constant -1640531535 : i32
    %77 = vector.broadcast %c-1640531535_i32 : i32 to vector<1x1024xi32>
    %78 = arith.muli %76, %77 : vector<1x1024xi32>
    %c1_i32 = arith.constant 1 : i32
    %79 = vector.broadcast %c1_i32 : i32 to vector<1x1024xi32>
    %80 = arith.addi %10, %79 : vector<1x1024xi32>
    %c-1640531535_i32_22 = arith.constant -1640531535 : i32
    %81 = vector.broadcast %c-1640531535_i32_22 : i32 to vector<1x1024xi32>
    %82 = arith.muli %80, %81 : vector<1x1024xi32>
    %c2_i32 = arith.constant 2 : i32
    %83 = vector.broadcast %c2_i32 : i32 to vector<1x1024xi32>
    %84 = arith.addi %10, %83 : vector<1x1024xi32>
    %c-1640531535_i32_23 = arith.constant -1640531535 : i32
    %85 = vector.broadcast %c-1640531535_i32_23 : i32 to vector<1x1024xi32>
    %86 = arith.muli %84, %85 : vector<1x1024xi32>
    %c3_i32 = arith.constant 3 : i32
    %87 = vector.broadcast %c3_i32 : i32 to vector<1x1024xi32>
    %88 = arith.addi %10, %87 : vector<1x1024xi32>
    %c-1640531535_i32_24 = arith.constant -1640531535 : i32
    %89 = vector.broadcast %c-1640531535_i32_24 : i32 to vector<1x1024xi32>
    %90 = arith.muli %88, %89 : vector<1x1024xi32>
    %c0_i32_25 = arith.constant 0 : i32
    %91 = vector.broadcast %c0_i32_25 : i32 to vector<1x1024xi32>
    %92 = arith.addi %9, %91 : vector<1x1024xi32>
    %93 = arith.xori %92, %78 : vector<1x1024xi32>
    %c255_i32 = arith.constant 255 : i32
    %94 = vector.broadcast %c255_i32 : i32 to vector<1x1024xi32>
    %95 = arith.andi %93, %94 : vector<1x1024xi32>
    %96 = arith.mulf %24, %54 : vector<1x1024xf32>
    %97 = arith.xori %92, %82 : vector<1x1024xi32>
    %c255_i32_26 = arith.constant 255 : i32
    %98 = vector.broadcast %c255_i32_26 : i32 to vector<1x1024xi32>
    %99 = arith.andi %97, %98 : vector<1x1024xi32>
    %100 = arith.mulf %24, %63 : vector<1x1024xf32>
    %101 = arith.xori %92, %86 : vector<1x1024xi32>
    %c255_i32_27 = arith.constant 255 : i32
    %102 = vector.broadcast %c255_i32_27 : i32 to vector<1x1024xi32>
    %103 = arith.andi %101, %102 : vector<1x1024xi32>
    %104 = arith.mulf %24, %71 : vector<1x1024xf32>
    %105 = arith.xori %92, %90 : vector<1x1024xi32>
    %c255_i32_28 = arith.constant 255 : i32
    %106 = vector.broadcast %c255_i32_28 : i32 to vector<1x1024xi32>
    %107 = arith.andi %105, %106 : vector<1x1024xi32>
    %108 = arith.mulf %24, %74 : vector<1x1024xf32>
    %c1_i32_29 = arith.constant 1 : i32
    %109 = vector.broadcast %c1_i32_29 : i32 to vector<1x1024xi32>
    %110 = arith.addi %9, %109 : vector<1x1024xi32>
    %111 = arith.xori %110, %78 : vector<1x1024xi32>
    %c255_i32_30 = arith.constant 255 : i32
    %112 = vector.broadcast %c255_i32_30 : i32 to vector<1x1024xi32>
    %113 = arith.andi %111, %112 : vector<1x1024xi32>
    %114 = arith.mulf %33, %54 : vector<1x1024xf32>
    %115 = arith.xori %110, %82 : vector<1x1024xi32>
    %c255_i32_31 = arith.constant 255 : i32
    %116 = vector.broadcast %c255_i32_31 : i32 to vector<1x1024xi32>
    %117 = arith.andi %115, %116 : vector<1x1024xi32>
    %118 = arith.mulf %33, %63 : vector<1x1024xf32>
    %119 = arith.xori %110, %86 : vector<1x1024xi32>
    %c255_i32_32 = arith.constant 255 : i32
    %120 = vector.broadcast %c255_i32_32 : i32 to vector<1x1024xi32>
    %121 = arith.andi %119, %120 : vector<1x1024xi32>
    %122 = arith.mulf %33, %71 : vector<1x1024xf32>
    %123 = arith.xori %110, %90 : vector<1x1024xi32>
    %c255_i32_33 = arith.constant 255 : i32
    %124 = vector.broadcast %c255_i32_33 : i32 to vector<1x1024xi32>
    %125 = arith.andi %123, %124 : vector<1x1024xi32>
    %126 = arith.mulf %33, %74 : vector<1x1024xf32>
    %c2_i32_34 = arith.constant 2 : i32
    %127 = vector.broadcast %c2_i32_34 : i32 to vector<1x1024xi32>
    %128 = arith.addi %9, %127 : vector<1x1024xi32>
    %129 = arith.xori %128, %78 : vector<1x1024xi32>
    %c255_i32_35 = arith.constant 255 : i32
    %130 = vector.broadcast %c255_i32_35 : i32 to vector<1x1024xi32>
    %131 = arith.andi %129, %130 : vector<1x1024xi32>
    %132 = arith.mulf %41, %54 : vector<1x1024xf32>
    %133 = arith.xori %128, %82 : vector<1x1024xi32>
    %c255_i32_36 = arith.constant 255 : i32
    %134 = vector.broadcast %c255_i32_36 : i32 to vector<1x1024xi32>
    %135 = arith.andi %133, %134 : vector<1x1024xi32>
    %136 = arith.mulf %41, %63 : vector<1x1024xf32>
    %137 = arith.xori %128, %86 : vector<1x1024xi32>
    %c255_i32_37 = arith.constant 255 : i32
    %138 = vector.broadcast %c255_i32_37 : i32 to vector<1x1024xi32>
    %139 = arith.andi %137, %138 : vector<1x1024xi32>
    %140 = arith.mulf %41, %71 : vector<1x1024xf32>
    %141 = arith.xori %128, %90 : vector<1x1024xi32>
    %c255_i32_38 = arith.constant 255 : i32
    %142 = vector.broadcast %c255_i32_38 : i32 to vector<1x1024xi32>
    %143 = arith.andi %141, %142 : vector<1x1024xi32>
    %144 = arith.mulf %41, %74 : vector<1x1024xf32>
    %c3_i32_39 = arith.constant 3 : i32
    %145 = vector.broadcast %c3_i32_39 : i32 to vector<1x1024xi32>
    %146 = arith.addi %9, %145 : vector<1x1024xi32>
    %147 = arith.xori %146, %78 : vector<1x1024xi32>
    %c255_i32_40 = arith.constant 255 : i32
    %148 = vector.broadcast %c255_i32_40 : i32 to vector<1x1024xi32>
    %149 = arith.andi %147, %148 : vector<1x1024xi32>
    %150 = arith.mulf %44, %54 : vector<1x1024xf32>
    %151 = arith.xori %146, %82 : vector<1x1024xi32>
    %c255_i32_41 = arith.constant 255 : i32
    %152 = vector.broadcast %c255_i32_41 : i32 to vector<1x1024xi32>
    %153 = arith.andi %151, %152 : vector<1x1024xi32>
    %154 = arith.mulf %44, %63 : vector<1x1024xf32>
    %155 = arith.xori %146, %86 : vector<1x1024xi32>
    %c255_i32_42 = arith.constant 255 : i32
    %156 = vector.broadcast %c255_i32_42 : i32 to vector<1x1024xi32>
    %157 = arith.andi %155, %156 : vector<1x1024xi32>
    %158 = arith.mulf %44, %71 : vector<1x1024xf32>
    %159 = arith.xori %146, %90 : vector<1x1024xi32>
    %c255_i32_43 = arith.constant 255 : i32
    %160 = vector.broadcast %c255_i32_43 : i32 to vector<1x1024xi32>
    %161 = arith.andi %159, %160 : vector<1x1024xi32>
    %162 = arith.mulf %44, %74 : vector<1x1024xf32>
    %163 = tpu.iota {dimensions = array<i32: 0>} : vector<16x1xi32>
    %cst_44 = arith.constant 0.000000e+00 : f32
    %164 = vector.broadcast %cst_44 : f32 to vector<2x1024xf32>
    %c0_i32_45 = arith.constant 0 : i32
    %c16_i32 = arith.constant 16 : i32
    %165 = arith.addi %c0_i32_45, %c16_i32 : i32
    %c1_i32_46 = arith.constant 1 : i32
    %166 = scf.for %arg6 = %c0_i32_45 to %165 step %c1_i32_46 iter_args(%arg7 = %164) -> (vector<2x1024xf32>)  : i32 {
      %c16_i32_51 = arith.constant 16 : i32
      %170 = arith.muli %arg6, %c16_i32_51 : i32
      %171 = vector.broadcast %170 : i32 to vector<16x1xi32>
      %172 = arith.addi %163, %171 : vector<16x1xi32>
      %cst_52 = arith.constant 0.000000e+00 : f32
      %173 = vector.broadcast %cst_52 : f32 to vector<16x1024xf32>
      %174 = vector.broadcast %95 : vector<1x1024xi32> to vector<16x1024xi32>
      %175 = vector.broadcast %172 : vector<16x1xi32> to vector<16x1024xi32>
      %176 = arith.cmpi eq, %174, %175 : vector<16x1024xi32>
      %cst_53 = arith.constant 0.000000e+00 : f32
      %177 = vector.shape_cast %96 : vector<1x1024xf32> to vector<1x1024xf32>
      %178 = vector.broadcast %177 : vector<1x1024xf32> to vector<16x1024xf32>
      %179 = vector.broadcast %cst_53 : f32 to vector<16x1024xf32>
      %180 = arith.select %176, %178, %179 : vector<16x1024xi1>, vector<16x1024xf32>
      %181 = arith.addf %173, %180 : vector<16x1024xf32>
      %182 = vector.broadcast %99 : vector<1x1024xi32> to vector<16x1024xi32>
      %183 = vector.broadcast %172 : vector<16x1xi32> to vector<16x1024xi32>
      %184 = arith.cmpi eq, %182, %183 : vector<16x1024xi32>
      %cst_54 = arith.constant 0.000000e+00 : f32
      %185 = vector.shape_cast %100 : vector<1x1024xf32> to vector<1x1024xf32>
      %186 = vector.broadcast %185 : vector<1x1024xf32> to vector<16x1024xf32>
      %187 = vector.broadcast %cst_54 : f32 to vector<16x1024xf32>
      %188 = arith.select %184, %186, %187 : vector<16x1024xi1>, vector<16x1024xf32>
      %189 = arith.addf %181, %188 : vector<16x1024xf32>
      %190 = vector.broadcast %103 : vector<1x1024xi32> to vector<16x1024xi32>
      %191 = vector.broadcast %172 : vector<16x1xi32> to vector<16x1024xi32>
      %192 = arith.cmpi eq, %190, %191 : vector<16x1024xi32>
      %cst_55 = arith.constant 0.000000e+00 : f32
      %193 = vector.shape_cast %104 : vector<1x1024xf32> to vector<1x1024xf32>
      %194 = vector.broadcast %193 : vector<1x1024xf32> to vector<16x1024xf32>
      %195 = vector.broadcast %cst_55 : f32 to vector<16x1024xf32>
      %196 = arith.select %192, %194, %195 : vector<16x1024xi1>, vector<16x1024xf32>
      %197 = arith.addf %189, %196 : vector<16x1024xf32>
      %198 = vector.broadcast %107 : vector<1x1024xi32> to vector<16x1024xi32>
      %199 = vector.broadcast %172 : vector<16x1xi32> to vector<16x1024xi32>
      %200 = arith.cmpi eq, %198, %199 : vector<16x1024xi32>
      %cst_56 = arith.constant 0.000000e+00 : f32
      %201 = vector.shape_cast %108 : vector<1x1024xf32> to vector<1x1024xf32>
      %202 = vector.broadcast %201 : vector<1x1024xf32> to vector<16x1024xf32>
      %203 = vector.broadcast %cst_56 : f32 to vector<16x1024xf32>
      %204 = arith.select %200, %202, %203 : vector<16x1024xi1>, vector<16x1024xf32>
      %205 = arith.addf %197, %204 : vector<16x1024xf32>
      %206 = vector.broadcast %113 : vector<1x1024xi32> to vector<16x1024xi32>
      %207 = vector.broadcast %172 : vector<16x1xi32> to vector<16x1024xi32>
      %208 = arith.cmpi eq, %206, %207 : vector<16x1024xi32>
      %cst_57 = arith.constant 0.000000e+00 : f32
      %209 = vector.shape_cast %114 : vector<1x1024xf32> to vector<1x1024xf32>
      %210 = vector.broadcast %209 : vector<1x1024xf32> to vector<16x1024xf32>
      %211 = vector.broadcast %cst_57 : f32 to vector<16x1024xf32>
      %212 = arith.select %208, %210, %211 : vector<16x1024xi1>, vector<16x1024xf32>
      %213 = arith.addf %205, %212 : vector<16x1024xf32>
      %214 = vector.broadcast %117 : vector<1x1024xi32> to vector<16x1024xi32>
      %215 = vector.broadcast %172 : vector<16x1xi32> to vector<16x1024xi32>
      %216 = arith.cmpi eq, %214, %215 : vector<16x1024xi32>
      %cst_58 = arith.constant 0.000000e+00 : f32
      %217 = vector.shape_cast %118 : vector<1x1024xf32> to vector<1x1024xf32>
      %218 = vector.broadcast %217 : vector<1x1024xf32> to vector<16x1024xf32>
      %219 = vector.broadcast %cst_58 : f32 to vector<16x1024xf32>
      %220 = arith.select %216, %218, %219 : vector<16x1024xi1>, vector<16x1024xf32>
      %221 = arith.addf %213, %220 : vector<16x1024xf32>
      %222 = vector.broadcast %121 : vector<1x1024xi32> to vector<16x1024xi32>
      %223 = vector.broadcast %172 : vector<16x1xi32> to vector<16x1024xi32>
      %224 = arith.cmpi eq, %222, %223 : vector<16x1024xi32>
      %cst_59 = arith.constant 0.000000e+00 : f32
      %225 = vector.shape_cast %122 : vector<1x1024xf32> to vector<1x1024xf32>
      %226 = vector.broadcast %225 : vector<1x1024xf32> to vector<16x1024xf32>
      %227 = vector.broadcast %cst_59 : f32 to vector<16x1024xf32>
      %228 = arith.select %224, %226, %227 : vector<16x1024xi1>, vector<16x1024xf32>
      %229 = arith.addf %221, %228 : vector<16x1024xf32>
      %230 = vector.broadcast %125 : vector<1x1024xi32> to vector<16x1024xi32>
      %231 = vector.broadcast %172 : vector<16x1xi32> to vector<16x1024xi32>
      %232 = arith.cmpi eq, %230, %231 : vector<16x1024xi32>
      %cst_60 = arith.constant 0.000000e+00 : f32
      %233 = vector.shape_cast %126 : vector<1x1024xf32> to vector<1x1024xf32>
      %234 = vector.broadcast %233 : vector<1x1024xf32> to vector<16x1024xf32>
      %235 = vector.broadcast %cst_60 : f32 to vector<16x1024xf32>
      %236 = arith.select %232, %234, %235 : vector<16x1024xi1>, vector<16x1024xf32>
      %237 = arith.addf %229, %236 : vector<16x1024xf32>
      %238 = vector.broadcast %131 : vector<1x1024xi32> to vector<16x1024xi32>
      %239 = vector.broadcast %172 : vector<16x1xi32> to vector<16x1024xi32>
      %240 = arith.cmpi eq, %238, %239 : vector<16x1024xi32>
      %cst_61 = arith.constant 0.000000e+00 : f32
      %241 = vector.shape_cast %132 : vector<1x1024xf32> to vector<1x1024xf32>
      %242 = vector.broadcast %241 : vector<1x1024xf32> to vector<16x1024xf32>
      %243 = vector.broadcast %cst_61 : f32 to vector<16x1024xf32>
      %244 = arith.select %240, %242, %243 : vector<16x1024xi1>, vector<16x1024xf32>
      %245 = arith.addf %237, %244 : vector<16x1024xf32>
      %246 = vector.broadcast %135 : vector<1x1024xi32> to vector<16x1024xi32>
      %247 = vector.broadcast %172 : vector<16x1xi32> to vector<16x1024xi32>
      %248 = arith.cmpi eq, %246, %247 : vector<16x1024xi32>
      %cst_62 = arith.constant 0.000000e+00 : f32
      %249 = vector.shape_cast %136 : vector<1x1024xf32> to vector<1x1024xf32>
      %250 = vector.broadcast %249 : vector<1x1024xf32> to vector<16x1024xf32>
      %251 = vector.broadcast %cst_62 : f32 to vector<16x1024xf32>
      %252 = arith.select %248, %250, %251 : vector<16x1024xi1>, vector<16x1024xf32>
      %253 = arith.addf %245, %252 : vector<16x1024xf32>
      %254 = vector.broadcast %139 : vector<1x1024xi32> to vector<16x1024xi32>
      %255 = vector.broadcast %172 : vector<16x1xi32> to vector<16x1024xi32>
      %256 = arith.cmpi eq, %254, %255 : vector<16x1024xi32>
      %cst_63 = arith.constant 0.000000e+00 : f32
      %257 = vector.shape_cast %140 : vector<1x1024xf32> to vector<1x1024xf32>
      %258 = vector.broadcast %257 : vector<1x1024xf32> to vector<16x1024xf32>
      %259 = vector.broadcast %cst_63 : f32 to vector<16x1024xf32>
      %260 = arith.select %256, %258, %259 : vector<16x1024xi1>, vector<16x1024xf32>
      %261 = arith.addf %253, %260 : vector<16x1024xf32>
      %262 = vector.broadcast %143 : vector<1x1024xi32> to vector<16x1024xi32>
      %263 = vector.broadcast %172 : vector<16x1xi32> to vector<16x1024xi32>
      %264 = arith.cmpi eq, %262, %263 : vector<16x1024xi32>
      %cst_64 = arith.constant 0.000000e+00 : f32
      %265 = vector.shape_cast %144 : vector<1x1024xf32> to vector<1x1024xf32>
      %266 = vector.broadcast %265 : vector<1x1024xf32> to vector<16x1024xf32>
      %267 = vector.broadcast %cst_64 : f32 to vector<16x1024xf32>
      %268 = arith.select %264, %266, %267 : vector<16x1024xi1>, vector<16x1024xf32>
      %269 = arith.addf %261, %268 : vector<16x1024xf32>
      %270 = vector.broadcast %149 : vector<1x1024xi32> to vector<16x1024xi32>
      %271 = vector.broadcast %172 : vector<16x1xi32> to vector<16x1024xi32>
      %272 = arith.cmpi eq, %270, %271 : vector<16x1024xi32>
      %cst_65 = arith.constant 0.000000e+00 : f32
      %273 = vector.shape_cast %150 : vector<1x1024xf32> to vector<1x1024xf32>
      %274 = vector.broadcast %273 : vector<1x1024xf32> to vector<16x1024xf32>
      %275 = vector.broadcast %cst_65 : f32 to vector<16x1024xf32>
      %276 = arith.select %272, %274, %275 : vector<16x1024xi1>, vector<16x1024xf32>
      %277 = arith.addf %269, %276 : vector<16x1024xf32>
      %278 = vector.broadcast %153 : vector<1x1024xi32> to vector<16x1024xi32>
      %279 = vector.broadcast %172 : vector<16x1xi32> to vector<16x1024xi32>
      %280 = arith.cmpi eq, %278, %279 : vector<16x1024xi32>
      %cst_66 = arith.constant 0.000000e+00 : f32
      %281 = vector.shape_cast %154 : vector<1x1024xf32> to vector<1x1024xf32>
      %282 = vector.broadcast %281 : vector<1x1024xf32> to vector<16x1024xf32>
      %283 = vector.broadcast %cst_66 : f32 to vector<16x1024xf32>
      %284 = arith.select %280, %282, %283 : vector<16x1024xi1>, vector<16x1024xf32>
      %285 = arith.addf %277, %284 : vector<16x1024xf32>
      %286 = vector.broadcast %157 : vector<1x1024xi32> to vector<16x1024xi32>
      %287 = vector.broadcast %172 : vector<16x1xi32> to vector<16x1024xi32>
      %288 = arith.cmpi eq, %286, %287 : vector<16x1024xi32>
      %cst_67 = arith.constant 0.000000e+00 : f32
      %289 = vector.shape_cast %158 : vector<1x1024xf32> to vector<1x1024xf32>
      %290 = vector.broadcast %289 : vector<1x1024xf32> to vector<16x1024xf32>
      %291 = vector.broadcast %cst_67 : f32 to vector<16x1024xf32>
      %292 = arith.select %288, %290, %291 : vector<16x1024xi1>, vector<16x1024xf32>
      %293 = arith.addf %285, %292 : vector<16x1024xf32>
      %294 = vector.broadcast %161 : vector<1x1024xi32> to vector<16x1024xi32>
      %295 = vector.broadcast %172 : vector<16x1xi32> to vector<16x1024xi32>
      %296 = arith.cmpi eq, %294, %295 : vector<16x1024xi32>
      %cst_68 = arith.constant 0.000000e+00 : f32
      %297 = vector.shape_cast %162 : vector<1x1024xf32> to vector<1x1024xf32>
      %298 = vector.broadcast %297 : vector<1x1024xf32> to vector<16x1024xf32>
      %299 = vector.broadcast %cst_68 : f32 to vector<16x1024xf32>
      %300 = arith.select %296, %298, %299 : vector<16x1024xi1>, vector<16x1024xf32>
      %301 = arith.addf %293, %300 : vector<16x1024xf32>
      %c0_69 = arith.constant 0 : index
      %302 = arith.index_cast %arg6 : i32 to index
      %c0_70 = arith.constant 0 : index
      %c0_71 = arith.constant 0 : index
      %303 = vector.load %arg4[%c0_69, %302, %c0_70, %c0_71] : memref<1x16x2x16xf32, #tpu.memory_space<vmem>>, vector<1x1x2x16xf32>
      %304 = vector.shape_cast %303 : vector<1x1x2x16xf32> to vector<2x16xf32>
      %305 = arith.truncf %304 : vector<2x16xf32> to vector<2x16xbf16>
      %306 = arith.extf %305 : vector<2x16xbf16> to vector<2x16xf32>
      %307 = arith.subf %304, %306 : vector<2x16xf32>
      %308 = arith.truncf %307 : vector<2x16xf32> to vector<2x16xbf16>
      %309 = arith.truncf %301 : vector<16x1024xf32> to vector<16x1024xbf16>
      %310 = arith.extf %309 : vector<16x1024xbf16> to vector<16x1024xf32>
      %311 = arith.subf %301, %310 : vector<16x1024xf32>
      %312 = arith.truncf %311 : vector<16x1024xf32> to vector<16x1024xbf16>
      %cst_72 = arith.constant dense<0.000000e+00> : vector<2x1024xf32>
      %313 = tpu.matmul %305, %309, %cst_72 {dimension_numbers = #tpu.dot_dimension_numbers<[1], [0], [0], [1], [0, 0, 1, 1], [], []>} : vector<2x16xbf16>, vector<16x1024xbf16>, vector<2x1024xf32> -> vector<2x1024xf32>
      %314 = arith.addf %arg7, %313 : vector<2x1024xf32>
      %cst_73 = arith.constant dense<0.000000e+00> : vector<2x1024xf32>
      %315 = tpu.matmul %305, %312, %cst_73 {dimension_numbers = #tpu.dot_dimension_numbers<[1], [0], [0], [1], [0, 0, 1, 1], [], []>} : vector<2x16xbf16>, vector<16x1024xbf16>, vector<2x1024xf32> -> vector<2x1024xf32>
      %316 = arith.addf %314, %315 : vector<2x1024xf32>
      %cst_74 = arith.constant dense<0.000000e+00> : vector<2x1024xf32>
      %317 = tpu.matmul %308, %309, %cst_74 {dimension_numbers = #tpu.dot_dimension_numbers<[1], [0], [0], [1], [0, 0, 1, 1], [], []>} : vector<2x16xbf16>, vector<16x1024xbf16>, vector<2x1024xf32> -> vector<2x1024xf32>
      %318 = arith.addf %316, %317 : vector<2x1024xf32>
      %cst_75 = arith.constant dense<0.000000e+00> : vector<2x1024xf32>
      %319 = tpu.matmul %308, %312, %cst_75 {dimension_numbers = #tpu.dot_dimension_numbers<[1], [0], [0], [1], [0, 0, 1, 1], [], []>} : vector<2x16xbf16>, vector<16x1024xbf16>, vector<2x1024xf32> -> vector<2x1024xf32>
      %320 = arith.addf %318, %319 : vector<2x1024xf32>
      scf.yield %320 : vector<2x1024xf32>
    }
    %c16_i32_47 = arith.constant 16 : i32
    %c0_48 = arith.constant 0 : index
    %c0_49 = arith.constant 0 : index
    %c0_50 = arith.constant 0 : index
    %167 = vector.load %arg5[%c0_48, %c0_49, %c0_50] : memref<1x2x1024xf32, #tpu.memory_space<vmem>>, vector<1x2x1024xf32>
    %168 = vector.shape_cast %167 : vector<1x2x1024xf32> to vector<2x1024xf32>
    %169 = vector.shape_cast %166 : vector<2x1024xf32> to vector<1x2x1024xf32>
    tpu.vector_store %arg5[%c0_48, %c0_49, %c0_50], %169 {strides = array<i32>} : memref<1x2x1024xf32, #tpu.memory_space<vmem>>, vector<1x2x1024xf32>,
    return
  }
  func.func @transform_0(%arg0: i32, %arg1: i32) -> i32 {
    %c0_i32 = arith.constant 0 : i32
    %c0_i32_0 = arith.constant 0 : i32
    return %c0_i32 : i32
  }
  func.func @transform_1(%arg0: i32, %arg1: i32) -> (i32, i32) {
    %c0_i32 = arith.constant 0 : i32
    %c0_i32_0 = arith.constant 0 : i32
    return %c0_i32, %arg1 : i32, i32
  }
  func.func @transform_2(%arg0: i32, %arg1: i32) -> (i32, i32, i32, i32) {
    %c0_i32 = arith.constant 0 : i32
    %c0_i32_0 = arith.constant 0 : i32
    %c0_i32_1 = arith.constant 0 : i32
    %c0_i32_2 = arith.constant 0 : i32
    return %arg0, %c0_i32, %c0_i32_0, %c0_i32_1 : i32, i32, i32, i32
  }
  func.func @transform_3(%arg0: i32, %arg1: i32) -> (i32, i32, i32) {
    %c0_i32 = arith.constant 0 : i32
    %c0_i32_0 = arith.constant 0 : i32
    return %arg0, %c0_i32, %arg1 : i32, i32, i32
  }
}

</mosaic_0001>

<llo_original>
// kernel: my_encoding_cubic_forward.1
$region0: #{my_encoding_cubic_forward.1}
  #allocation0 [shape = 'u32[]', space=smem, size = 0x4, offset = 0x4, fixed_abs, tag = 'smem constant byte address 0x4 - core index']
  #allocation1 [shape = 'u32[144,128]{1,0:T(1,128)}', space=vmem, size = 0x12000, scoped, tag = 'internal scratch']
  %s0 = inlined_call_operand.vmem [shape: f32[8], index: 0, kind: input, shape index: {}]
  %s1 = inlined_call_operand.vmem [shape: f32[2,2048], index: 1, kind: input, shape index: {}]
  %s2 = inlined_call_operand.vmem [shape: f32[8,16,2,16], index: 2, kind: input, shape index: {}]
  %s3 = inlined_call_operand.vmem [shape: f32[8,2,2048], index: 3, kind: output, shape index: {}]
  %s4 = sld [smem:[#allocation0]]
  $region56: #{my_encoding_cubic_forward.1} parent=0
    _
  %s6 = ssub.s32 1, %s4
  %s7 = scalar_select 0, %s6, %s4
  $region1: #{my_encoding_cubic_forward.1} parent=0
    #allocation2 [shape = 'u8[512]{0}', space=smem, size = 0x200, scoped, tag = 'input window, operand 0, single buffered']
    #allocation3 [shape = 's32[2]{0}', space=sflag, size = 0x8, scoped, tag = 'scoped memory for my_encoding_cubic_forward.1']
    %8 = vsyncpa [#allocation3], 0
    loop: start=0, step=1, limit=18
    $region2: #{my_encoding_cubic_forward.1} parent=1 // loop_pre_header
      _
    $region3: #{my_encoding_cubic_forward.1} parent=1 // loop_header
      %s10 = sphi 0, %s14
      %p11 = scmp.ge.s32.totalorder %s10, 18
      %s17 = sphi 0, %s29
      %s18 = sphi 0, %s25
      %s19 = sphi 0, %s17
      %s20 = sphi 0, %s18
      %s21 = sphi 0, %s19
      %s22 = sphi 0, %s20
      %s30 = sphi 0, %s30
      %s32 = sphi 0, %s30
      %s33 = sphi 0, %s32
      %s47 = sphi 0, %s33
      %s53 = sphi 0, %s55
      %s56 = sphi 0, %s53
      %s57 = sphi 0, %s56
      %s73 = sphi 0, %s57
      %s79 = sphi 0, %s81
      %s82 = sphi 0, %s79
      %s83 = sphi 0, %s82
      %s99 = sphi 0, %s83
      %s107 = sphi 0, %s109
      %s110 = sphi 0, %s107
      %s111 = sphi 0, %s110
      %s127 = sphi 0, %s111
    $region4: #{my_encoding_cubic_forward.1} parent=1 // loop_header_branch
      %13 = sbr.rel (%p11) target = $region8
    $region5: #{my_encoding_cubic_forward.1} parent=1 // loop_body
      %s15 = ssub.s32 %s10, 1
      %s16 = ssub.s32 %s10, 2
      %s23 = sadd.s32 1, %s18
      %p24 = scmp.ge.s32.totalorder %s23, 2
      %s25 = scalar_select %p24, 0, %s23
      %s26 = sadd.s32 1, %s17
      %s27 = scalar_select %p24, %s26, %s17
      %p28 = scmp.ge.s32.totalorder %s27, 8
      %s29 = scalar_select %p28, 0, %s27
      %s31 = sadd.s32 %s30, 1
      %p34 = scmp.eq.s32.totalorder %s10, 15
      %p35 = scmp.ne.s32.totalorder %s30, %s32
      %p36 = scmp.eq.s32.totalorder %s10, 0
      %p37 = por %p35, %p36
      %p38 = scmp.ne.s32.totalorder %s30, %s32
      %p39 = scmp.eq.s32.totalorder %s15, 15
      %p40 = por %p38, %p39
      %p41 = scmp.ne.s32.totalorder %s32, %s33
      %p42 = scmp.eq.s32.totalorder %s15, 0
      %p43 = por %p41, %p42
      %p44 = scmp.ne.s32.totalorder %s32, %s33
      %p45 = scmp.eq.s32.totalorder %s16, 15
      %p46 = por %p44, %p45
      %p48 = scmp.ne.s32.totalorder %s33, %s47
      %p49 = scmp.eq.s32.totalorder %s16, 0
      %p50 = por %p48, %p49
      %s51 = ssub.s32 %s18, %s25
      %p52 = scmp.eq.s32.totalorder %s51, 0
      %s54 = sadd.s32 %s53, 1
      %s55 = scalar_select %p52, %s53, %s54
      %p58 = pneg %p52
      %p59 = scmp.eq.s32.totalorder %s10, 15
      %p60 = por %p58, %p59
      %p61 = scmp.ne.s32.totalorder %s53, %s56
      %p62 = scmp.eq.s32.totalorder %s10, 0
      %p63 = por %p61, %p62
      %p64 = scmp.ne.s32.totalorder %s53, %s56
      %p65 = scmp.eq.s32.totalorder %s15, 15
      %p66 = por %p64, %p65
      %p67 = scmp.ne.s32.totalorder %s56, %s57
      %p68 = scmp.eq.s32.totalorder %s15, 0
      %p69 = por %p67, %p68
      %p70 = scmp.ne.s32.totalorder %s56, %s57
      %p71 = scmp.eq.s32.totalorder %s16, 15
      %p72 = por %p70, %p71
      %p74 = scmp.ne.s32.totalorder %s57, %s73
      %p75 = scmp.eq.s32.totalorder %s16, 0
      %p76 = por %p74, %p75
      %s77 = ssub.s32 %s17, %s29
      %p78 = scmp.eq.s32.totalorder %s77, 0
      %s80 = sadd.s32 %s79, 1
      %s81 = scalar_select %p78, %s79, %s80
      %p84 = pneg %p78
      %p85 = scmp.eq.s32.totalorder %s10, 15
      %p86 = por %p84, %p85
      %p87 = scmp.ne.s32.totalorder %s79, %s82
      %p88 = scmp.eq.s32.totalorder %s10, 0
      %p89 = por %p87, %p88
      %p90 = scmp.ne.s32.totalorder %s79, %s82
      %p91 = scmp.eq.s32.totalorder %s15, 15
      %p92 = por %p90, %p91
      %p93 = scmp.ne.s32.totalorder %s82, %s83
      %p94 = scmp.eq.s32.totalorder %s15, 0
      %p95 = por %p93, %p94
      %p96 = scmp.ne.s32.totalorder %s82, %s83
      %p97 = scmp.eq.s32.totalorder %s16, 15
      %p98 = por %p96, %p97
      %p100 = scmp.ne.s32.totalorder %s83, %s99
      %p101 = scmp.eq.s32.totalorder %s16, 0
      %p102 = por %p100, %p101
      %s103 = ssub.s32 %s17, %s29
      %s104 = ssub.s32 %s18, %s25
      %s105 = sor.u32 %s103, %s104
      %p106 = scmp.eq.s32.totalorder %s105, 0
      %s108 = sadd.s32 %s107, 1
      %s109 = scalar_select %p106, %s107, %s108
      %p112 = pneg %p106
      %p113 = scmp.eq.s32.totalorder %s10, 15
      %p114 = por %p112, %p113
      %p115 = scmp.ne.s32.totalorder %s107, %s110
      %p116 = scmp.eq.s32.totalorder %s10, 0
      %p117 = por %p115, %p116
      %p118 = scmp.ne.s32.totalorder %s107, %s110
      %p119 = scmp.eq.s32.totalorder %s15, 15
      %p120 = por %p118, %p119
      %p121 = scmp.ne.s32.totalorder %s110, %s111
      %p122 = scmp.eq.s32.totalorder %s15, 0
      %p123 = por %p121, %p122
      %p124 = scmp.ne.s32.totalorder %s110, %s111
      %p125 = scmp.eq.s32.totalorder %s16, 15
      %p126 = por %p124, %p125
      %p128 = scmp.ne.s32.totalorder %s111, %s127
      %p129 = scmp.eq.s32.totalorder %s16, 0
      %p130 = por %p128, %p129
      %p131 = scmp.le.s32.totalorder 1, %s10
      %p132 = scmp.lt.s32.totalorder %s10, 17
      %p133 = pnand %p131, %p132
      %p134 = pneg %p133
      // Predicated region
      $region9: #{my_encoding_cubic_forward.1} parent=5 // pred_check
        _
      $region10: #{my_encoding_cubic_forward.1} parent=5 // pred_check_branch
        %136 = sbr.rel (%p133) target = $region12
      $region11: #{my_encoding_cubic_forward.1} parent=5 // pred_region
        %s137 = ssub.s32 %s10, 1
        // Predicated region
        $region13: #{my_encoding_cubic_forward.1} parent=11 // pred_check
          %p138 = pneg %p43
        $region14: #{my_encoding_cubic_forward.1} parent=11 // pred_check_branch
          %140 = sbr.rel (%p138) target = $region16
        $region15: #{my_encoding_cubic_forward.1} parent=11 // pred_region
          %s142 = ssub.s32 16, 16
          %143 = vsyncadd [#allocation3], %s142
          %s145 = sshll.u32 %s0, 4
          %s146 = int_to_ptr.vmem [resolvable:$true] %s145
          %148 = dma.vmem_to_smem %s146, 16, [#allocation2], [#allocation3]
        $region16: #{my_encoding_cubic_forward.1} parent=11 // pred_fallthru
          _
      $region12: #{my_encoding_cubic_forward.1} parent=5 // pred_fallthru
        _
      %p149 = scmp.lt.s32.totalorder %s10, 16
      // Predicated region
      $region17: #{my_encoding_cubic_forward.1} parent=5 // pred_check
        %p150 = pneg %p149
      $region18: #{my_encoding_cubic_forward.1} parent=5 // pred_check_branch
        %152 = sbr.rel (%p150) target = $region20
      $region19: #{my_encoding_cubic_forward.1} parent=5 // pred_region
        // Predicated region
        $region21: #{my_encoding_cubic_forward.1} parent=19 // pred_check
          %p153 = pneg %p63
        $region22: #{my_encoding_cubic_forward.1} parent=19 // pred_check_branch
          %155 = sbr.rel (%p153) target = $region24
        $region23: #{my_encoding_cubic_forward.1} parent=19 // pred_region
          %s156 = smul.u32 8, %s18
          %p157 = scmp.lt.s32.totalorder %s156, 15
          %s158 = scalar_select %p157, %s156, 15
          %s159 = smul.addr %s158, 2
          %s160 = scalar_lea.vmem %s1, %s159
          %s161 = smul.u32 8, %s18
        $region24: #{my_encoding_cubic_forward.1} parent=19 // pred_fallthru
          _
        // Predicated region
        $region25: #{my_encoding_cubic_forward.1} parent=19 // pred_check
          %p162 = pneg %p89
        $region26: #{my_encoding_cubic_forward.1} parent=19 // pred_check_branch
          %164 = sbr.rel (%p162) target = $region28
        $region27: #{my_encoding_cubic_forward.1} parent=19 // pred_region
          %p165 = scmp.lt.s32.totalorder %s17, 7
          %s166 = scalar_select %p165, %s17, 7
          %s167 = smul.addr %s166, 16
          %s168 = smul.addr %s167, 2
          %s169 = scalar_lea.vmem %s2, %s168
        $region28: #{my_encoding_cubic_forward.1} parent=19 // pred_fallthru
          _
      $region20: #{my_encoding_cubic_forward.1} parent=5 // pred_fallthru
        _
      %p170 = scmp.le.s32.totalorder 1, %s10
      %p171 = scmp.lt.s32.totalorder %s10, 17
      %p172 = pnand %p170, %p171
      %p173 = pneg %p172
      // Predicated region
      $region29: #{my_encoding_cubic_forward.1} parent=5 // pred_check
        _
      $region30: #{my_encoding_cubic_forward.1} parent=5 // pred_check_branch
        %175 = sbr.rel (%p172) target = $region32
      $region31: #{my_encoding_cubic_forward.1} parent=5 // pred_region
        %s176 = ssub.s32 %s10, 1
        // Predicated region
        $region33: #{my_encoding_cubic_forward.1} parent=31 // pred_check
          %p177 = pneg %p43
        $region34: #{my_encoding_cubic_forward.1} parent=31 // pred_check_branch
          %179 = sbr.rel (%p177) target = $region36
        $region35: #{my_encoding_cubic_forward.1} parent=31 // pred_region
          %180 = dma.done [#allocation3], 16
        $region36: #{my_encoding_cubic_forward.1} parent=31 // pred_fallthru
          _
        %181 = sfence
        %p182 = pneg %p43
        %p183 = pneg %p40
        %s184 = smul.u32 8, %s20
        %p185 = scmp.lt.s32.totalorder %s184, 15
        %s186 = scalar_select %p185, %s184, 15
        %s187 = smul.addr %s186, 2
        %s188 = scalar_lea.vmem %s1, %s187
        %p189 = pneg %p69
        %p190 = pneg %p66
        %p191 = scmp.lt.s32.totalorder %s19, 7
        %s192 = scalar_select %p191, %s19, 7
        %s193 = smul.addr %s192, 16
        %s194 = smul.addr %s193, 2
        %s195 = scalar_lea.vmem %s2, %s194
        %p196 = pneg %p95
        %p197 = pneg %p92
        %p198 = pneg %p123
        %p199 = pneg %p120
        %s200 = smul.u32 8, %s20
        %p201 = scmp.lt.s32.totalorder %s19, 7
        %s202 = scalar_select %p201, %s19, 7
        %p203 = scmp.lt.s32.totalorder %s200, 15
        %s204 = scalar_select %p203, %s200, 15
        %s205 = smul.addr %s202, 16
        %s206 = sadd.s32 %s204, %s205
        %s207 = smul.addr %s206, 2
        %s208 = scalar_lea.vmem %s3, %s207
        %s209 = smul.u32 8, %s20
        %p210 = scmp.lt.s32.totalorder %s209, 15
        %s211 = scalar_select %p210, %s209, 15
        %s212 = smul.addr %s211, 2
        %s213 = scalar_lea.vmem %s1, %s212
        %s214 = smul.u32 8, %s20
        %p215 = scmp.lt.s32.totalorder %s19, 7
        %s216 = scalar_select %p215, %s19, 7
        %s217 = smul.addr %s216, 16
        %s218 = smul.addr %s217, 2
        %s219 = scalar_lea.vmem %s2, %s218
        %s220 = smul.u32 8, %s20
        %p221 = scmp.lt.s32.totalorder %s19, 7
        %s222 = scalar_select %p221, %s19, 7
        %p223 = scmp.lt.s32.totalorder %s220, 15
        %s224 = scalar_select %p223, %s220, 15
        %s225 = smul.addr %s222, 16
        %s226 = sadd.s32 %s224, %s225
        %s227 = smul.addr %s226, 2
        %s228 = scalar_lea.vmem %s3, %s227
        %s229 = smul.u32 8, %s20
        %s231 = sld [smem:[#allocation2 + %s19]]
        %v232 = vld [vmem:[%s213] sm:$0xff]
        %v233 = vld [vmem:[%s213 + $0x8] sm:$0xff]
        %v234 = vstv %s231
        %v235 = vmul.f32 %v232, %v234
        %v236 = vmul.f32 %v233, %v234
        %v237 = vcvt.f32.s32.to.zero.pseudo %v235
        %v238 = vcvt.f32.s32.to.zero.pseudo %v236
        %v239 = vcvt.s32.f32 %v237
        %v240 = vcvt.s32.f32 %v238
        %v241 = vsub.f32 %v235, %v239
        %v242 = vsub.f32 %v236, %v240
        %v243 = vmul.f32 %v241, %v241
        %v244 = vmul.f32 %v242, %v242
        %v245 = vmul.f32 %v243, %v241
        %v246 = vmul.f32 %v244, %v242
        %v247 = vsub.f32 0.0, %v245
        %v248 = vsub.f32 0.0, %v246
        %v249 = vmul.f32 %v243, 2.0
        %v250 = vmul.f32 %v244, 2.0
        %v251 = vadd.f32 %v247, %v249
        %v252 = vadd.f32 %v248, %v250
        %v253 = vsub.f32 %v251, %v241
        %v254 = vsub.f32 %v252, %v242
        %v255 = vmul.f32 %v253, 0.5
        %v256 = vmul.f32 %v254, 0.5
        %v257 = vmul.f32 %v245, 3.0
        %v258 = vmul.f32 %v246, 3.0
        %v259 = vmul.f32 %v243, 5.0
        %v260 = vmul.f32 %v244, 5.0
        %v261 = vsub.f32 %v257, %v259
        %v262 = vsub.f32 %v258, %v260
        %v263 = vadd.f32 %v261, 2.0
        %v264 = vadd.f32 %v262, 2.0
        %v265 = vmul.f32 %v263, 0.5
        %v266 = vmul.f32 %v264, 0.5
        %v267 = vmul.f32 %v245, -3.0
        %v268 = vmul.f32 %v246, -3.0
        %v269 = vmul.f32 %v243, 4.0
        %v270 = vmul.f32 %v244, 4.0
        %v271 = vadd.f32 %v267, %v269
        %v272 = vadd.f32 %v268, %v270
        %v273 = vadd.f32 %v271, %v241
        %v274 = vadd.f32 %v272, %v242
        %v275 = vmul.f32 %v273, 0.5
        %v276 = vmul.f32 %v274, 0.5
        %v277 = vsub.f32 %v245, %v243
        %v278 = vsub.f32 %v246, %v244
        %v279 = vmul.f32 %v277, 0.5
        %v280 = vmul.f32 %v278, 0.5
        %v281 = vmul.u32 %v237, 2654435761
        %v282 = vmul.u32 %v238, 2654435761
        %v283 = vadd.s32 %v237, 1
        %v284 = vadd.s32 %v238, 1
        %v285 = vmul.u32 %v283, 2654435761
        %v286 = vmul.u32 %v284, 2654435761
        %v287 = vadd.s32 %v237, 2
        %v288 = vadd.s32 %v238, 2
        %v289 = vmul.u32 %v287, 2654435761
        %v290 = vmul.u32 %v288, 2654435761
        %v291 = vadd.s32 %v237, 3
        %v292 = vadd.s32 %v238, 3
        %v293 = vmul.u32 %v291, 2654435761
        %v294 = vmul.u32 %v292, 2654435761
        %v295 = vrot.slane %v281, 7
        %v296 = vrot.slane %v295, 2
        %v297 = vrot.slane %v282, 7
        %v298 = vrot.slane %v297, 2
        %v299 = vxor.u32 %v237, %v296
        %v300 = vxor.u32 %v238, %v298
        %v301 = vand.u32 %v299, 255
        %v302 = vand.u32 %v300, 255
        %v305 = vrot.slane %v255, 7
        %v306 = vrot.slane %v305, 2
        %v307 = vrot.slane %v256, 7
        %v308 = vrot.slane %v307, 2
        %v311 = vmul.f32 %v255, %v306
        %v312 = vmul.f32 %v256, %v308
        %v313 = vrot.slane %v285, 7
        %v314 = vrot.slane %v313, 2
        %v315 = vrot.slane %v286, 7
        %v316 = vrot.slane %v315, 2
        %v317 = vxor.u32 %v237, %v314
        %v318 = vxor.u32 %v238, %v316
        %v319 = vand.u32 %v317, 255
        %v320 = vand.u32 %v318, 255
        %v323 = vrot.slane %v265, 7
        %v324 = vrot.slane %v323, 2
        %v325 = vrot.slane %v266, 7
        %v326 = vrot.slane %v325, 2
        %v329 = vmul.f32 %v255, %v324
        %v330 = vmul.f32 %v256, %v326
        %v331 = vrot.slane %v289, 7
        %v332 = vrot.slane %v331, 2
        %v333 = vrot.slane %v290, 7
        %v334 = vrot.slane %v333, 2
        %v335 = vxor.u32 %v237, %v332
        %v336 = vxor.u32 %v238, %v334
        %v337 = vand.u32 %v335, 255
        %v338 = vand.u32 %v336, 255
        %v341 = vrot.slane %v275, 7
        %v342 = vrot.slane %v341, 2
        %v343 = vrot.slane %v276, 7
        %v344 = vrot.slane %v343, 2
        %v347 = vmul.f32 %v255, %v342
        %v348 = vmul.f32 %v256, %v344
        %v349 = vrot.slane %v293, 7
        %v350 = vrot.slane %v349, 2
        %v351 = vrot.slane %v294, 7
        %v352 = vrot.slane %v351, 2
        %v353 = vxor.u32 %v237, %v350
        %v354 = vxor.u32 %v238, %v352
        %v355 = vand.u32 %v353, 255
        %v356 = vand.u32 %v354, 255
        %v359 = vrot.slane %v279, 7
        %v360 = vrot.slane %v359, 2
        %v361 = vrot.slane %v280, 7
        %v362 = vrot.slane %v361, 2
        %v365 = vmul.f32 %v255, %v360
        %v366 = vmul.f32 %v256, %v362
        %v367 = vxor.u32 %v283, %v296
        %v368 = vxor.u32 %v284, %v298
        %v369 = vand.u32 %v367, 255
        %v370 = vand.u32 %v368, 255
        %v371 = vmul.f32 %v265, %v306
        %v372 = vmul.f32 %v266, %v308
        %v373 = vxor.u32 %v283, %v314
        %v374 = vxor.u32 %v284, %v316
        %v375 = vand.u32 %v373, 255
        %v376 = vand.u32 %v374, 255
        %v377 = vmul.f32 %v265, %v324
        %v378 = vmul.f32 %v266, %v326
        %v379 = vxor.u32 %v283, %v332
        %v380 = vxor.u32 %v284, %v334
        %v381 = vand.u32 %v379, 255
        %v382 = vand.u32 %v380, 255
        %v383 = vmul.f32 %v265, %v342
        %v384 = vmul.f32 %v266, %v344
        %v385 = vxor.u32 %v283, %v350
        %v386 = vxor.u32 %v284, %v352
        %v387 = vand.u32 %v385, 255
        %v388 = vand.u32 %v386, 255
        %v389 = vmul.f32 %v265, %v360
        %v390 = vmul.f32 %v266, %v362
        %v391 = vxor.u32 %v287, %v296
        %v392 = vxor.u32 %v288, %v298
        %v393 = vand.u32 %v391, 255
        %v394 = vand.u32 %v392, 255
        %v395 = vmul.f32 %v275, %v306
        %v396 = vmul.f32 %v276, %v308
        %v397 = vxor.u32 %v287, %v314
        %v398 = vxor.u32 %v288, %v316
        %v399 = vand.u32 %v397, 255
        %v400 = vand.u32 %v398, 255
        %v401 = vmul.f32 %v275, %v324
        %v402 = vmul.f32 %v276, %v326
        %v403 = vxor.u32 %v287, %v332
        %v404 = vxor.u32 %v288, %v334
        %v405 = vand.u32 %v403, 255
        %v406 = vand.u32 %v404, 255
        %v407 = vmul.f32 %v275, %v342
        %v408 = vmul.f32 %v276, %v344
        %v409 = vxor.u32 %v287, %v350
        %v410 = vxor.u32 %v288, %v352
        %v411 = vand.u32 %v409, 255
        %v412 = vand.u32 %v410, 255
        %v413 = vmul.f32 %v275, %v360
        %v414 = vmul.f32 %v276, %v362
        %v415 = vxor.u32 %v291, %v296
        %v416 = vxor.u32 %v292, %v298
        %v417 = vand.u32 %v415, 255
        %v418 = vand.u32 %v416, 255
        %v419 = vmul.f32 %v279, %v306
        %v420 = vmul.f32 %v280, %v308
        %v421 = vxor.u32 %v291, %v314
        %v422 = vxor.u32 %v292, %v316
        %v423 = vand.u32 %v421, 255
        %v424 = vand.u32 %v422, 255
        %v425 = vmul.f32 %v279, %v324
        %v426 = vmul.f32 %v280, %v326
        %v427 = vxor.u32 %v291, %v332
        %v428 = vxor.u32 %v292, %v334
        %v429 = vand.u32 %v427, 255
        %v430 = vand.u32 %v428, 255
        %v431 = vmul.f32 %v279, %v342
        %v432 = vmul.f32 %v280, %v344
        %v433 = vxor.u32 %v291, %v350
        %v434 = vxor.u32 %v292, %v352
        %v435 = vand.u32 %v433, 255
        %v436 = vand.u32 %v434, 255
        %v437 = vmul.f32 %v279, %v360
        %v438 = vmul.f32 %v280, %v362
        %v439 = vlaneseq
        %v440 = vshrl.u32 %v439, 7
        %v441 = vadd.s32 %v440, 8
        loop: start=0, step=1, limit=16
        $region37: #{my_encoding_cubic_forward.1} parent=31 // loop_pre_header
          _
        $region38: #{my_encoding_cubic_forward.1} parent=31 // loop_header
          %s443 = sphi 0, %s447
          %p444 = scmp.ge.s32.totalorder %s443, 16
          %v448 = vphi 0.0, %v4178
          %v449 = vphi 0.0, %v4179
          %v450 = vphi 0.0, %v4180
          %v451 = vphi 0.0, %v4181
          %v452 = vphi 0.0, %v4182
          %v453 = vphi 0.0, %v4183
          %v454 = vphi 0.0, %v4184
          %v455 = vphi 0.0, %v4185
        $region39: #{my_encoding_cubic_forward.1} parent=31 // loop_header_branch
          %446 = sbr.rel (%p444) target = $region43
        $region40: #{my_encoding_cubic_forward.1} parent=31 // loop_body
          %s456 = smul.u32 %s443, 16
          %v457 = vstv %s456
          %v458 = vadd.s32 %v440, %v457
          %v459 = vadd.s32 %v441, %v457
          %v460 = vlaneseq
          %v461 = vshrl.u32 %v460, 7
          %v462 = vsub.s32 0, %v461
          %v463 = vrot.slane %v301, %v462
          %v464 = vlaneseq
          %v465 = vshrl.u32 %v464, 7
          %v466 = vsub.s32 2, %v465
          %v467 = vrot.slane %v301, %v466
          %v468 = vlaneseq
          %v469 = vshrl.u32 %v468, 7
          %v470 = vsub.s32 4, %v469
          %v471 = vrot.slane %v301, %v470
          %v472 = vlaneseq
          %v473 = vshrl.u32 %v472, 7
          %v474 = vsub.s32 6, %v473
          %v475 = vrot.slane %v301, %v474
          %v476 = vlaneseq
          %v477 = vshrl.u32 %v476, 7
          %v478 = vsub.s32 0, %v477
          %v479 = vrot.slane %v302, %v478
          %v480 = vlaneseq
          %v481 = vshrl.u32 %v480, 7
          %v482 = vsub.s32 2, %v481
          %v483 = vrot.slane %v302, %v482
          %v484 = vlaneseq
          %v485 = vshrl.u32 %v484, 7
          %v486 = vsub.s32 4, %v485
          %v487 = vrot.slane %v302, %v486
          %v488 = vlaneseq
          %v489 = vshrl.u32 %v488, 7
          %v490 = vsub.s32 6, %v489
          %v491 = vrot.slane %v302, %v490
          %v492 = vlaneseq
          %v493 = vshrl.u32 %v492, 7
          %v494 = vsub.s32 0, %v493
          %v495 = vrot.slane %v463, %v494
          %v496 = vlaneseq
          %v497 = vshrl.u32 %v496, 7
          %v498 = vsub.s32 0, %v497
          %v499 = vrot.slane %v467, %v498
          %v500 = vlaneseq
          %v501 = vshrl.u32 %v500, 7
          %v502 = vsub.s32 0, %v501
          %v503 = vrot.slane %v471, %v502
          %v504 = vlaneseq
          %v505 = vshrl.u32 %v504, 7
          %v506 = vsub.s32 0, %v505
          %v507 = vrot.slane %v475, %v506
          %v508 = vlaneseq
          %v509 = vshrl.u32 %v508, 7
          %v510 = vsub.s32 0, %v509
          %v511 = vrot.slane %v479, %v510
          %v512 = vlaneseq
          %v513 = vshrl.u32 %v512, 7
          %v514 = vsub.s32 0, %v513
          %v515 = vrot.slane %v483, %v514
          %v516 = vlaneseq
          %v517 = vshrl.u32 %v516, 7
          %v518 = vsub.s32 0, %v517
          %v519 = vrot.slane %v487, %v518
          %v520 = vlaneseq
          %v521 = vshrl.u32 %v520, 7
          %v522 = vsub.s32 0, %v521
          %v523 = vrot.slane %v491, %v522
          %vm524 = vcmp.eq.s32.totalorder %v495, %v458
          %vm525 = vcmp.eq.s32.totalorder %v499, %v458
          %vm526 = vcmp.eq.s32.totalorder %v503, %v458
          %vm527 = vcmp.eq.s32.totalorder %v507, %v458
          %vm528 = vcmp.eq.s32.totalorder %v511, %v458
          %vm529 = vcmp.eq.s32.totalorder %v515, %v458
          %vm530 = vcmp.eq.s32.totalorder %v519, %v458
          %vm531 = vcmp.eq.s32.totalorder %v523, %v458
          %vm532 = vcmp.eq.s32.totalorder %v495, %v459
          %vm533 = vcmp.eq.s32.totalorder %v499, %v459
          %vm534 = vcmp.eq.s32.totalorder %v503, %v459
          %vm535 = vcmp.eq.s32.totalorder %v507, %v459
          %vm536 = vcmp.eq.s32.totalorder %v511, %v459
          %vm537 = vcmp.eq.s32.totalorder %v515, %v459
          %vm538 = vcmp.eq.s32.totalorder %v519, %v459
          %vm539 = vcmp.eq.s32.totalorder %v523, %v459
          %v542 = vlaneseq
          %v543 = vshrl.u32 %v542, 7
          %v544 = vsub.s32 0, %v543
          %v545 = vrot.slane %v311, %v544
          %v546 = vlaneseq
          %v547 = vshrl.u32 %v546, 7
          %v548 = vsub.s32 2, %v547
          %v549 = vrot.slane %v311, %v548
          %v550 = vlaneseq
          %v551 = vshrl.u32 %v550, 7
          %v552 = vsub.s32 4, %v551
          %v553 = vrot.slane %v311, %v552
          %v554 = vlaneseq
          %v555 = vshrl.u32 %v554, 7
          %v556 = vsub.s32 6, %v555
          %v557 = vrot.slane %v311, %v556
          %v558 = vlaneseq
          %v559 = vshrl.u32 %v558, 7
          %v560 = vsub.s32 0, %v559
          %v561 = vrot.slane %v312, %v560
          %v562 = vlaneseq
          %v563 = vshrl.u32 %v562, 7
          %v564 = vsub.s32 2, %v563
          %v565 = vrot.slane %v312, %v564
          %v566 = vlaneseq
          %v567 = vshrl.u32 %v566, 7
          %v568 = vsub.s32 4, %v567
          %v569 = vrot.slane %v312, %v568
          %v570 = vlaneseq
          %v571 = vshrl.u32 %v570, 7
          %v572 = vsub.s32 6, %v571
          %v573 = vrot.slane %v312, %v572
          %v582 = vlaneseq
          %v583 = vshrl.u32 %v582, 7
          %v584 = vsub.s32 0, %v583
          %v585 = vrot.slane %v545, %v584
          %v586 = vlaneseq
          %v587 = vshrl.u32 %v586, 7
          %v588 = vsub.s32 0, %v587
          %v589 = vrot.slane %v549, %v588
          %v590 = vlaneseq
          %v591 = vshrl.u32 %v590, 7
          %v592 = vsub.s32 0, %v591
          %v593 = vrot.slane %v553, %v592
          %v594 = vlaneseq
          %v595 = vshrl.u32 %v594, 7
          %v596 = vsub.s32 0, %v595
          %v597 = vrot.slane %v557, %v596
          %v598 = vlaneseq
          %v599 = vshrl.u32 %v598, 7
          %v600 = vsub.s32 0, %v599
          %v601 = vrot.slane %v561, %v600
          %v602 = vlaneseq
          %v603 = vshrl.u32 %v602, 7
          %v604 = vsub.s32 0, %v603
          %v605 = vrot.slane %v565, %v604
          %v606 = vlaneseq
          %v607 = vshrl.u32 %v606, 7
          %v608 = vsub.s32 0, %v607
          %v609 = vrot.slane %v569, %v608
          %v610 = vlaneseq
          %v611 = vshrl.u32 %v610, 7
          %v612 = vsub.s32 0, %v611
          %v613 = vrot.slane %v573, %v612
          %v614 = vsel %vm524, %v585, 0.0
          %v615 = vsel %vm525, %v589, 0.0
          %v616 = vsel %vm526, %v593, 0.0
          %v617 = vsel %vm527, %v597, 0.0
          %v618 = vsel %vm528, %v601, 0.0
          %v619 = vsel %vm529, %v605, 0.0
          %v620 = vsel %vm530, %v609, 0.0
          %v621 = vsel %vm531, %v613, 0.0
          %v622 = vsel %vm532, %v585, 0.0
          %v623 = vsel %vm533, %v589, 0.0
          %v624 = vsel %vm534, %v593, 0.0
          %v625 = vsel %vm535, %v597, 0.0
          %v626 = vsel %vm536, %v601, 0.0
          %v627 = vsel %vm537, %v605, 0.0
          %v628 = vsel %vm538, %v609, 0.0
          %v629 = vsel %vm539, %v613, 0.0
          %v630 = vadd.f32 %v614, 0.0
          %v631 = vadd.f32 %v615, 0.0
          %v632 = vadd.f32 %v616, 0.0
          %v633 = vadd.f32 %v617, 0.0
          %v634 = vadd.f32 %v618, 0.0
          %v635 = vadd.f32 %v619, 0.0
          %v636 = vadd.f32 %v620, 0.0
          %v637 = vadd.f32 %v621, 0.0
          %v638 = vadd.f32 %v622, 0.0
          %v639 = vadd.f32 %v623, 0.0
          %v640 = vadd.f32 %v624, 0.0
          %v641 = vadd.f32 %v625, 0.0
          %v642 = vadd.f32 %v626, 0.0
          %v643 = vadd.f32 %v627, 0.0
          %v644 = vadd.f32 %v628, 0.0
          %v645 = vadd.f32 %v629, 0.0
          %v646 = vlaneseq
          %v647 = vshrl.u32 %v646, 7
          %v648 = vsub.s32 0, %v647
          %v649 = vrot.slane %v319, %v648
          %v650 = vlaneseq
          %v651 = vshrl.u32 %v650, 7
          %v652 = vsub.s32 2, %v651
          %v653 = vrot.slane %v319, %v652
          %v654 = vlaneseq
          %v655 = vshrl.u32 %v654, 7
          %v656 = vsub.s32 4, %v655
          %v657 = vrot.slane %v319, %v656
          %v658 = vlaneseq
          %v659 = vshrl.u32 %v658, 7
          %v660 = vsub.s32 6, %v659
          %v661 = vrot.slane %v319, %v660
          %v662 = vlaneseq
          %v663 = vshrl.u32 %v662, 7
          %v664 = vsub.s32 0, %v663
          %v665 = vrot.slane %v320, %v664
          %v666 = vlaneseq
          %v667 = vshrl.u32 %v666, 7
          %v668 = vsub.s32 2, %v667
          %v669 = vrot.slane %v320, %v668
          %v670 = vlaneseq
          %v671 = vshrl.u32 %v670, 7
          %v672 = vsub.s32 4, %v671
          %v673 = vrot.slane %v320, %v672
          %v674 = vlaneseq
          %v675 = vshrl.u32 %v674, 7
          %v676 = vsub.s32 6, %v675
          %v677 = vrot.slane %v320, %v676
          %v678 = vlaneseq
          %v679 = vshrl.u32 %v678, 7
          %v680 = vsub.s32 0, %v679
          %v681 = vrot.slane %v649, %v680
          %v682 = vlaneseq
          %v683 = vshrl.u32 %v682, 7
          %v684 = vsub.s32 0, %v683
          %v685 = vrot.slane %v653, %v684
          %v686 = vlaneseq
          %v687 = vshrl.u32 %v686, 7
          %v688 = vsub.s32 0, %v687
          %v689 = vrot.slane %v657, %v688
          %v690 = vlaneseq
          %v691 = vshrl.u32 %v690, 7
          %v692 = vsub.s32 0, %v691
          %v693 = vrot.slane %v661, %v692
          %v694 = vlaneseq
          %v695 = vshrl.u32 %v694, 7
          %v696 = vsub.s32 0, %v695
          %v697 = vrot.slane %v665, %v696
          %v698 = vlaneseq
          %v699 = vshrl.u32 %v698, 7
          %v700 = vsub.s32 0, %v699
          %v701 = vrot.slane %v669, %v700
          %v702 = vlaneseq
          %v703 = vshrl.u32 %v702, 7
          %v704 = vsub.s32 0, %v703
          %v705 = vrot.slane %v673, %v704
          %v706 = vlaneseq
          %v707 = vshrl.u32 %v706, 7
          %v708 = vsub.s32 0, %v707
          %v709 = vrot.slane %v677, %v708
          %vm710 = vcmp.eq.s32.totalorder %v681, %v458
          %vm711 = vcmp.eq.s32.totalorder %v685, %v458
          %vm712 = vcmp.eq.s32.totalorder %v689, %v458
          %vm713 = vcmp.eq.s32.totalorder %v693, %v458
          %vm714 = vcmp.eq.s32.totalorder %v697, %v458
          %vm715 = vcmp.eq.s32.totalorder %v701, %v458
          %vm716 = vcmp.eq.s32.totalorder %v705, %v458
          %vm717 = vcmp.eq.s32.totalorder %v709, %v458
          %vm718 = vcmp.eq.s32.totalorder %v681, %v459
          %vm719 = vcmp.eq.s32.totalorder %v685, %v459
          %vm720 = vcmp.eq.s32.totalorder %v689, %v459
          %vm721 = vcmp.eq.s32.totalorder %v693, %v459
          %vm722 = vcmp.eq.s32.totalorder %v697, %v459
          %vm723 = vcmp.eq.s32.totalorder %v701, %v459
          %vm724 = vcmp.eq.s32.totalorder %v705, %v459
          %vm725 = vcmp.eq.s32.totalorder %v709, %v459
          %v728 = vlaneseq
          %v729 = vshrl.u32 %v728, 7
          %v730 = vsub.s32 0, %v729
          %v731 = vrot.slane %v329, %v730
          %v732 = vlaneseq
          %v733 = vshrl.u32 %v732, 7
          %v734 = vsub.s32 2, %v733
          %v735 = vrot.slane %v329, %v734
          %v736 = vlaneseq
          %v737 = vshrl.u32 %v736, 7
          %v738 = vsub.s32 4, %v737
          %v739 = vrot.slane %v329, %v738
          %v740 = vlaneseq
          %v741 = vshrl.u32 %v740, 7
          %v742 = vsub.s32 6, %v741
          %v743 = vrot.slane %v329, %v742
          %v744 = vlaneseq
          %v745 = vshrl.u32 %v744, 7
          %v746 = vsub.s32 0, %v745
          %v747 = vrot.slane %v330, %v746
          %v748 = vlaneseq
          %v749 = vshrl.u32 %v748, 7
          %v750 = vsub.s32 2, %v749
          %v751 = vrot.slane %v330, %v750
          %v752 = vlaneseq
          %v753 = vshrl.u32 %v752, 7
          %v754 = vsub.s32 4, %v753
          %v755 = vrot.slane %v330, %v754
          %v756 = vlaneseq
          %v757 = vshrl.u32 %v756, 7
          %v758 = vsub.s32 6, %v757
          %v759 = vrot.slane %v330, %v758
          %v768 = vlaneseq
          %v769 = vshrl.u32 %v768, 7
          %v770 = vsub.s32 0, %v769
          %v771 = vrot.slane %v731, %v770
          %v772 = vlaneseq
          %v773 = vshrl.u32 %v772, 7
          %v774 = vsub.s32 0, %v773
          %v775 = vrot.slane %v735, %v774
          %v776 = vlaneseq
          %v777 = vshrl.u32 %v776, 7
          %v778 = vsub.s32 0, %v777
          %v779 = vrot.slane %v739, %v778
          %v780 = vlaneseq
          %v781 = vshrl.u32 %v780, 7
          %v782 = vsub.s32 0, %v781
          %v783 = vrot.slane %v743, %v782
          %v784 = vlaneseq
          %v785 = vshrl.u32 %v784, 7
          %v786 = vsub.s32 0, %v785
          %v787 = vrot.slane %v747, %v786
          %v788 = vlaneseq
          %v789 = vshrl.u32 %v788, 7
          %v790 = vsub.s32 0, %v789
          %v791 = vrot.slane %v751, %v790
          %v792 = vlaneseq
          %v793 = vshrl.u32 %v792, 7
          %v794 = vsub.s32 0, %v793
          %v795 = vrot.slane %v755, %v794
          %v796 = vlaneseq
          %v797 = vshrl.u32 %v796, 7
          %v798 = vsub.s32 0, %v797
          %v799 = vrot.slane %v759, %v798
          %v800 = vsel %vm710, %v771, 0.0
          %v801 = vsel %vm711, %v775, 0.0
          %v802 = vsel %vm712, %v779, 0.0
          %v803 = vsel %vm713, %v783, 0.0
          %v804 = vsel %vm714, %v787, 0.0
          %v805 = vsel %vm715, %v791, 0.0
          %v806 = vsel %vm716, %v795, 0.0
          %v807 = vsel %vm717, %v799, 0.0
          %v808 = vsel %vm718, %v771, 0.0
          %v809 = vsel %vm719, %v775, 0.0
          %v810 = vsel %vm720, %v779, 0.0
          %v811 = vsel %vm721, %v783, 0.0
          %v812 = vsel %vm722, %v787, 0.0
          %v813 = vsel %vm723, %v791, 0.0
          %v814 = vsel %vm724, %v795, 0.0
          %v815 = vsel %vm725, %v799, 0.0
          %v816 = vadd.f32 %v630, %v800
          %v817 = vadd.f32 %v631, %v801
          %v818 = vadd.f32 %v632, %v802
          %v819 = vadd.f32 %v633, %v803
          %v820 = vadd.f32 %v634, %v804
          %v821 = vadd.f32 %v635, %v805
          %v822 = vadd.f32 %v636, %v806
          %v823 = vadd.f32 %v637, %v807
          %v824 = vadd.f32 %v638, %v808
          %v825 = vadd.f32 %v639, %v809
          %v826 = vadd.f32 %v640, %v810
          %v827 = vadd.f32 %v641, %v811
          %v828 = vadd.f32 %v642, %v812
          %v829 = vadd.f32 %v643, %v813
          %v830 = vadd.f32 %v644, %v814
          %v831 = vadd.f32 %v645, %v815
          %v832 = vlaneseq
          %v833 = vshrl.u32 %v832, 7
          %v834 = vsub.s32 0, %v833
          %v835 = vrot.slane %v337, %v834
          %v836 = vlaneseq
          %v837 = vshrl.u32 %v836, 7
          %v838 = vsub.s32 2, %v837
          %v839 = vrot.slane %v337, %v838
          %v840 = vlaneseq
          %v841 = vshrl.u32 %v840, 7
          %v842 = vsub.s32 4, %v841
          %v843 = vrot.slane %v337, %v842
          %v844 = vlaneseq
          %v845 = vshrl.u32 %v844, 7
          %v846 = vsub.s32 6, %v845
          %v847 = vrot.slane %v337, %v846
          %v848 = vlaneseq
          %v849 = vshrl.u32 %v848, 7
          %v850 = vsub.s32 0, %v849
          %v851 = vrot.slane %v338, %v850
          %v852 = vlaneseq
          %v853 = vshrl.u32 %v852, 7
          %v854 = vsub.s32 2, %v853
          %v855 = vrot.slane %v338, %v854
          %v856 = vlaneseq
          %v857 = vshrl.u32 %v856, 7
          %v858 = vsub.s32 4, %v857
          %v859 = vrot.slane %v338, %v858
          %v860 = vlaneseq
          %v861 = vshrl.u32 %v860, 7
          %v862 = vsub.s32 6, %v861
          %v863 = vrot.slane %v338, %v862
          %v864 = vlaneseq
          %v865 = vshrl.u32 %v864, 7
          %v866 = vsub.s32 0, %v865
          %v867 = vrot.slane %v835, %v866
          %v868 = vlaneseq
          %v869 = vshrl.u32 %v868, 7
          %v870 = vsub.s32 0, %v869
          %v871 = vrot.slane %v839, %v870
          %v872 = vlaneseq
          %v873 = vshrl.u32 %v872, 7
          %v874 = vsub.s32 0, %v873
          %v875 = vrot.slane %v843, %v874
          %v876 = vlaneseq
          %v877 = vshrl.u32 %v876, 7
          %v878 = vsub.s32 0, %v877
          %v879 = vrot.slane %v847, %v878
          %v880 = vlaneseq
          %v881 = vshrl.u32 %v880, 7
          %v882 = vsub.s32 0, %v881
          %v883 = vrot.slane %v851, %v882
          %v884 = vlaneseq
          %v885 = vshrl.u32 %v884, 7
          %v886 = vsub.s32 0, %v885
          %v887 = vrot.slane %v855, %v886
          %v888 = vlaneseq
          %v889 = vshrl.u32 %v888, 7
          %v890 = vsub.s32 0, %v889
          %v891 = vrot.slane %v859, %v890
          %v892 = vlaneseq
          %v893 = vshrl.u32 %v892, 7
          %v894 = vsub.s32 0, %v893
          %v895 = vrot.slane %v863, %v894
          %vm896 = vcmp.eq.s32.totalorder %v867, %v458
          %vm897 = vcmp.eq.s32.totalorder %v871, %v458
          %vm898 = vcmp.eq.s32.totalorder %v875, %v458
          %vm899 = vcmp.eq.s32.totalorder %v879, %v458
          %vm900 = vcmp.eq.s32.totalorder %v883, %v458
          %vm901 = vcmp.eq.s32.totalorder %v887, %v458
          %vm902 = vcmp.eq.s32.totalorder %v891, %v458
          %vm903 = vcmp.eq.s32.totalorder %v895, %v458
          %vm904 = vcmp.eq.s32.totalorder %v867, %v459
          %vm905 = vcmp.eq.s32.totalorder %v871, %v459
          %vm906 = vcmp.eq.s32.totalorder %v875, %v459
          %vm907 = vcmp.eq.s32.totalorder %v879, %v459
          %vm908 = vcmp.eq.s32.totalorder %v883, %v459
          %vm909 = vcmp.eq.s32.totalorder %v887, %v459
          %vm910 = vcmp.eq.s32.totalorder %v891, %v459
          %vm911 = vcmp.eq.s32.totalorder %v895, %v459
          %v914 = vlaneseq
          %v915 = vshrl.u32 %v914, 7
          %v916 = vsub.s32 0, %v915
          %v917 = vrot.slane %v347, %v916
          %v918 = vlaneseq
          %v919 = vshrl.u32 %v918, 7
          %v920 = vsub.s32 2, %v919
          %v921 = vrot.slane %v347, %v920
          %v922 = vlaneseq
          %v923 = vshrl.u32 %v922, 7
          %v924 = vsub.s32 4, %v923
          %v925 = vrot.slane %v347, %v924
          %v926 = vlaneseq
          %v927 = vshrl.u32 %v926, 7
          %v928 = vsub.s32 6, %v927
          %v929 = vrot.slane %v347, %v928
          %v930 = vlaneseq
          %v931 = vshrl.u32 %v930, 7
          %v932 = vsub.s32 0, %v931
          %v933 = vrot.slane %v348, %v932
          %v934 = vlaneseq
          %v935 = vshrl.u32 %v934, 7
          %v936 = vsub.s32 2, %v935
          %v937 = vrot.slane %v348, %v936
          %v938 = vlaneseq
          %v939 = vshrl.u32 %v938, 7
          %v940 = vsub.s32 4, %v939
          %v941 = vrot.slane %v348, %v940
          %v942 = vlaneseq
          %v943 = vshrl.u32 %v942, 7
          %v944 = vsub.s32 6, %v943
          %v945 = vrot.slane %v348, %v944
          %v954 = vlaneseq
          %v955 = vshrl.u32 %v954, 7
          %v956 = vsub.s32 0, %v955
          %v957 = vrot.slane %v917, %v956
          %v958 = vlaneseq
          %v959 = vshrl.u32 %v958, 7
          %v960 = vsub.s32 0, %v959
          %v961 = vrot.slane %v921, %v960
          %v962 = vlaneseq
          %v963 = vshrl.u32 %v962, 7
          %v964 = vsub.s32 0, %v963
          %v965 = vrot.slane %v925, %v964
          %v966 = vlaneseq
          %v967 = vshrl.u32 %v966, 7
          %v968 = vsub.s32 0, %v967
          %v969 = vrot.slane %v929, %v968
          %v970 = vlaneseq
          %v971 = vshrl.u32 %v970, 7
          %v972 = vsub.s32 0, %v971
          %v973 = vrot.slane %v933, %v972
          %v974 = vlaneseq
          %v975 = vshrl.u32 %v974, 7
          %v976 = vsub.s32 0, %v975
          %v977 = vrot.slane %v937, %v976
          %v978 = vlaneseq
          %v979 = vshrl.u32 %v978, 7
          %v980 = vsub.s32 0, %v979
          %v981 = vrot.slane %v941, %v980
          %v982 = vlaneseq
          %v983 = vshrl.u32 %v982, 7
          %v984 = vsub.s32 0, %v983
          %v985 = vrot.slane %v945, %v984
          %v986 = vsel %vm896, %v957, 0.0
          %v987 = vsel %vm897, %v961, 0.0
          %v988 = vsel %vm898, %v965, 0.0
          %v989 = vsel %vm899, %v969, 0.0
          %v990 = vsel %vm900, %v973, 0.0
          %v991 = vsel %vm901, %v977, 0.0
          %v992 = vsel %vm902, %v981, 0.0
          %v993 = vsel %vm903, %v985, 0.0
          %v994 = vsel %vm904, %v957, 0.0
          %v995 = vsel %vm905, %v961, 0.0
          %v996 = vsel %vm906, %v965, 0.0
          %v997 = vsel %vm907, %v969, 0.0
          %v998 = vsel %vm908, %v973, 0.0
          %v999 = vsel %vm909, %v977, 0.0
          %v1000 = vsel %vm910, %v981, 0.0
          %v1001 = vsel %vm911, %v985, 0.0
          %v1002 = vadd.f32 %v816, %v986
          %v1003 = vadd.f32 %v817, %v987
          %v1004 = vadd.f32 %v818, %v988
          %v1005 = vadd.f32 %v819, %v989
          %v1006 = vadd.f32 %v820, %v990
          %v1007 = vadd.f32 %v821, %v991
          %v1008 = vadd.f32 %v822, %v992
          %v1009 = vadd.f32 %v823, %v993
          %v1010 = vadd.f32 %v824, %v994
          %v1011 = vadd.f32 %v825, %v995
          %v1012 = vadd.f32 %v826, %v996
          %v1013 = vadd.f32 %v827, %v997
          %v1014 = vadd.f32 %v828, %v998
          %v1015 = vadd.f32 %v829, %v999
          %v1016 = vadd.f32 %v830, %v1000
          %v1017 = vadd.f32 %v831, %v1001
          %v1018 = vlaneseq
          %v1019 = vshrl.u32 %v1018, 7
          %v1020 = vsub.s32 0, %v1019
          %v1021 = vrot.slane %v355, %v1020
          %v1022 = vlaneseq
          %v1023 = vshrl.u32 %v1022, 7
          %v1024 = vsub.s32 2, %v1023
          %v1025 = vrot.slane %v355, %v1024
          %v1026 = vlaneseq
          %v1027 = vshrl.u32 %v1026, 7
          %v1028 = vsub.s32 4, %v1027
          %v1029 = vrot.slane %v355, %v1028
          %v1030 = vlaneseq
          %v1031 = vshrl.u32 %v1030, 7
          %v1032 = vsub.s32 6, %v1031
          %v1033 = vrot.slane %v355, %v1032
          %v1034 = vlaneseq
          %v1035 = vshrl.u32 %v1034, 7
          %v1036 = vsub.s32 0, %v1035
          %v1037 = vrot.slane %v356, %v1036
          %v1038 = vlaneseq
          %v1039 = vshrl.u32 %v1038, 7
          %v1040 = vsub.s32 2, %v1039
          %v1041 = vrot.slane %v356, %v1040
          %v1042 = vlaneseq
          %v1043 = vshrl.u32 %v1042, 7
          %v1044 = vsub.s32 4, %v1043
          %v1045 = vrot.slane %v356, %v1044
          %v1046 = vlaneseq
          %v1047 = vshrl.u32 %v1046, 7
          %v1048 = vsub.s32 6, %v1047
          %v1049 = vrot.slane %v356, %v1048
          %v1050 = vlaneseq
          %v1051 = vshrl.u32 %v1050, 7
          %v1052 = vsub.s32 0, %v1051
          %v1053 = vrot.slane %v1021, %v1052
          %v1054 = vlaneseq
          %v1055 = vshrl.u32 %v1054, 7
          %v1056 = vsub.s32 0, %v1055
          %v1057 = vrot.slane %v1025, %v1056
          %v1058 = vlaneseq
          %v1059 = vshrl.u32 %v1058, 7
          %v1060 = vsub.s32 0, %v1059
          %v1061 = vrot.slane %v1029, %v1060
          %v1062 = vlaneseq
          %v1063 = vshrl.u32 %v1062, 7
          %v1064 = vsub.s32 0, %v1063
          %v1065 = vrot.slane %v1033, %v1064
          %v1066 = vlaneseq
          %v1067 = vshrl.u32 %v1066, 7
          %v1068 = vsub.s32 0, %v1067
          %v1069 = vrot.slane %v1037, %v1068
          %v1070 = vlaneseq
          %v1071 = vshrl.u32 %v1070, 7
          %v1072 = vsub.s32 0, %v1071
          %v1073 = vrot.slane %v1041, %v1072
          %v1074 = vlaneseq
          %v1075 = vshrl.u32 %v1074, 7
          %v1076 = vsub.s32 0, %v1075
          %v1077 = vrot.slane %v1045, %v1076
          %v1078 = vlaneseq
          %v1079 = vshrl.u32 %v1078, 7
          %v1080 = vsub.s32 0, %v1079
          %v1081 = vrot.slane %v1049, %v1080
          %vm1082 = vcmp.eq.s32.totalorder %v1053, %v458
          %vm1083 = vcmp.eq.s32.totalorder %v1057, %v458
          %vm1084 = vcmp.eq.s32.totalorder %v1061, %v458
          %vm1085 = vcmp.eq.s32.totalorder %v1065, %v458
          %vm1086 = vcmp.eq.s32.totalorder %v1069, %v458
          %vm1087 = vcmp.eq.s32.totalorder %v1073, %v458
          %vm1088 = vcmp.eq.s32.totalorder %v1077, %v458
          %vm1089 = vcmp.eq.s32.totalorder %v1081, %v458
          %vm1090 = vcmp.eq.s32.totalorder %v1053, %v459
          %vm1091 = vcmp.eq.s32.totalorder %v1057, %v459
          %vm1092 = vcmp.eq.s32.totalorder %v1061, %v459
          %vm1093 = vcmp.eq.s32.totalorder %v1065, %v459
          %vm1094 = vcmp.eq.s32.totalorder %v1069, %v459
          %vm1095 = vcmp.eq.s32.totalorder %v1073, %v459
          %vm1096 = vcmp.eq.s32.totalorder %v1077, %v459
          %vm1097 = vcmp.eq.s32.totalorder %v1081, %v459
          %v1100 = vlaneseq
          %v1101 = vshrl.u32 %v1100, 7
          %v1102 = vsub.s32 0, %v1101
          %v1103 = vrot.slane %v365, %v1102
          %v1104 = vlaneseq
          %v1105 = vshrl.u32 %v1104, 7
          %v1106 = vsub.s32 2, %v1105
          %v1107 = vrot.slane %v365, %v1106
          %v1108 = vlaneseq
          %v1109 = vshrl.u32 %v1108, 7
          %v1110 = vsub.s32 4, %v1109
          %v1111 = vrot.slane %v365, %v1110
          %v1112 = vlaneseq
          %v1113 = vshrl.u32 %v1112, 7
          %v1114 = vsub.s32 6, %v1113
          %v1115 = vrot.slane %v365, %v1114
          %v1116 = vlaneseq
          %v1117 = vshrl.u32 %v1116, 7
          %v1118 = vsub.s32 0, %v1117
          %v1119 = vrot.slane %v366, %v1118
          %v1120 = vlaneseq
          %v1121 = vshrl.u32 %v1120, 7
          %v1122 = vsub.s32 2, %v1121
          %v1123 = vrot.slane %v366, %v1122
          %v1124 = vlaneseq
          %v1125 = vshrl.u32 %v1124, 7
          %v1126 = vsub.s32 4, %v1125
          %v1127 = vrot.slane %v366, %v1126
          %v1128 = vlaneseq
          %v1129 = vshrl.u32 %v1128, 7
          %v1130 = vsub.s32 6, %v1129
          %v1131 = vrot.slane %v366, %v1130
          %v1140 = vlaneseq
          %v1141 = vshrl.u32 %v1140, 7
          %v1142 = vsub.s32 0, %v1141
          %v1143 = vrot.slane %v1103, %v1142
          %v1144 = vlaneseq
          %v1145 = vshrl.u32 %v1144, 7
          %v1146 = vsub.s32 0, %v1145
          %v1147 = vrot.slane %v1107, %v1146
          %v1148 = vlaneseq
          %v1149 = vshrl.u32 %v1148, 7
          %v1150 = vsub.s32 0, %v1149
          %v1151 = vrot.slane %v1111, %v1150
          %v1152 = vlaneseq
          %v1153 = vshrl.u32 %v1152, 7
          %v1154 = vsub.s32 0, %v1153
          %v1155 = vrot.slane %v1115, %v1154
          %v1156 = vlaneseq
          %v1157 = vshrl.u32 %v1156, 7
          %v1158 = vsub.s32 0, %v1157
          %v1159 = vrot.slane %v1119, %v1158
          %v1160 = vlaneseq
          %v1161 = vshrl.u32 %v1160, 7
          %v1162 = vsub.s32 0, %v1161
          %v1163 = vrot.slane %v1123, %v1162
          %v1164 = vlaneseq
          %v1165 = vshrl.u32 %v1164, 7
          %v1166 = vsub.s32 0, %v1165
          %v1167 = vrot.slane %v1127, %v1166
          %v1168 = vlaneseq
          %v1169 = vshrl.u32 %v1168, 7
          %v1170 = vsub.s32 0, %v1169
          %v1171 = vrot.slane %v1131, %v1170
          %v1172 = vsel %vm1082, %v1143, 0.0
          %v1173 = vsel %vm1083, %v1147, 0.0
          %v1174 = vsel %vm1084, %v1151, 0.0
          %v1175 = vsel %vm1085, %v1155, 0.0
          %v1176 = vsel %vm1086, %v1159, 0.0
          %v1177 = vsel %vm1087, %v1163, 0.0
          %v1178 = vsel %vm1088, %v1167, 0.0
          %v1179 = vsel %vm1089, %v1171, 0.0
          %v1180 = vsel %vm1090, %v1143, 0.0
          %v1181 = vsel %vm1091, %v1147, 0.0
          %v1182 = vsel %vm1092, %v1151, 0.0
          %v1183 = vsel %vm1093, %v1155, 0.0
          %v1184 = vsel %vm1094, %v1159, 0.0
          %v1185 = vsel %vm1095, %v1163, 0.0
          %v1186 = vsel %vm1096, %v1167, 0.0
          %v1187 = vsel %vm1097, %v1171, 0.0
          %v1188 = vadd.f32 %v1002, %v1172
          %v1189 = vadd.f32 %v1003, %v1173
          %v1190 = vadd.f32 %v1004, %v1174
          %v1191 = vadd.f32 %v1005, %v1175
          %v1192 = vadd.f32 %v1006, %v1176
          %v1193 = vadd.f32 %v1007, %v1177
          %v1194 = vadd.f32 %v1008, %v1178
          %v1195 = vadd.f32 %v1009, %v1179
          %v1196 = vadd.f32 %v1010, %v1180
          %v1197 = vadd.f32 %v1011, %v1181
          %v1198 = vadd.f32 %v1012, %v1182
          %v1199 = vadd.f32 %v1013, %v1183
          %v1200 = vadd.f32 %v1014, %v1184
          %v1201 = vadd.f32 %v1015, %v1185
          %v1202 = vadd.f32 %v1016, %v1186
          %v1203 = vadd.f32 %v1017, %v1187
          %v1204 = vlaneseq
          %v1205 = vshrl.u32 %v1204, 7
          %v1206 = vsub.s32 0, %v1205
          %v1207 = vrot.slane %v369, %v1206
          %v1208 = vlaneseq
          %v1209 = vshrl.u32 %v1208, 7
          %v1210 = vsub.s32 2, %v1209
          %v1211 = vrot.slane %v369, %v1210
          %v1212 = vlaneseq
          %v1213 = vshrl.u32 %v1212, 7
          %v1214 = vsub.s32 4, %v1213
          %v1215 = vrot.slane %v369, %v1214
          %v1216 = vlaneseq
          %v1217 = vshrl.u32 %v1216, 7
          %v1218 = vsub.s32 6, %v1217
          %v1219 = vrot.slane %v369, %v1218
          %v1220 = vlaneseq
          %v1221 = vshrl.u32 %v1220, 7
          %v1222 = vsub.s32 0, %v1221
          %v1223 = vrot.slane %v370, %v1222
          %v1224 = vlaneseq
          %v1225 = vshrl.u32 %v1224, 7
          %v1226 = vsub.s32 2, %v1225
          %v1227 = vrot.slane %v370, %v1226
          %v1228 = vlaneseq
          %v1229 = vshrl.u32 %v1228, 7
          %v1230 = vsub.s32 4, %v1229
          %v1231 = vrot.slane %v370, %v1230
          %v1232 = vlaneseq
          %v1233 = vshrl.u32 %v1232, 7
          %v1234 = vsub.s32 6, %v1233
          %v1235 = vrot.slane %v370, %v1234
          %v1236 = vlaneseq
          %v1237 = vshrl.u32 %v1236, 7
          %v1238 = vsub.s32 0, %v1237
          %v1239 = vrot.slane %v1207, %v1238
          %v1240 = vlaneseq
          %v1241 = vshrl.u32 %v1240, 7
          %v1242 = vsub.s32 0, %v1241
          %v1243 = vrot.slane %v1211, %v1242
          %v1244 = vlaneseq
          %v1245 = vshrl.u32 %v1244, 7
          %v1246 = vsub.s32 0, %v1245
          %v1247 = vrot.slane %v1215, %v1246
          %v1248 = vlaneseq
          %v1249 = vshrl.u32 %v1248, 7
          %v1250 = vsub.s32 0, %v1249
          %v1251 = vrot.slane %v1219, %v1250
          %v1252 = vlaneseq
          %v1253 = vshrl.u32 %v1252, 7
          %v1254 = vsub.s32 0, %v1253
          %v1255 = vrot.slane %v1223, %v1254
          %v1256 = vlaneseq
          %v1257 = vshrl.u32 %v1256, 7
          %v1258 = vsub.s32 0, %v1257
          %v1259 = vrot.slane %v1227, %v1258
          %v1260 = vlaneseq
          %v1261 = vshrl.u32 %v1260, 7
          %v1262 = vsub.s32 0, %v1261
          %v1263 = vrot.slane %v1231, %v1262
          %v1264 = vlaneseq
          %v1265 = vshrl.u32 %v1264, 7
          %v1266 = vsub.s32 0, %v1265
          %v1267 = vrot.slane %v1235, %v1266
          %vm1268 = vcmp.eq.s32.totalorder %v1239, %v458
          %vm1269 = vcmp.eq.s32.totalorder %v1243, %v458
          %vm1270 = vcmp.eq.s32.totalorder %v1247, %v458
          %vm1271 = vcmp.eq.s32.totalorder %v1251, %v458
          %vm1272 = vcmp.eq.s32.totalorder %v1255, %v458
          %vm1273 = vcmp.eq.s32.totalorder %v1259, %v458
          %vm1274 = vcmp.eq.s32.totalorder %v1263, %v458
          %vm1275 = vcmp.eq.s32.totalorder %v1267, %v458
          %vm1276 = vcmp.eq.s32.totalorder %v1239, %v459
          %vm1277 = vcmp.eq.s32.totalorder %v1243, %v459
          %vm1278 = vcmp.eq.s32.totalorder %v1247, %v459
          %vm1279 = vcmp.eq.s32.totalorder %v1251, %v459
          %vm1280 = vcmp.eq.s32.totalorder %v1255, %v459
          %vm1281 = vcmp.eq.s32.totalorder %v1259, %v459
          %vm1282 = vcmp.eq.s32.totalorder %v1263, %v459
          %vm1283 = vcmp.eq.s32.totalorder %v1267, %v459
          %v1286 = vlaneseq
          %v1287 = vshrl.u32 %v1286, 7
          %v1288 = vsub.s32 0, %v1287
          %v1289 = vrot.slane %v371, %v1288
          %v1290 = vlaneseq
          %v1291 = vshrl.u32 %v1290, 7
          %v1292 = vsub.s32 2, %v1291
          %v1293 = vrot.slane %v371, %v1292
          %v1294 = vlaneseq
          %v1295 = vshrl.u32 %v1294, 7
          %v1296 = vsub.s32 4, %v1295
          %v1297 = vrot.slane %v371, %v1296
          %v1298 = vlaneseq
          %v1299 = vshrl.u32 %v1298, 7
          %v1300 = vsub.s32 6, %v1299
          %v1301 = vrot.slane %v371, %v1300
          %v1302 = vlaneseq
          %v1303 = vshrl.u32 %v1302, 7
          %v1304 = vsub.s32 0, %v1303
          %v1305 = vrot.slane %v372, %v1304
          %v1306 = vlaneseq
          %v1307 = vshrl.u32 %v1306, 7
          %v1308 = vsub.s32 2, %v1307
          %v1309 = vrot.slane %v372, %v1308
          %v1310 = vlaneseq
          %v1311 = vshrl.u32 %v1310, 7
          %v1312 = vsub.s32 4, %v1311
          %v1313 = vrot.slane %v372, %v1312
          %v1314 = vlaneseq
          %v1315 = vshrl.u32 %v1314, 7
          %v1316 = vsub.s32 6, %v1315
          %v1317 = vrot.slane %v372, %v1316
          %v1326 = vlaneseq
          %v1327 = vshrl.u32 %v1326, 7
          %v1328 = vsub.s32 0, %v1327
          %v1329 = vrot.slane %v1289, %v1328
          %v1330 = vlaneseq
          %v1331 = vshrl.u32 %v1330, 7
          %v1332 = vsub.s32 0, %v1331
          %v1333 = vrot.slane %v1293, %v1332
          %v1334 = vlaneseq
          %v1335 = vshrl.u32 %v1334, 7
          %v1336 = vsub.s32 0, %v1335
          %v1337 = vrot.slane %v1297, %v1336
          %v1338 = vlaneseq
          %v1339 = vshrl.u32 %v1338, 7
          %v1340 = vsub.s32 0, %v1339
          %v1341 = vrot.slane %v1301, %v1340
          %v1342 = vlaneseq
          %v1343 = vshrl.u32 %v1342, 7
          %v1344 = vsub.s32 0, %v1343
          %v1345 = vrot.slane %v1305, %v1344
          %v1346 = vlaneseq
          %v1347 = vshrl.u32 %v1346, 7
          %v1348 = vsub.s32 0, %v1347
          %v1349 = vrot.slane %v1309, %v1348
          %v1350 = vlaneseq
          %v1351 = vshrl.u32 %v1350, 7
          %v1352 = vsub.s32 0, %v1351
          %v1353 = vrot.slane %v1313, %v1352
          %v1354 = vlaneseq
          %v1355 = vshrl.u32 %v1354, 7
          %v1356 = vsub.s32 0, %v1355
          %v1357 = vrot.slane %v1317, %v1356
          %v1358 = vsel %vm1268, %v1329, 0.0
          %v1359 = vsel %vm1269, %v1333, 0.0
          %v1360 = vsel %vm1270, %v1337, 0.0
          %v1361 = vsel %vm1271, %v1341, 0.0
          %v1362 = vsel %vm1272, %v1345, 0.0
          %v1363 = vsel %vm1273, %v1349, 0.0
          %v1364 = vsel %vm1274, %v1353, 0.0
          %v1365 = vsel %vm1275, %v1357, 0.0
          %v1366 = vsel %vm1276, %v1329, 0.0
          %v1367 = vsel %vm1277, %v1333, 0.0
          %v1368 = vsel %vm1278, %v1337, 0.0
          %v1369 = vsel %vm1279, %v1341, 0.0
          %v1370 = vsel %vm1280, %v1345, 0.0
          %v1371 = vsel %vm1281, %v1349, 0.0
          %v1372 = vsel %vm1282, %v1353, 0.0
          %v1373 = vsel %vm1283, %v1357, 0.0
          %v1374 = vadd.f32 %v1188, %v1358
          %v1375 = vadd.f32 %v1189, %v1359
          %v1376 = vadd.f32 %v1190, %v1360
          %v1377 = vadd.f32 %v1191, %v1361
          %v1378 = vadd.f32 %v1192, %v1362
          %v1379 = vadd.f32 %v1193, %v1363
          %v1380 = vadd.f32 %v1194, %v1364
          %v1381 = vadd.f32 %v1195, %v1365
          %v1382 = vadd.f32 %v1196, %v1366
          %v1383 = vadd.f32 %v1197, %v1367
          %v1384 = vadd.f32 %v1198, %v1368
          %v1385 = vadd.f32 %v1199, %v1369
          %v1386 = vadd.f32 %v1200, %v1370
          %v1387 = vadd.f32 %v1201, %v1371
          %v1388 = vadd.f32 %v1202, %v1372
          %v1389 = vadd.f32 %v1203, %v1373
          %v1390 = vlaneseq
          %v1391 = vshrl.u32 %v1390, 7
          %v1392 = vsub.s32 0, %v1391
          %v1393 = vrot.slane %v375, %v1392
          %v1394 = vlaneseq
          %v1395 = vshrl.u32 %v1394, 7
          %v1396 = vsub.s32 2, %v1395
          %v1397 = vrot.slane %v375, %v1396
          %v1398 = vlaneseq
          %v1399 = vshrl.u32 %v1398, 7
          %v1400 = vsub.s32 4, %v1399
          %v1401 = vrot.slane %v375, %v1400
          %v1402 = vlaneseq
          %v1403 = vshrl.u32 %v1402, 7
          %v1404 = vsub.s32 6, %v1403
          %v1405 = vrot.slane %v375, %v1404
          %v1406 = vlaneseq
          %v1407 = vshrl.u32 %v1406, 7
          %v1408 = vsub.s32 0, %v1407
          %v1409 = vrot.slane %v376, %v1408
          %v1410 = vlaneseq
          %v1411 = vshrl.u32 %v1410, 7
          %v1412 = vsub.s32 2, %v1411
          %v1413 = vrot.slane %v376, %v1412
          %v1414 = vlaneseq
          %v1415 = vshrl.u32 %v1414, 7
          %v1416 = vsub.s32 4, %v1415
          %v1417 = vrot.slane %v376, %v1416
          %v1418 = vlaneseq
          %v1419 = vshrl.u32 %v1418, 7
          %v1420 = vsub.s32 6, %v1419
          %v1421 = vrot.slane %v376, %v1420
          %v1422 = vlaneseq
          %v1423 = vshrl.u32 %v1422, 7
          %v1424 = vsub.s32 0, %v1423
          %v1425 = vrot.slane %v1393, %v1424
          %v1426 = vlaneseq
          %v1427 = vshrl.u32 %v1426, 7
          %v1428 = vsub.s32 0, %v1427
          %v1429 = vrot.slane %v1397, %v1428
          %v1430 = vlaneseq
          %v1431 = vshrl.u32 %v1430, 7
          %v1432 = vsub.s32 0, %v1431
          %v1433 = vrot.slane %v1401, %v1432
          %v1434 = vlaneseq
          %v1435 = vshrl.u32 %v1434, 7
          %v1436 = vsub.s32 0, %v1435
          %v1437 = vrot.slane %v1405, %v1436
          %v1438 = vlaneseq
          %v1439 = vshrl.u32 %v1438, 7
          %v1440 = vsub.s32 0, %v1439
          %v1441 = vrot.slane %v1409, %v1440
          %v1442 = vlaneseq
          %v1443 = vshrl.u32 %v1442, 7
          %v1444 = vsub.s32 0, %v1443
          %v1445 = vrot.slane %v1413, %v1444
          %v1446 = vlaneseq
          %v1447 = vshrl.u32 %v1446, 7
          %v1448 = vsub.s32 0, %v1447
          %v1449 = vrot.slane %v1417, %v1448
          %v1450 = vlaneseq
          %v1451 = vshrl.u32 %v1450, 7
          %v1452 = vsub.s32 0, %v1451
          %v1453 = vrot.slane %v1421, %v1452
          %vm1454 = vcmp.eq.s32.totalorder %v1425, %v458
          %vm1455 = vcmp.eq.s32.totalorder %v1429, %v458
          %vm1456 = vcmp.eq.s32.totalorder %v1433, %v458
          %vm1457 = vcmp.eq.s32.totalorder %v1437, %v458
          %vm1458 = vcmp.eq.s32.totalorder %v1441, %v458
          %vm1459 = vcmp.eq.s32.totalorder %v1445, %v458
          %vm1460 = vcmp.eq.s32.totalorder %v1449, %v458
          %vm1461 = vcmp.eq.s32.totalorder %v1453, %v458
          %vm1462 = vcmp.eq.s32.totalorder %v1425, %v459
          %vm1463 = vcmp.eq.s32.totalorder %v1429, %v459
          %vm1464 = vcmp.eq.s32.totalorder %v1433, %v459
          %vm1465 = vcmp.eq.s32.totalorder %v1437, %v459
          %vm1466 = vcmp.eq.s32.totalorder %v1441, %v459
          %vm1467 = vcmp.eq.s32.totalorder %v1445, %v459
          %vm1468 = vcmp.eq.s32.totalorder %v1449, %v459
          %vm1469 = vcmp.eq.s32.totalorder %v1453, %v459
          %v1472 = vlaneseq
          %v1473 = vshrl.u32 %v1472, 7
          %v1474 = vsub.s32 0, %v1473
          %v1475 = vrot.slane %v377, %v1474
          %v1476 = vlaneseq
          %v1477 = vshrl.u32 %v1476, 7
          %v1478 = vsub.s32 2, %v1477
          %v1479 = vrot.slane %v377, %v1478
          %v1480 = vlaneseq
          %v1481 = vshrl.u32 %v1480, 7
          %v1482 = vsub.s32 4, %v1481
          %v1483 = vrot.slane %v377, %v1482
          %v1484 = vlaneseq
          %v1485 = vshrl.u32 %v1484, 7
          %v1486 = vsub.s32 6, %v1485
          %v1487 = vrot.slane %v377, %v1486
          %v1488 = vlaneseq
          %v1489 = vshrl.u32 %v1488, 7
          %v1490 = vsub.s32 0, %v1489
          %v1491 = vrot.slane %v378, %v1490
          %v1492 = vlaneseq
          %v1493 = vshrl.u32 %v1492, 7
          %v1494 = vsub.s32 2, %v1493
          %v1495 = vrot.slane %v378, %v1494
          %v1496 = vlaneseq
          %v1497 = vshrl.u32 %v1496, 7
          %v1498 = vsub.s32 4, %v1497
          %v1499 = vrot.slane %v378, %v1498
          %v1500 = vlaneseq
          %v1501 = vshrl.u32 %v1500, 7
          %v1502 = vsub.s32 6, %v1501
          %v1503 = vrot.slane %v378, %v1502
          %v1512 = vlaneseq
          %v1513 = vshrl.u32 %v1512, 7
          %v1514 = vsub.s32 0, %v1513
          %v1515 = vrot.slane %v1475, %v1514
          %v1516 = vlaneseq
          %v1517 = vshrl.u32 %v1516, 7
          %v1518 = vsub.s32 0, %v1517
          %v1519 = vrot.slane %v1479, %v1518
          %v1520 = vlaneseq
          %v1521 = vshrl.u32 %v1520, 7
          %v1522 = vsub.s32 0, %v1521
          %v1523 = vrot.slane %v1483, %v1522
          %v1524 = vlaneseq
          %v1525 = vshrl.u32 %v1524, 7
          %v1526 = vsub.s32 0, %v1525
          %v1527 = vrot.slane %v1487, %v1526
          %v1528 = vlaneseq
          %v1529 = vshrl.u32 %v1528, 7
          %v1530 = vsub.s32 0, %v1529
          %v1531 = vrot.slane %v1491, %v1530
          %v1532 = vlaneseq
          %v1533 = vshrl.u32 %v1532, 7
          %v1534 = vsub.s32 0, %v1533
          %v1535 = vrot.slane %v1495, %v1534
          %v1536 = vlaneseq
          %v1537 = vshrl.u32 %v1536, 7
          %v1538 = vsub.s32 0, %v1537
          %v1539 = vrot.slane %v1499, %v1538
          %v1540 = vlaneseq
          %v1541 = vshrl.u32 %v1540, 7
          %v1542 = vsub.s32 0, %v1541
          %v1543 = vrot.slane %v1503, %v1542
          %v1544 = vsel %vm1454, %v1515, 0.0
          %v1545 = vsel %vm1455, %v1519, 0.0
          %v1546 = vsel %vm1456, %v1523, 0.0
          %v1547 = vsel %vm1457, %v1527, 0.0
          %v1548 = vsel %vm1458, %v1531, 0.0
          %v1549 = vsel %vm1459, %v1535, 0.0
          %v1550 = vsel %vm1460, %v1539, 0.0
          %v1551 = vsel %vm1461, %v1543, 0.0
          %v1552 = vsel %vm1462, %v1515, 0.0
          %v1553 = vsel %vm1463, %v1519, 0.0
          %v1554 = vsel %vm1464, %v1523, 0.0
          %v1555 = vsel %vm1465, %v1527, 0.0
          %v1556 = vsel %vm1466, %v1531, 0.0
          %v1557 = vsel %vm1467, %v1535, 0.0
          %v1558 = vsel %vm1468, %v1539, 0.0
          %v1559 = vsel %vm1469, %v1543, 0.0
          %v1560 = vadd.f32 %v1374, %v1544
          %v1561 = vadd.f32 %v1375, %v1545
          %v1562 = vadd.f32 %v1376, %v1546
          %v1563 = vadd.f32 %v1377, %v1547
          %v1564 = vadd.f32 %v1378, %v1548
          %v1565 = vadd.f32 %v1379, %v1549
          %v1566 = vadd.f32 %v1380, %v1550
          %v1567 = vadd.f32 %v1381, %v1551
          %v1568 = vadd.f32 %v1382, %v1552
          %v1569 = vadd.f32 %v1383, %v1553
          %v1570 = vadd.f32 %v1384, %v1554
          %v1571 = vadd.f32 %v1385, %v1555
          %v1572 = vadd.f32 %v1386, %v1556
          %v1573 = vadd.f32 %v1387, %v1557
          %v1574 = vadd.f32 %v1388, %v1558
          %v1575 = vadd.f32 %v1389, %v1559
          %v1576 = vlaneseq
          %v1577 = vshrl.u32 %v1576, 7
          %v1578 = vsub.s32 0, %v1577
          %v1579 = vrot.slane %v381, %v1578
          %v1580 = vlaneseq
          %v1581 = vshrl.u32 %v1580, 7
          %v1582 = vsub.s32 2, %v1581
          %v1583 = vrot.slane %v381, %v1582
          %v1584 = vlaneseq
          %v1585 = vshrl.u32 %v1584, 7
          %v1586 = vsub.s32 4, %v1585
          %v1587 = vrot.slane %v381, %v1586
          %v1588 = vlaneseq
          %v1589 = vshrl.u32 %v1588, 7
          %v1590 = vsub.s32 6, %v1589
          %v1591 = vrot.slane %v381, %v1590
          %v1592 = vlaneseq
          %v1593 = vshrl.u32 %v1592, 7
          %v1594 = vsub.s32 0, %v1593
          %v1595 = vrot.slane %v382, %v1594
          %v1596 = vlaneseq
          %v1597 = vshrl.u32 %v1596, 7
          %v1598 = vsub.s32 2, %v1597
          %v1599 = vrot.slane %v382, %v1598
          %v1600 = vlaneseq
          %v1601 = vshrl.u32 %v1600, 7
          %v1602 = vsub.s32 4, %v1601
          %v1603 = vrot.slane %v382, %v1602
          %v1604 = vlaneseq
          %v1605 = vshrl.u32 %v1604, 7
          %v1606 = vsub.s32 6, %v1605
          %v1607 = vrot.slane %v382, %v1606
          %v1608 = vlaneseq
          %v1609 = vshrl.u32 %v1608, 7
          %v1610 = vsub.s32 0, %v1609
          %v1611 = vrot.slane %v1579, %v1610
          %v1612 = vlaneseq
          %v1613 = vshrl.u32 %v1612, 7
          %v1614 = vsub.s32 0, %v1613
          %v1615 = vrot.slane %v1583, %v1614
          %v1616 = vlaneseq
          %v1617 = vshrl.u32 %v1616, 7
          %v1618 = vsub.s32 0, %v1617
          %v1619 = vrot.slane %v1587, %v1618
          %v1620 = vlaneseq
          %v1621 = vshrl.u32 %v1620, 7
          %v1622 = vsub.s32 0, %v1621
          %v1623 = vrot.slane %v1591, %v1622
          %v1624 = vlaneseq
          %v1625 = vshrl.u32 %v1624, 7
          %v1626 = vsub.s32 0, %v1625
          %v1627 = vrot.slane %v1595, %v1626
          %v1628 = vlaneseq
          %v1629 = vshrl.u32 %v1628, 7
          %v1630 = vsub.s32 0, %v1629
          %v1631 = vrot.slane %v1599, %v1630
          %v1632 = vlaneseq
          %v1633 = vshrl.u32 %v1632, 7
          %v1634 = vsub.s32 0, %v1633
          %v1635 = vrot.slane %v1603, %v1634
          %v1636 = vlaneseq
          %v1637 = vshrl.u32 %v1636, 7
          %v1638 = vsub.s32 0, %v1637
          %v1639 = vrot.slane %v1607, %v1638
          %vm1640 = vcmp.eq.s32.totalorder %v1611, %v458
          %vm1641 = vcmp.eq.s32.totalorder %v1615, %v458
          %vm1642 = vcmp.eq.s32.totalorder %v1619, %v458
          %vm1643 = vcmp.eq.s32.totalorder %v1623, %v458
          %vm1644 = vcmp.eq.s32.totalorder %v1627, %v458
          %vm1645 = vcmp.eq.s32.totalorder %v1631, %v458
          %vm1646 = vcmp.eq.s32.totalorder %v1635, %v458
          %vm1647 = vcmp.eq.s32.totalorder %v1639, %v458
          %vm1648 = vcmp.eq.s32.totalorder %v1611, %v459
          %vm1649 = vcmp.eq.s32.totalorder %v1615, %v459
          %vm1650 = vcmp.eq.s32.totalorder %v1619, %v459
          %vm1651 = vcmp.eq.s32.totalorder %v1623, %v459
          %vm1652 = vcmp.eq.s32.totalorder %v1627, %v459
          %vm1653 = vcmp.eq.s32.totalorder %v1631, %v459
          %vm1654 = vcmp.eq.s32.totalorder %v1635, %v459
          %vm1655 = vcmp.eq.s32.totalorder %v1639, %v459
          %v1658 = vlaneseq
          %v1659 = vshrl.u32 %v1658, 7
          %v1660 = vsub.s32 0, %v1659
          %v1661 = vrot.slane %v383, %v1660
          %v1662 = vlaneseq
          %v1663 = vshrl.u32 %v1662, 7
          %v1664 = vsub.s32 2, %v1663
          %v1665 = vrot.slane %v383, %v1664
          %v1666 = vlaneseq
          %v1667 = vshrl.u32 %v1666, 7
          %v1668 = vsub.s32 4, %v1667
          %v1669 = vrot.slane %v383, %v1668
          %v1670 = vlaneseq
          %v1671 = vshrl.u32 %v1670, 7
          %v1672 = vsub.s32 6, %v1671
          %v1673 = vrot.slane %v383, %v1672
          %v1674 = vlaneseq
          %v1675 = vshrl.u32 %v1674, 7
          %v1676 = vsub.s32 0, %v1675
          %v1677 = vrot.slane %v384, %v1676
          %v1678 = vlaneseq
          %v1679 = vshrl.u32 %v1678, 7
          %v1680 = vsub.s32 2, %v1679
          %v1681 = vrot.slane %v384, %v1680
          %v1682 = vlaneseq
          %v1683 = vshrl.u32 %v1682, 7
          %v1684 = vsub.s32 4, %v1683
          %v1685 = vrot.slane %v384, %v1684
          %v1686 = vlaneseq
          %v1687 = vshrl.u32 %v1686, 7
          %v1688 = vsub.s32 6, %v1687
          %v1689 = vrot.slane %v384, %v1688
          %v1698 = vlaneseq
          %v1699 = vshrl.u32 %v1698, 7
          %v1700 = vsub.s32 0, %v1699
          %v1701 = vrot.slane %v1661, %v1700
          %v1702 = vlaneseq
          %v1703 = vshrl.u32 %v1702, 7
          %v1704 = vsub.s32 0, %v1703
          %v1705 = vrot.slane %v1665, %v1704
          %v1706 = vlaneseq
          %v1707 = vshrl.u32 %v1706, 7
          %v1708 = vsub.s32 0, %v1707
          %v1709 = vrot.slane %v1669, %v1708
          %v1710 = vlaneseq
          %v1711 = vshrl.u32 %v1710, 7
          %v1712 = vsub.s32 0, %v1711
          %v1713 = vrot.slane %v1673, %v1712
          %v1714 = vlaneseq
          %v1715 = vshrl.u32 %v1714, 7
          %v1716 = vsub.s32 0, %v1715
          %v1717 = vrot.slane %v1677, %v1716
          %v1718 = vlaneseq
          %v1719 = vshrl.u32 %v1718, 7
          %v1720 = vsub.s32 0, %v1719
          %v1721 = vrot.slane %v1681, %v1720
          %v1722 = vlaneseq
          %v1723 = vshrl.u32 %v1722, 7
          %v1724 = vsub.s32 0, %v1723
          %v1725 = vrot.slane %v1685, %v1724
          %v1726 = vlaneseq
          %v1727 = vshrl.u32 %v1726, 7
          %v1728 = vsub.s32 0, %v1727
          %v1729 = vrot.slane %v1689, %v1728
          %v1730 = vsel %vm1640, %v1701, 0.0
          %v1731 = vsel %vm1641, %v1705, 0.0
          %v1732 = vsel %vm1642, %v1709, 0.0
          %v1733 = vsel %vm1643, %v1713, 0.0
          %v1734 = vsel %vm1644, %v1717, 0.0
          %v1735 = vsel %vm1645, %v1721, 0.0
          %v1736 = vsel %vm1646, %v1725, 0.0
          %v1737 = vsel %vm1647, %v1729, 0.0
          %v1738 = vsel %vm1648, %v1701, 0.0
          %v1739 = vsel %vm1649, %v1705, 0.0
          %v1740 = vsel %vm1650, %v1709, 0.0
          %v1741 = vsel %vm1651, %v1713, 0.0
          %v1742 = vsel %vm1652, %v1717, 0.0
          %v1743 = vsel %vm1653, %v1721, 0.0
          %v1744 = vsel %vm1654, %v1725, 0.0
          %v1745 = vsel %vm1655, %v1729, 0.0
          %v1746 = vadd.f32 %v1560, %v1730
          %v1747 = vadd.f32 %v1561, %v1731
          %v1748 = vadd.f32 %v1562, %v1732
          %v1749 = vadd.f32 %v1563, %v1733
          %v1750 = vadd.f32 %v1564, %v1734
          %v1751 = vadd.f32 %v1565, %v1735
          %v1752 = vadd.f32 %v1566, %v1736
          %v1753 = vadd.f32 %v1567, %v1737
          %v1754 = vadd.f32 %v1568, %v1738
          %v1755 = vadd.f32 %v1569, %v1739
          %v1756 = vadd.f32 %v1570, %v1740
          %v1757 = vadd.f32 %v1571, %v1741
          %v1758 = vadd.f32 %v1572, %v1742
          %v1759 = vadd.f32 %v1573, %v1743
          %v1760 = vadd.f32 %v1574, %v1744
          %v1761 = vadd.f32 %v1575, %v1745
          %v1762 = vlaneseq
          %v1763 = vshrl.u32 %v1762, 7
          %v1764 = vsub.s32 0, %v1763
          %v1765 = vrot.slane %v387, %v1764
          %v1766 = vlaneseq
          %v1767 = vshrl.u32 %v1766, 7
          %v1768 = vsub.s32 2, %v1767
          %v1769 = vrot.slane %v387, %v1768
          %v1770 = vlaneseq
          %v1771 = vshrl.u32 %v1770, 7
          %v1772 = vsub.s32 4, %v1771
          %v1773 = vrot.slane %v387, %v1772
          %v1774 = vlaneseq
          %v1775 = vshrl.u32 %v1774, 7
          %v1776 = vsub.s32 6, %v1775
          %v1777 = vrot.slane %v387, %v1776
          %v1778 = vlaneseq
          %v1779 = vshrl.u32 %v1778, 7
          %v1780 = vsub.s32 0, %v1779
          %v1781 = vrot.slane %v388, %v1780
          %v1782 = vlaneseq
          %v1783 = vshrl.u32 %v1782, 7
          %v1784 = vsub.s32 2, %v1783
          %v1785 = vrot.slane %v388, %v1784
          %v1786 = vlaneseq
          %v1787 = vshrl.u32 %v1786, 7
          %v1788 = vsub.s32 4, %v1787
          %v1789 = vrot.slane %v388, %v1788
          %v1790 = vlaneseq
          %v1791 = vshrl.u32 %v1790, 7
          %v1792 = vsub.s32 6, %v1791
          %v1793 = vrot.slane %v388, %v1792
          %v1794 = vlaneseq
          %v1795 = vshrl.u32 %v1794, 7
          %v1796 = vsub.s32 0, %v1795
          %v1797 = vrot.slane %v1765, %v1796
          %v1798 = vlaneseq
          %v1799 = vshrl.u32 %v1798, 7
          %v1800 = vsub.s32 0, %v1799
          %v1801 = vrot.slane %v1769, %v1800
          %v1802 = vlaneseq
          %v1803 = vshrl.u32 %v1802, 7
          %v1804 = vsub.s32 0, %v1803
          %v1805 = vrot.slane %v1773, %v1804
          %v1806 = vlaneseq
          %v1807 = vshrl.u32 %v1806, 7
          %v1808 = vsub.s32 0, %v1807
          %v1809 = vrot.slane %v1777, %v1808
          %v1810 = vlaneseq
          %v1811 = vshrl.u32 %v1810, 7
          %v1812 = vsub.s32 0, %v1811
          %v1813 = vrot.slane %v1781, %v1812
          %v1814 = vlaneseq
          %v1815 = vshrl.u32 %v1814, 7
          %v1816 = vsub.s32 0, %v1815
          %v1817 = vrot.slane %v1785, %v1816
          %v1818 = vlaneseq
          %v1819 = vshrl.u32 %v1818, 7
          %v1820 = vsub.s32 0, %v1819
          %v1821 = vrot.slane %v1789, %v1820
          %v1822 = vlaneseq
          %v1823 = vshrl.u32 %v1822, 7
          %v1824 = vsub.s32 0, %v1823
          %v1825 = vrot.slane %v1793, %v1824
          %vm1826 = vcmp.eq.s32.totalorder %v1797, %v458
          %vm1827 = vcmp.eq.s32.totalorder %v1801, %v458
          %vm1828 = vcmp.eq.s32.totalorder %v1805, %v458
          %vm1829 = vcmp.eq.s32.totalorder %v1809, %v458
          %vm1830 = vcmp.eq.s32.totalorder %v1813, %v458
          %vm1831 = vcmp.eq.s32.totalorder %v1817, %v458
          %vm1832 = vcmp.eq.s32.totalorder %v1821, %v458
          %vm1833 = vcmp.eq.s32.totalorder %v1825, %v458
          %vm1834 = vcmp.eq.s32.totalorder %v1797, %v459
          %vm1835 = vcmp.eq.s32.totalorder %v1801, %v459
          %vm1836 = vcmp.eq.s32.totalorder %v1805, %v459
          %vm1837 = vcmp.eq.s32.totalorder %v1809, %v459
          %vm1838 = vcmp.eq.s32.totalorder %v1813, %v459
          %vm1839 = vcmp.eq.s32.totalorder %v1817, %v459
          %vm1840 = vcmp.eq.s32.totalorder %v1821, %v459
          %vm1841 = vcmp.eq.s32.totalorder %v1825, %v459
          %v1844 = vlaneseq
          %v1845 = vshrl.u32 %v1844, 7
          %v1846 = vsub.s32 0, %v1845
          %v1847 = vrot.slane %v389, %v1846
          %v1848 = vlaneseq
          %v1849 = vshrl.u32 %v1848, 7
          %v1850 = vsub.s32 2, %v1849
          %v1851 = vrot.slane %v389, %v1850
          %v1852 = vlaneseq
          %v1853 = vshrl.u32 %v1852, 7
          %v1854 = vsub.s32 4, %v1853
          %v1855 = vrot.slane %v389, %v1854
          %v1856 = vlaneseq
          %v1857 = vshrl.u32 %v1856, 7
          %v1858 = vsub.s32 6, %v1857
          %v1859 = vrot.slane %v389, %v1858
          %v1860 = vlaneseq
          %v1861 = vshrl.u32 %v1860, 7
          %v1862 = vsub.s32 0, %v1861
          %v1863 = vrot.slane %v390, %v1862
          %v1864 = vlaneseq
          %v1865 = vshrl.u32 %v1864, 7
          %v1866 = vsub.s32 2, %v1865
          %v1867 = vrot.slane %v390, %v1866
          %v1868 = vlaneseq
          %v1869 = vshrl.u32 %v1868, 7
          %v1870 = vsub.s32 4, %v1869
          %v1871 = vrot.slane %v390, %v1870
          %v1872 = vlaneseq
          %v1873 = vshrl.u32 %v1872, 7
          %v1874 = vsub.s32 6, %v1873
          %v1875 = vrot.slane %v390, %v1874
          %v1884 = vlaneseq
          %v1885 = vshrl.u32 %v1884, 7
          %v1886 = vsub.s32 0, %v1885
          %v1887 = vrot.slane %v1847, %v1886
          %v1888 = vlaneseq
          %v1889 = vshrl.u32 %v1888, 7
          %v1890 = vsub.s32 0, %v1889
          %v1891 = vrot.slane %v1851, %v1890
          %v1892 = vlaneseq
          %v1893 = vshrl.u32 %v1892, 7
          %v1894 = vsub.s32 0, %v1893
          %v1895 = vrot.slane %v1855, %v1894
          %v1896 = vlaneseq
          %v1897 = vshrl.u32 %v1896, 7
          %v1898 = vsub.s32 0, %v1897
          %v1899 = vrot.slane %v1859, %v1898
          %v1900 = vlaneseq
          %v1901 = vshrl.u32 %v1900, 7
          %v1902 = vsub.s32 0, %v1901
          %v1903 = vrot.slane %v1863, %v1902
          %v1904 = vlaneseq
          %v1905 = vshrl.u32 %v1904, 7
          %v1906 = vsub.s32 0, %v1905
          %v1907 = vrot.slane %v1867, %v1906
          %v1908 = vlaneseq
          %v1909 = vshrl.u32 %v1908, 7
          %v1910 = vsub.s32 0, %v1909
          %v1911 = vrot.slane %v1871, %v1910
          %v1912 = vlaneseq
          %v1913 = vshrl.u32 %v1912, 7
          %v1914 = vsub.s32 0, %v1913
          %v1915 = vrot.slane %v1875, %v1914
          %v1916 = vsel %vm1826, %v1887, 0.0
          %v1917 = vsel %vm1827, %v1891, 0.0
          %v1918 = vsel %vm1828, %v1895, 0.0
          %v1919 = vsel %vm1829, %v1899, 0.0
          %v1920 = vsel %vm1830, %v1903, 0.0
          %v1921 = vsel %vm1831, %v1907, 0.0
          %v1922 = vsel %vm1832, %v1911, 0.0
          %v1923 = vsel %vm1833, %v1915, 0.0
          %v1924 = vsel %vm1834, %v1887, 0.0
          %v1925 = vsel %vm1835, %v1891, 0.0
          %v1926 = vsel %vm1836, %v1895, 0.0
          %v1927 = vsel %vm1837, %v1899, 0.0
          %v1928 = vsel %vm1838, %v1903, 0.0
          %v1929 = vsel %vm1839, %v1907, 0.0
          %v1930 = vsel %vm1840, %v1911, 0.0
          %v1931 = vsel %vm1841, %v1915, 0.0
          %v1932 = vadd.f32 %v1746, %v1916
          %v1933 = vadd.f32 %v1747, %v1917
          %v1934 = vadd.f32 %v1748, %v1918
          %v1935 = vadd.f32 %v1749, %v1919
          %v1936 = vadd.f32 %v1750, %v1920
          %v1937 = vadd.f32 %v1751, %v1921
          %v1938 = vadd.f32 %v1752, %v1922
          %v1939 = vadd.f32 %v1753, %v1923
          %v1940 = vadd.f32 %v1754, %v1924
          %v1941 = vadd.f32 %v1755, %v1925
          %v1942 = vadd.f32 %v1756, %v1926
          %v1943 = vadd.f32 %v1757, %v1927
          %v1944 = vadd.f32 %v1758, %v1928
          %v1945 = vadd.f32 %v1759, %v1929
          %v1946 = vadd.f32 %v1760, %v1930
          %v1947 = vadd.f32 %v1761, %v1931
          %v1948 = vlaneseq
          %v1949 = vshrl.u32 %v1948, 7
          %v1950 = vsub.s32 0, %v1949
          %v1951 = vrot.slane %v393, %v1950
          %v1952 = vlaneseq
          %v1953 = vshrl.u32 %v1952, 7
          %v1954 = vsub.s32 2, %v1953
          %v1955 = vrot.slane %v393, %v1954
          %v1956 = vlaneseq
          %v1957 = vshrl.u32 %v1956, 7
          %v1958 = vsub.s32 4, %v1957
          %v1959 = vrot.slane %v393, %v1958
          %v1960 = vlaneseq
          %v1961 = vshrl.u32 %v1960, 7
          %v1962 = vsub.s32 6, %v1961
          %v1963 = vrot.slane %v393, %v1962
          %v1964 = vlaneseq
          %v1965 = vshrl.u32 %v1964, 7
          %v1966 = vsub.s32 0, %v1965
          %v1967 = vrot.slane %v394, %v1966
          %v1968 = vlaneseq
          %v1969 = vshrl.u32 %v1968, 7
          %v1970 = vsub.s32 2, %v1969
          %v1971 = vrot.slane %v394, %v1970
          %v1972 = vlaneseq
          %v1973 = vshrl.u32 %v1972, 7
          %v1974 = vsub.s32 4, %v1973
          %v1975 = vrot.slane %v394, %v1974
          %v1976 = vlaneseq
          %v1977 = vshrl.u32 %v1976, 7
          %v1978 = vsub.s32 6, %v1977
          %v1979 = vrot.slane %v394, %v1978
          %v1980 = vlaneseq
          %v1981 = vshrl.u32 %v1980, 7
          %v1982 = vsub.s32 0, %v1981
          %v1983 = vrot.slane %v1951, %v1982
          %v1984 = vlaneseq
          %v1985 = vshrl.u32 %v1984, 7
          %v1986 = vsub.s32 0, %v1985
          %v1987 = vrot.slane %v1955, %v1986
          %v1988 = vlaneseq
          %v1989 = vshrl.u32 %v1988, 7
          %v1990 = vsub.s32 0, %v1989
          %v1991 = vrot.slane %v1959, %v1990
          %v1992 = vlaneseq
          %v1993 = vshrl.u32 %v1992, 7
          %v1994 = vsub.s32 0, %v1993
          %v1995 = vrot.slane %v1963, %v1994
          %v1996 = vlaneseq
          %v1997 = vshrl.u32 %v1996, 7
          %v1998 = vsub.s32 0, %v1997
          %v1999 = vrot.slane %v1967, %v1998
          %v2000 = vlaneseq
          %v2001 = vshrl.u32 %v2000, 7
          %v2002 = vsub.s32 0, %v2001
          %v2003 = vrot.slane %v1971, %v2002
          %v2004 = vlaneseq
          %v2005 = vshrl.u32 %v2004, 7
          %v2006 = vsub.s32 0, %v2005
          %v2007 = vrot.slane %v1975, %v2006
          %v2008 = vlaneseq
          %v2009 = vshrl.u32 %v2008, 7
          %v2010 = vsub.s32 0, %v2009
          %v2011 = vrot.slane %v1979, %v2010
          %vm2012 = vcmp.eq.s32.totalorder %v1983, %v458
          %vm2013 = vcmp.eq.s32.totalorder %v1987, %v458
          %vm2014 = vcmp.eq.s32.totalorder %v1991, %v458
          %vm2015 = vcmp.eq.s32.totalorder %v1995, %v458
          %vm2016 = vcmp.eq.s32.totalorder %v1999, %v458
          %vm2017 = vcmp.eq.s32.totalorder %v2003, %v458
          %vm2018 = vcmp.eq.s32.totalorder %v2007, %v458
          %vm2019 = vcmp.eq.s32.totalorder %v2011, %v458
          %vm2020 = vcmp.eq.s32.totalorder %v1983, %v459
          %vm2021 = vcmp.eq.s32.totalorder %v1987, %v459
          %vm2022 = vcmp.eq.s32.totalorder %v1991, %v459
          %vm2023 = vcmp.eq.s32.totalorder %v1995, %v459
          %vm2024 = vcmp.eq.s32.totalorder %v1999, %v459
          %vm2025 = vcmp.eq.s32.totalorder %v2003, %v459
          %vm2026 = vcmp.eq.s32.totalorder %v2007, %v459
          %vm2027 = vcmp.eq.s32.totalorder %v2011, %v459
          %v2030 = vlaneseq
          %v2031 = vshrl.u32 %v2030, 7
          %v2032 = vsub.s32 0, %v2031
          %v2033 = vrot.slane %v395, %v2032
          %v2034 = vlaneseq
          %v2035 = vshrl.u32 %v2034, 7
          %v2036 = vsub.s32 2, %v2035
          %v2037 = vrot.slane %v395, %v2036
          %v2038 = vlaneseq
          %v2039 = vshrl.u32 %v2038, 7
          %v2040 = vsub.s32 4, %v2039
          %v2041 = vrot.slane %v395, %v2040
          %v2042 = vlaneseq
          %v2043 = vshrl.u32 %v2042, 7
          %v2044 = vsub.s32 6, %v2043
          %v2045 = vrot.slane %v395, %v2044
          %v2046 = vlaneseq
          %v2047 = vshrl.u32 %v2046, 7
          %v2048 = vsub.s32 0, %v2047
          %v2049 = vrot.slane %v396, %v2048
          %v2050 = vlaneseq
          %v2051 = vshrl.u32 %v2050, 7
          %v2052 = vsub.s32 2, %v2051
          %v2053 = vrot.slane %v396, %v2052
          %v2054 = vlaneseq
          %v2055 = vshrl.u32 %v2054, 7
          %v2056 = vsub.s32 4, %v2055
          %v2057 = vrot.slane %v396, %v2056
          %v2058 = vlaneseq
          %v2059 = vshrl.u32 %v2058, 7
          %v2060 = vsub.s32 6, %v2059
          %v2061 = vrot.slane %v396, %v2060
          %v2070 = vlaneseq
          %v2071 = vshrl.u32 %v2070, 7
          %v2072 = vsub.s32 0, %v2071
          %v2073 = vrot.slane %v2033, %v2072
          %v2074 = vlaneseq
          %v2075 = vshrl.u32 %v2074, 7
          %v2076 = vsub.s32 0, %v2075
          %v2077 = vrot.slane %v2037, %v2076
          %v2078 = vlaneseq
          %v2079 = vshrl.u32 %v2078, 7
          %v2080 = vsub.s32 0, %v2079
          %v2081 = vrot.slane %v2041, %v2080
          %v2082 = vlaneseq
          %v2083 = vshrl.u32 %v2082, 7
          %v2084 = vsub.s32 0, %v2083
          %v2085 = vrot.slane %v2045, %v2084
          %v2086 = vlaneseq
          %v2087 = vshrl.u32 %v2086, 7
          %v2088 = vsub.s32 0, %v2087
          %v2089 = vrot.slane %v2049, %v2088
          %v2090 = vlaneseq
          %v2091 = vshrl.u32 %v2090, 7
          %v2092 = vsub.s32 0, %v2091
          %v2093 = vrot.slane %v2053, %v2092
          %v2094 = vlaneseq
          %v2095 = vshrl.u32 %v2094, 7
          %v2096 = vsub.s32 0, %v2095
          %v2097 = vrot.slane %v2057, %v2096
          %v2098 = vlaneseq
          %v2099 = vshrl.u32 %v2098, 7
          %v2100 = vsub.s32 0, %v2099
          %v2101 = vrot.slane %v2061, %v2100
          %v2102 = vsel %vm2012, %v2073, 0.0
          %v2103 = vsel %vm2013, %v2077, 0.0
          %v2104 = vsel %vm2014, %v2081, 0.0
          %v2105 = vsel %vm2015, %v2085, 0.0
          %v2106 = vsel %vm2016, %v2089, 0.0
          %v2107 = vsel %vm2017, %v2093, 0.0
          %v2108 = vsel %vm2018, %v2097, 0.0
          %v2109 = vsel %vm2019, %v2101, 0.0
          %v2110 = vsel %vm2020, %v2073, 0.0
          %v2111 = vsel %vm2021, %v2077, 0.0
          %v2112 = vsel %vm2022, %v2081, 0.0
          %v2113 = vsel %vm2023, %v2085, 0.0
          %v2114 = vsel %vm2024, %v2089, 0.0
          %v2115 = vsel %vm2025, %v2093, 0.0
          %v2116 = vsel %vm2026, %v2097, 0.0
          %v2117 = vsel %vm2027, %v2101, 0.0
          %v2118 = vadd.f32 %v1932, %v2102
          %v2119 = vadd.f32 %v1933, %v2103
          %v2120 = vadd.f32 %v1934, %v2104
          %v2121 = vadd.f32 %v1935, %v2105
          %v2122 = vadd.f32 %v1936, %v2106
          %v2123 = vadd.f32 %v1937, %v2107
          %v2124 = vadd.f32 %v1938, %v2108
          %v2125 = vadd.f32 %v1939, %v2109
          %v2126 = vadd.f32 %v1940, %v2110
          %v2127 = vadd.f32 %v1941, %v2111
          %v2128 = vadd.f32 %v1942, %v2112
          %v2129 = vadd.f32 %v1943, %v2113
          %v2130 = vadd.f32 %v1944, %v2114
          %v2131 = vadd.f32 %v1945, %v2115
          %v2132 = vadd.f32 %v1946, %v2116
          %v2133 = vadd.f32 %v1947, %v2117
          %v2134 = vlaneseq
          %v2135 = vshrl.u32 %v2134, 7
          %v2136 = vsub.s32 0, %v2135
          %v2137 = vrot.slane %v399, %v2136
          %v2138 = vlaneseq
          %v2139 = vshrl.u32 %v2138, 7
          %v2140 = vsub.s32 2, %v2139
          %v2141 = vrot.slane %v399, %v2140
          %v2142 = vlaneseq
          %v2143 = vshrl.u32 %v2142, 7
          %v2144 = vsub.s32 4, %v2143
          %v2145 = vrot.slane %v399, %v2144
          %v2146 = vlaneseq
          %v2147 = vshrl.u32 %v2146, 7
          %v2148 = vsub.s32 6, %v2147
          %v2149 = vrot.slane %v399, %v2148
          %v2150 = vlaneseq
          %v2151 = vshrl.u32 %v2150, 7
          %v2152 = vsub.s32 0, %v2151
          %v2153 = vrot.slane %v400, %v2152
          %v2154 = vlaneseq
          %v2155 = vshrl.u32 %v2154, 7
          %v2156 = vsub.s32 2, %v2155
          %v2157 = vrot.slane %v400, %v2156
          %v2158 = vlaneseq
          %v2159 = vshrl.u32 %v2158, 7
          %v2160 = vsub.s32 4, %v2159
          %v2161 = vrot.slane %v400, %v2160
          %v2162 = vlaneseq
          %v2163 = vshrl.u32 %v2162, 7
          %v2164 = vsub.s32 6, %v2163
          %v2165 = vrot.slane %v400, %v2164
          %v2166 = vlaneseq
          %v2167 = vshrl.u32 %v2166, 7
          %v2168 = vsub.s32 0, %v2167
          %v2169 = vrot.slane %v2137, %v2168
          %v2170 = vlaneseq
          %v2171 = vshrl.u32 %v2170, 7
          %v2172 = vsub.s32 0, %v2171
          %v2173 = vrot.slane %v2141, %v2172
          %v2174 = vlaneseq
          %v2175 = vshrl.u32 %v2174, 7
          %v2176 = vsub.s32 0, %v2175
          %v2177 = vrot.slane %v2145, %v2176
          %v2178 = vlaneseq
          %v2179 = vshrl.u32 %v2178, 7
          %v2180 = vsub.s32 0, %v2179
          %v2181 = vrot.slane %v2149, %v2180
          %v2182 = vlaneseq
          %v2183 = vshrl.u32 %v2182, 7
          %v2184 = vsub.s32 0, %v2183
          %v2185 = vrot.slane %v2153, %v2184
          %v2186 = vlaneseq
          %v2187 = vshrl.u32 %v2186, 7
          %v2188 = vsub.s32 0, %v2187
          %v2189 = vrot.slane %v2157, %v2188
          %v2190 = vlaneseq
          %v2191 = vshrl.u32 %v2190, 7
          %v2192 = vsub.s32 0, %v2191
          %v2193 = vrot.slane %v2161, %v2192
          %v2194 = vlaneseq
          %v2195 = vshrl.u32 %v2194, 7
          %v2196 = vsub.s32 0, %v2195
          %v2197 = vrot.slane %v2165, %v2196
          %vm2198 = vcmp.eq.s32.totalorder %v2169, %v458
          %vm2199 = vcmp.eq.s32.totalorder %v2173, %v458
          %vm2200 = vcmp.eq.s32.totalorder %v2177, %v458
          %vm2201 = vcmp.eq.s32.totalorder %v2181, %v458
          %vm2202 = vcmp.eq.s32.totalorder %v2185, %v458
          %vm2203 = vcmp.eq.s32.totalorder %v2189, %v458
          %vm2204 = vcmp.eq.s32.totalorder %v2193, %v458
          %vm2205 = vcmp.eq.s32.totalorder %v2197, %v458
          %vm2206 = vcmp.eq.s32.totalorder %v2169, %v459
          %vm2207 = vcmp.eq.s32.totalorder %v2173, %v459
          %vm2208 = vcmp.eq.s32.totalorder %v2177, %v459
          %vm2209 = vcmp.eq.s32.totalorder %v2181, %v459
          %vm2210 = vcmp.eq.s32.totalorder %v2185, %v459
          %vm2211 = vcmp.eq.s32.totalorder %v2189, %v459
          %vm2212 = vcmp.eq.s32.totalorder %v2193, %v459
          %vm2213 = vcmp.eq.s32.totalorder %v2197, %v459
          %v2216 = vlaneseq
          %v2217 = vshrl.u32 %v2216, 7
          %v2218 = vsub.s32 0, %v2217
          %v2219 = vrot.slane %v401, %v2218
          %v2220 = vlaneseq
          %v2221 = vshrl.u32 %v2220, 7
          %v2222 = vsub.s32 2, %v2221
          %v2223 = vrot.slane %v401, %v2222
          %v2224 = vlaneseq
          %v2225 = vshrl.u32 %v2224, 7
          %v2226 = vsub.s32 4, %v2225
          %v2227 = vrot.slane %v401, %v2226
          %v2228 = vlaneseq
          %v2229 = vshrl.u32 %v2228, 7
          %v2230 = vsub.s32 6, %v2229
          %v2231 = vrot.slane %v401, %v2230
          %v2232 = vlaneseq
          %v2233 = vshrl.u32 %v2232, 7
          %v2234 = vsub.s32 0, %v2233
          %v2235 = vrot.slane %v402, %v2234
          %v2236 = vlaneseq
          %v2237 = vshrl.u32 %v2236, 7
          %v2238 = vsub.s32 2, %v2237
          %v2239 = vrot.slane %v402, %v2238
          %v2240 = vlaneseq
          %v2241 = vshrl.u32 %v2240, 7
          %v2242 = vsub.s32 4, %v2241
          %v2243 = vrot.slane %v402, %v2242
          %v2244 = vlaneseq
          %v2245 = vshrl.u32 %v2244, 7
          %v2246 = vsub.s32 6, %v2245
          %v2247 = vrot.slane %v402, %v2246
          %v2256 = vlaneseq
          %v2257 = vshrl.u32 %v2256, 7
          %v2258 = vsub.s32 0, %v2257
          %v2259 = vrot.slane %v2219, %v2258
          %v2260 = vlaneseq
          %v2261 = vshrl.u32 %v2260, 7
          %v2262 = vsub.s32 0, %v2261
          %v2263 = vrot.slane %v2223, %v2262
          %v2264 = vlaneseq
          %v2265 = vshrl.u32 %v2264, 7
          %v2266 = vsub.s32 0, %v2265
          %v2267 = vrot.slane %v2227, %v2266
          %v2268 = vlaneseq
          %v2269 = vshrl.u32 %v2268, 7
          %v2270 = vsub.s32 0, %v2269
          %v2271 = vrot.slane %v2231, %v2270
          %v2272 = vlaneseq
          %v2273 = vshrl.u32 %v2272, 7
          %v2274 = vsub.s32 0, %v2273
          %v2275 = vrot.slane %v2235, %v2274
          %v2276 = vlaneseq
          %v2277 = vshrl.u32 %v2276, 7
          %v2278 = vsub.s32 0, %v2277
          %v2279 = vrot.slane %v2239, %v2278
          %v2280 = vlaneseq
          %v2281 = vshrl.u32 %v2280, 7
          %v2282 = vsub.s32 0, %v2281
          %v2283 = vrot.slane %v2243, %v2282
          %v2284 = vlaneseq
          %v2285 = vshrl.u32 %v2284, 7
          %v2286 = vsub.s32 0, %v2285
          %v2287 = vrot.slane %v2247, %v2286
          %v2288 = vsel %vm2198, %v2259, 0.0
          %v2289 = vsel %vm2199, %v2263, 0.0
          %v2290 = vsel %vm2200, %v2267, 0.0
          %v2291 = vsel %vm2201, %v2271, 0.0
          %v2292 = vsel %vm2202, %v2275, 0.0
          %v2293 = vsel %vm2203, %v2279, 0.0
          %v2294 = vsel %vm2204, %v2283, 0.0
          %v2295 = vsel %vm2205, %v2287, 0.0
          %v2296 = vsel %vm2206, %v2259, 0.0
          %v2297 = vsel %vm2207, %v2263, 0.0
          %v2298 = vsel %vm2208, %v2267, 0.0
          %v2299 = vsel %vm2209, %v2271, 0.0
          %v2300 = vsel %vm2210, %v2275, 0.0
          %v2301 = vsel %vm2211, %v2279, 0.0
          %v2302 = vsel %vm2212, %v2283, 0.0
          %v2303 = vsel %vm2213, %v2287, 0.0
          %v2304 = vadd.f32 %v2118, %v2288
          %v2305 = vadd.f32 %v2119, %v2289
          %v2306 = vadd.f32 %v2120, %v2290
          %v2307 = vadd.f32 %v2121, %v2291
          %v2308 = vadd.f32 %v2122, %v2292
          %v2309 = vadd.f32 %v2123, %v2293
          %v2310 = vadd.f32 %v2124, %v2294
          %v2311 = vadd.f32 %v2125, %v2295
          %v2312 = vadd.f32 %v2126, %v2296
          %v2313 = vadd.f32 %v2127, %v2297
          %v2314 = vadd.f32 %v2128, %v2298
          %v2315 = vadd.f32 %v2129, %v2299
          %v2316 = vadd.f32 %v2130, %v2300
          %v2317 = vadd.f32 %v2131, %v2301
          %v2318 = vadd.f32 %v2132, %v2302
          %v2319 = vadd.f32 %v2133, %v2303
          %v2320 = vlaneseq
          %v2321 = vshrl.u32 %v2320, 7
          %v2322 = vsub.s32 0, %v2321
          %v2323 = vrot.slane %v405, %v2322
          %v2324 = vlaneseq
          %v2325 = vshrl.u32 %v2324, 7
          %v2326 = vsub.s32 2, %v2325
          %v2327 = vrot.slane %v405, %v2326
          %v2328 = vlaneseq
          %v2329 = vshrl.u32 %v2328, 7
          %v2330 = vsub.s32 4, %v2329
          %v2331 = vrot.slane %v405, %v2330
          %v2332 = vlaneseq
          %v2333 = vshrl.u32 %v2332, 7
          %v2334 = vsub.s32 6, %v2333
          %v2335 = vrot.slane %v405, %v2334
          %v2336 = vlaneseq
          %v2337 = vshrl.u32 %v2336, 7
          %v2338 = vsub.s32 0, %v2337
          %v2339 = vrot.slane %v406, %v2338
          %v2340 = vlaneseq
          %v2341 = vshrl.u32 %v2340, 7
          %v2342 = vsub.s32 2, %v2341
          %v2343 = vrot.slane %v406, %v2342
          %v2344 = vlaneseq
          %v2345 = vshrl.u32 %v2344, 7
          %v2346 = vsub.s32 4, %v2345
          %v2347 = vrot.slane %v406, %v2346
          %v2348 = vlaneseq
          %v2349 = vshrl.u32 %v2348, 7
          %v2350 = vsub.s32 6, %v2349
          %v2351 = vrot.slane %v406, %v2350
          %v2352 = vlaneseq
          %v2353 = vshrl.u32 %v2352, 7
          %v2354 = vsub.s32 0, %v2353
          %v2355 = vrot.slane %v2323, %v2354
          %v2356 = vlaneseq
          %v2357 = vshrl.u32 %v2356, 7
          %v2358 = vsub.s32 0, %v2357
          %v2359 = vrot.slane %v2327, %v2358
          %v2360 = vlaneseq
          %v2361 = vshrl.u32 %v2360, 7
          %v2362 = vsub.s32 0, %v2361
          %v2363 = vrot.slane %v2331, %v2362
          %v2364 = vlaneseq
          %v2365 = vshrl.u32 %v2364, 7
          %v2366 = vsub.s32 0, %v2365
          %v2367 = vrot.slane %v2335, %v2366
          %v2368 = vlaneseq
          %v2369 = vshrl.u32 %v2368, 7
          %v2370 = vsub.s32 0, %v2369
          %v2371 = vrot.slane %v2339, %v2370
          %v2372 = vlaneseq
          %v2373 = vshrl.u32 %v2372, 7
          %v2374 = vsub.s32 0, %v2373
          %v2375 = vrot.slane %v2343, %v2374
          %v2376 = vlaneseq
          %v2377 = vshrl.u32 %v2376, 7
          %v2378 = vsub.s32 0, %v2377
          %v2379 = vrot.slane %v2347, %v2378
          %v2380 = vlaneseq
          %v2381 = vshrl.u32 %v2380, 7
          %v2382 = vsub.s32 0, %v2381
          %v2383 = vrot.slane %v2351, %v2382
          %vm2384 = vcmp.eq.s32.totalorder %v2355, %v458
          %vm2385 = vcmp.eq.s32.totalorder %v2359, %v458
          %vm2386 = vcmp.eq.s32.totalorder %v2363, %v458
          %vm2387 = vcmp.eq.s32.totalorder %v2367, %v458
          %vm2388 = vcmp.eq.s32.totalorder %v2371, %v458
          %vm2389 = vcmp.eq.s32.totalorder %v2375, %v458
          %vm2390 = vcmp.eq.s32.totalorder %v2379, %v458
          %vm2391 = vcmp.eq.s32.totalorder %v2383, %v458
          %vm2392 = vcmp.eq.s32.totalorder %v2355, %v459
          %vm2393 = vcmp.eq.s32.totalorder %v2359, %v459
          %vm2394 = vcmp.eq.s32.totalorder %v2363, %v459
          %vm2395 = vcmp.eq.s32.totalorder %v2367, %v459
          %vm2396 = vcmp.eq.s32.totalorder %v2371, %v459
          %vm2397 = vcmp.eq.s32.totalorder %v2375, %v459
          %vm2398 = vcmp.eq.s32.totalorder %v2379, %v459
          %vm2399 = vcmp.eq.s32.totalorder %v2383, %v459
          %v2402 = vlaneseq
          %v2403 = vshrl.u32 %v2402, 7
          %v2404 = vsub.s32 0, %v2403
          %v2405 = vrot.slane %v407, %v2404
          %v2406 = vlaneseq
          %v2407 = vshrl.u32 %v2406, 7
          %v2408 = vsub.s32 2, %v2407
          %v2409 = vrot.slane %v407, %v2408
          %v2410 = vlaneseq
          %v2411 = vshrl.u32 %v2410, 7
          %v2412 = vsub.s32 4, %v2411
          %v2413 = vrot.slane %v407, %v2412
          %v2414 = vlaneseq
          %v2415 = vshrl.u32 %v2414, 7
          %v2416 = vsub.s32 6, %v2415
          %v2417 = vrot.slane %v407, %v2416
          %v2418 = vlaneseq
          %v2419 = vshrl.u32 %v2418, 7
          %v2420 = vsub.s32 0, %v2419
          %v2421 = vrot.slane %v408, %v2420
          %v2422 = vlaneseq
          %v2423 = vshrl.u32 %v2422, 7
          %v2424 = vsub.s32 2, %v2423
          %v2425 = vrot.slane %v408, %v2424
          %v2426 = vlaneseq
          %v2427 = vshrl.u32 %v2426, 7
          %v2428 = vsub.s32 4, %v2427
          %v2429 = vrot.slane %v408, %v2428
          %v2430 = vlaneseq
          %v2431 = vshrl.u32 %v2430, 7
          %v2432 = vsub.s32 6, %v2431
          %v2433 = vrot.slane %v408, %v2432
          %v2442 = vlaneseq
          %v2443 = vshrl.u32 %v2442, 7
          %v2444 = vsub.s32 0, %v2443
          %v2445 = vrot.slane %v2405, %v2444
          %v2446 = vlaneseq
          %v2447 = vshrl.u32 %v2446, 7
          %v2448 = vsub.s32 0, %v2447
          %v2449 = vrot.slane %v2409, %v2448
          %v2450 = vlaneseq
          %v2451 = vshrl.u32 %v2450, 7
          %v2452 = vsub.s32 0, %v2451
          %v2453 = vrot.slane %v2413, %v2452
          %v2454 = vlaneseq
          %v2455 = vshrl.u32 %v2454, 7
          %v2456 = vsub.s32 0, %v2455
          %v2457 = vrot.slane %v2417, %v2456
          %v2458 = vlaneseq
          %v2459 = vshrl.u32 %v2458, 7
          %v2460 = vsub.s32 0, %v2459
          %v2461 = vrot.slane %v2421, %v2460
          %v2462 = vlaneseq
          %v2463 = vshrl.u32 %v2462, 7
          %v2464 = vsub.s32 0, %v2463
          %v2465 = vrot.slane %v2425, %v2464
          %v2466 = vlaneseq
          %v2467 = vshrl.u32 %v2466, 7
          %v2468 = vsub.s32 0, %v2467
          %v2469 = vrot.slane %v2429, %v2468
          %v2470 = vlaneseq
          %v2471 = vshrl.u32 %v2470, 7
          %v2472 = vsub.s32 0, %v2471
          %v2473 = vrot.slane %v2433, %v2472
          %v2474 = vsel %vm2384, %v2445, 0.0
          %v2475 = vsel %vm2385, %v2449, 0.0
          %v2476 = vsel %vm2386, %v2453, 0.0
          %v2477 = vsel %vm2387, %v2457, 0.0
          %v2478 = vsel %vm2388, %v2461, 0.0
          %v2479 = vsel %vm2389, %v2465, 0.0
          %v2480 = vsel %vm2390, %v2469, 0.0
          %v2481 = vsel %vm2391, %v2473, 0.0
          %v2482 = vsel %vm2392, %v2445, 0.0
          %v2483 = vsel %vm2393, %v2449, 0.0
          %v2484 = vsel %vm2394, %v2453, 0.0
          %v2485 = vsel %vm2395, %v2457, 0.0
          %v2486 = vsel %vm2396, %v2461, 0.0
          %v2487 = vsel %vm2397, %v2465, 0.0
          %v2488 = vsel %vm2398, %v2469, 0.0
          %v2489 = vsel %vm2399, %v2473, 0.0
          %v2490 = vadd.f32 %v2304, %v2474
          %v2491 = vadd.f32 %v2305, %v2475
          %v2492 = vadd.f32 %v2306, %v2476
          %v2493 = vadd.f32 %v2307, %v2477
          %v2494 = vadd.f32 %v2308, %v2478
          %v2495 = vadd.f32 %v2309, %v2479
          %v2496 = vadd.f32 %v2310, %v2480
          %v2497 = vadd.f32 %v2311, %v2481
          %v2498 = vadd.f32 %v2312, %v2482
          %v2499 = vadd.f32 %v2313, %v2483
          %v2500 = vadd.f32 %v2314, %v2484
          %v2501 = vadd.f32 %v2315, %v2485
          %v2502 = vadd.f32 %v2316, %v2486
          %v2503 = vadd.f32 %v2317, %v2487
          %v2504 = vadd.f32 %v2318, %v2488
          %v2505 = vadd.f32 %v2319, %v2489
          %v2506 = vlaneseq
          %v2507 = vshrl.u32 %v2506, 7
          %v2508 = vsub.s32 0, %v2507
          %v2509 = vrot.slane %v411, %v2508
          %v2510 = vlaneseq
          %v2511 = vshrl.u32 %v2510, 7
          %v2512 = vsub.s32 2, %v2511
          %v2513 = vrot.slane %v411, %v2512
          %v2514 = vlaneseq
          %v2515 = vshrl.u32 %v2514, 7
          %v2516 = vsub.s32 4, %v2515
          %v2517 = vrot.slane %v411, %v2516
          %v2518 = vlaneseq
          %v2519 = vshrl.u32 %v2518, 7
          %v2520 = vsub.s32 6, %v2519
          %v2521 = vrot.slane %v411, %v2520
          %v2522 = vlaneseq
          %v2523 = vshrl.u32 %v2522, 7
          %v2524 = vsub.s32 0, %v2523
          %v2525 = vrot.slane %v412, %v2524
          %v2526 = vlaneseq
          %v2527 = vshrl.u32 %v2526, 7
          %v2528 = vsub.s32 2, %v2527
          %v2529 = vrot.slane %v412, %v2528
          %v2530 = vlaneseq
          %v2531 = vshrl.u32 %v2530, 7
          %v2532 = vsub.s32 4, %v2531
          %v2533 = vrot.slane %v412, %v2532
          %v2534 = vlaneseq
          %v2535 = vshrl.u32 %v2534, 7
          %v2536 = vsub.s32 6, %v2535
          %v2537 = vrot.slane %v412, %v2536
          %v2538 = vlaneseq
          %v2539 = vshrl.u32 %v2538, 7
          %v2540 = vsub.s32 0, %v2539
          %v2541 = vrot.slane %v2509, %v2540
          %v2542 = vlaneseq
          %v2543 = vshrl.u32 %v2542, 7
          %v2544 = vsub.s32 0, %v2543
          %v2545 = vrot.slane %v2513, %v2544
          %v2546 = vlaneseq
          %v2547 = vshrl.u32 %v2546, 7
          %v2548 = vsub.s32 0, %v2547
          %v2549 = vrot.slane %v2517, %v2548
          %v2550 = vlaneseq
          %v2551 = vshrl.u32 %v2550, 7
          %v2552 = vsub.s32 0, %v2551
          %v2553 = vrot.slane %v2521, %v2552
          %v2554 = vlaneseq
          %v2555 = vshrl.u32 %v2554, 7
          %v2556 = vsub.s32 0, %v2555
          %v2557 = vrot.slane %v2525, %v2556
          %v2558 = vlaneseq
          %v2559 = vshrl.u32 %v2558, 7
          %v2560 = vsub.s32 0, %v2559
          %v2561 = vrot.slane %v2529, %v2560
          %v2562 = vlaneseq
          %v2563 = vshrl.u32 %v2562, 7
          %v2564 = vsub.s32 0, %v2563
          %v2565 = vrot.slane %v2533, %v2564
          %v2566 = vlaneseq
          %v2567 = vshrl.u32 %v2566, 7
          %v2568 = vsub.s32 0, %v2567
          %v2569 = vrot.slane %v2537, %v2568
          %vm2570 = vcmp.eq.s32.totalorder %v2541, %v458
          %vm2571 = vcmp.eq.s32.totalorder %v2545, %v458
          %vm2572 = vcmp.eq.s32.totalorder %v2549, %v458
          %vm2573 = vcmp.eq.s32.totalorder %v2553, %v458
          %vm2574 = vcmp.eq.s32.totalorder %v2557, %v458
          %vm2575 = vcmp.eq.s32.totalorder %v2561, %v458
          %vm2576 = vcmp.eq.s32.totalorder %v2565, %v458
          %vm2577 = vcmp.eq.s32.totalorder %v2569, %v458
          %vm2578 = vcmp.eq.s32.totalorder %v2541, %v459
          %vm2579 = vcmp.eq.s32.totalorder %v2545, %v459
          %vm2580 = vcmp.eq.s32.totalorder %v2549, %v459
          %vm2581 = vcmp.eq.s32.totalorder %v2553, %v459
          %vm2582 = vcmp.eq.s32.totalorder %v2557, %v459
          %vm2583 = vcmp.eq.s32.totalorder %v2561, %v459
          %vm2584 = vcmp.eq.s32.totalorder %v2565, %v459
          %vm2585 = vcmp.eq.s32.totalorder %v2569, %v459
          %v2588 = vlaneseq
          %v2589 = vshrl.u32 %v2588, 7
          %v2590 = vsub.s32 0, %v2589
          %v2591 = vrot.slane %v413, %v2590
          %v2592 = vlaneseq
          %v2593 = vshrl.u32 %v2592, 7
          %v2594 = vsub.s32 2, %v2593
          %v2595 = vrot.slane %v413, %v2594
          %v2596 = vlaneseq
          %v2597 = vshrl.u32 %v2596, 7
          %v2598 = vsub.s32 4, %v2597
          %v2599 = vrot.slane %v413, %v2598
          %v2600 = vlaneseq
          %v2601 = vshrl.u32 %v2600, 7
          %v2602 = vsub.s32 6, %v2601
          %v2603 = vrot.slane %v413, %v2602
          %v2604 = vlaneseq
          %v2605 = vshrl.u32 %v2604, 7
          %v2606 = vsub.s32 0, %v2605
          %v2607 = vrot.slane %v414, %v2606
          %v2608 = vlaneseq
          %v2609 = vshrl.u32 %v2608, 7
          %v2610 = vsub.s32 2, %v2609
          %v2611 = vrot.slane %v414, %v2610
          %v2612 = vlaneseq
          %v2613 = vshrl.u32 %v2612, 7
          %v2614 = vsub.s32 4, %v2613
          %v2615 = vrot.slane %v414, %v2614
          %v2616 = vlaneseq
          %v2617 = vshrl.u32 %v2616, 7
          %v2618 = vsub.s32 6, %v2617
          %v2619 = vrot.slane %v414, %v2618
          %v2628 = vlaneseq
          %v2629 = vshrl.u32 %v2628, 7
          %v2630 = vsub.s32 0, %v2629
          %v2631 = vrot.slane %v2591, %v2630
          %v2632 = vlaneseq
          %v2633 = vshrl.u32 %v2632, 7
          %v2634 = vsub.s32 0, %v2633
          %v2635 = vrot.slane %v2595, %v2634
          %v2636 = vlaneseq
          %v2637 = vshrl.u32 %v2636, 7
          %v2638 = vsub.s32 0, %v2637
          %v2639 = vrot.slane %v2599, %v2638
          %v2640 = vlaneseq
          %v2641 = vshrl.u32 %v2640, 7
          %v2642 = vsub.s32 0, %v2641
          %v2643 = vrot.slane %v2603, %v2642
          %v2644 = vlaneseq
          %v2645 = vshrl.u32 %v2644, 7
          %v2646 = vsub.s32 0, %v2645
          %v2647 = vrot.slane %v2607, %v2646
          %v2648 = vlaneseq
          %v2649 = vshrl.u32 %v2648, 7
          %v2650 = vsub.s32 0, %v2649
          %v2651 = vrot.slane %v2611, %v2650
          %v2652 = vlaneseq
          %v2653 = vshrl.u32 %v2652, 7
          %v2654 = vsub.s32 0, %v2653
          %v2655 = vrot.slane %v2615, %v2654
          %v2656 = vlaneseq
          %v2657 = vshrl.u32 %v2656, 7
          %v2658 = vsub.s32 0, %v2657
          %v2659 = vrot.slane %v2619, %v2658
          %v2660 = vsel %vm2570, %v2631, 0.0
          %v2661 = vsel %vm2571, %v2635, 0.0
          %v2662 = vsel %vm2572, %v2639, 0.0
          %v2663 = vsel %vm2573, %v2643, 0.0
          %v2664 = vsel %vm2574, %v2647, 0.0
          %v2665 = vsel %vm2575, %v2651, 0.0
          %v2666 = vsel %vm2576, %v2655, 0.0
          %v2667 = vsel %vm2577, %v2659, 0.0
          %v2668 = vsel %vm2578, %v2631, 0.0
          %v2669 = vsel %vm2579, %v2635, 0.0
          %v2670 = vsel %vm2580, %v2639, 0.0
          %v2671 = vsel %vm2581, %v2643, 0.0
          %v2672 = vsel %vm2582, %v2647, 0.0
          %v2673 = vsel %vm2583, %v2651, 0.0
          %v2674 = vsel %vm2584, %v2655, 0.0
          %v2675 = vsel %vm2585, %v2659, 0.0
          %v2676 = vadd.f32 %v2490, %v2660
          %v2677 = vadd.f32 %v2491, %v2661
          %v2678 = vadd.f32 %v2492, %v2662
          %v2679 = vadd.f32 %v2493, %v2663
          %v2680 = vadd.f32 %v2494, %v2664
          %v2681 = vadd.f32 %v2495, %v2665
          %v2682 = vadd.f32 %v2496, %v2666
          %v2683 = vadd.f32 %v2497, %v2667
          %v2684 = vadd.f32 %v2498, %v2668
          %v2685 = vadd.f32 %v2499, %v2669
          %v2686 = vadd.f32 %v2500, %v2670
          %v2687 = vadd.f32 %v2501, %v2671
          %v2688 = vadd.f32 %v2502, %v2672
          %v2689 = vadd.f32 %v2503, %v2673
          %v2690 = vadd.f32 %v2504, %v2674
          %v2691 = vadd.f32 %v2505, %v2675
          %v2692 = vlaneseq
          %v2693 = vshrl.u32 %v2692, 7
          %v2694 = vsub.s32 0, %v2693
          %v2695 = vrot.slane %v417, %v2694
          %v2696 = vlaneseq
          %v2697 = vshrl.u32 %v2696, 7
          %v2698 = vsub.s32 2, %v2697
          %v2699 = vrot.slane %v417, %v2698
          %v2700 = vlaneseq
          %v2701 = vshrl.u32 %v2700, 7
          %v2702 = vsub.s32 4, %v2701
          %v2703 = vrot.slane %v417, %v2702
          %v2704 = vlaneseq
          %v2705 = vshrl.u32 %v2704, 7
          %v2706 = vsub.s32 6, %v2705
          %v2707 = vrot.slane %v417, %v2706
          %v2708 = vlaneseq
          %v2709 = vshrl.u32 %v2708, 7
          %v2710 = vsub.s32 0, %v2709
          %v2711 = vrot.slane %v418, %v2710
          %v2712 = vlaneseq
          %v2713 = vshrl.u32 %v2712, 7
          %v2714 = vsub.s32 2, %v2713
          %v2715 = vrot.slane %v418, %v2714
          %v2716 = vlaneseq
          %v2717 = vshrl.u32 %v2716, 7
          %v2718 = vsub.s32 4, %v2717
          %v2719 = vrot.slane %v418, %v2718
          %v2720 = vlaneseq
          %v2721 = vshrl.u32 %v2720, 7
          %v2722 = vsub.s32 6, %v2721
          %v2723 = vrot.slane %v418, %v2722
          %v2724 = vlaneseq
          %v2725 = vshrl.u32 %v2724, 7
          %v2726 = vsub.s32 0, %v2725
          %v2727 = vrot.slane %v2695, %v2726
          %v2728 = vlaneseq
          %v2729 = vshrl.u32 %v2728, 7
          %v2730 = vsub.s32 0, %v2729
          %v2731 = vrot.slane %v2699, %v2730
          %v2732 = vlaneseq
          %v2733 = vshrl.u32 %v2732, 7
          %v2734 = vsub.s32 0, %v2733
          %v2735 = vrot.slane %v2703, %v2734
          %v2736 = vlaneseq
          %v2737 = vshrl.u32 %v2736, 7
          %v2738 = vsub.s32 0, %v2737
          %v2739 = vrot.slane %v2707, %v2738
          %v2740 = vlaneseq
          %v2741 = vshrl.u32 %v2740, 7
          %v2742 = vsub.s32 0, %v2741
          %v2743 = vrot.slane %v2711, %v2742
          %v2744 = vlaneseq
          %v2745 = vshrl.u32 %v2744, 7
          %v2746 = vsub.s32 0, %v2745
          %v2747 = vrot.slane %v2715, %v2746
          %v2748 = vlaneseq
          %v2749 = vshrl.u32 %v2748, 7
          %v2750 = vsub.s32 0, %v2749
          %v2751 = vrot.slane %v2719, %v2750
          %v2752 = vlaneseq
          %v2753 = vshrl.u32 %v2752, 7
          %v2754 = vsub.s32 0, %v2753
          %v2755 = vrot.slane %v2723, %v2754
          %vm2756 = vcmp.eq.s32.totalorder %v2727, %v458
          %vm2757 = vcmp.eq.s32.totalorder %v2731, %v458
          %vm2758 = vcmp.eq.s32.totalorder %v2735, %v458
          %vm2759 = vcmp.eq.s32.totalorder %v2739, %v458
          %vm2760 = vcmp.eq.s32.totalorder %v2743, %v458
          %vm2761 = vcmp.eq.s32.totalorder %v2747, %v458
          %vm2762 = vcmp.eq.s32.totalorder %v2751, %v458
          %vm2763 = vcmp.eq.s32.totalorder %v2755, %v458
          %vm2764 = vcmp.eq.s32.totalorder %v2727, %v459
          %vm2765 = vcmp.eq.s32.totalorder %v2731, %v459
          %vm2766 = vcmp.eq.s32.totalorder %v2735, %v459
          %vm2767 = vcmp.eq.s32.totalorder %v2739, %v459
          %vm2768 = vcmp.eq.s32.totalorder %v2743, %v459
          %vm2769 = vcmp.eq.s32.totalorder %v2747, %v459
          %vm2770 = vcmp.eq.s32.totalorder %v2751, %v459
          %vm2771 = vcmp.eq.s32.totalorder %v2755, %v459
          %v2774 = vlaneseq
          %v2775 = vshrl.u32 %v2774, 7
          %v2776 = vsub.s32 0, %v2775
          %v2777 = vrot.slane %v419, %v2776
          %v2778 = vlaneseq
          %v2779 = vshrl.u32 %v2778, 7
          %v2780 = vsub.s32 2, %v2779
          %v2781 = vrot.slane %v419, %v2780
          %v2782 = vlaneseq
          %v2783 = vshrl.u32 %v2782, 7
          %v2784 = vsub.s32 4, %v2783
          %v2785 = vrot.slane %v419, %v2784
          %v2786 = vlaneseq
          %v2787 = vshrl.u32 %v2786, 7
          %v2788 = vsub.s32 6, %v2787
          %v2789 = vrot.slane %v419, %v2788
          %v2790 = vlaneseq
          %v2791 = vshrl.u32 %v2790, 7
          %v2792 = vsub.s32 0, %v2791
          %v2793 = vrot.slane %v420, %v2792
          %v2794 = vlaneseq
          %v2795 = vshrl.u32 %v2794, 7
          %v2796 = vsub.s32 2, %v2795
          %v2797 = vrot.slane %v420, %v2796
          %v2798 = vlaneseq
          %v2799 = vshrl.u32 %v2798, 7
          %v2800 = vsub.s32 4, %v2799
          %v2801 = vrot.slane %v420, %v2800
          %v2802 = vlaneseq
          %v2803 = vshrl.u32 %v2802, 7
          %v2804 = vsub.s32 6, %v2803
          %v2805 = vrot.slane %v420, %v2804
          %v2814 = vlaneseq
          %v2815 = vshrl.u32 %v2814, 7
          %v2816 = vsub.s32 0, %v2815
          %v2817 = vrot.slane %v2777, %v2816
          %v2818 = vlaneseq
          %v2819 = vshrl.u32 %v2818, 7
          %v2820 = vsub.s32 0, %v2819
          %v2821 = vrot.slane %v2781, %v2820
          %v2822 = vlaneseq
          %v2823 = vshrl.u32 %v2822, 7
          %v2824 = vsub.s32 0, %v2823
          %v2825 = vrot.slane %v2785, %v2824
          %v2826 = vlaneseq
          %v2827 = vshrl.u32 %v2826, 7
          %v2828 = vsub.s32 0, %v2827
          %v2829 = vrot.slane %v2789, %v2828
          %v2830 = vlaneseq
          %v2831 = vshrl.u32 %v2830, 7
          %v2832 = vsub.s32 0, %v2831
          %v2833 = vrot.slane %v2793, %v2832
          %v2834 = vlaneseq
          %v2835 = vshrl.u32 %v2834, 7
          %v2836 = vsub.s32 0, %v2835
          %v2837 = vrot.slane %v2797, %v2836
          %v2838 = vlaneseq
          %v2839 = vshrl.u32 %v2838, 7
          %v2840 = vsub.s32 0, %v2839
          %v2841 = vrot.slane %v2801, %v2840
          %v2842 = vlaneseq
          %v2843 = vshrl.u32 %v2842, 7
          %v2844 = vsub.s32 0, %v2843
          %v2845 = vrot.slane %v2805, %v2844
          %v2846 = vsel %vm2756, %v2817, 0.0
          %v2847 = vsel %vm2757, %v2821, 0.0
          %v2848 = vsel %vm2758, %v2825, 0.0
          %v2849 = vsel %vm2759, %v2829, 0.0
          %v2850 = vsel %vm2760, %v2833, 0.0
          %v2851 = vsel %vm2761, %v2837, 0.0
          %v2852 = vsel %vm2762, %v2841, 0.0
          %v2853 = vsel %vm2763, %v2845, 0.0
          %v2854 = vsel %vm2764, %v2817, 0.0
          %v2855 = vsel %vm2765, %v2821, 0.0
          %v2856 = vsel %vm2766, %v2825, 0.0
          %v2857 = vsel %vm2767, %v2829, 0.0
          %v2858 = vsel %vm2768, %v2833, 0.0
          %v2859 = vsel %vm2769, %v2837, 0.0
          %v2860 = vsel %vm2770, %v2841, 0.0
          %v2861 = vsel %vm2771, %v2845, 0.0
          %v2862 = vadd.f32 %v2676, %v2846
          %v2863 = vadd.f32 %v2677, %v2847
          %v2864 = vadd.f32 %v2678, %v2848
          %v2865 = vadd.f32 %v2679, %v2849
          %v2866 = vadd.f32 %v2680, %v2850
          %v2867 = vadd.f32 %v2681, %v2851
          %v2868 = vadd.f32 %v2682, %v2852
          %v2869 = vadd.f32 %v2683, %v2853
          %v2870 = vadd.f32 %v2684, %v2854
          %v2871 = vadd.f32 %v2685, %v2855
          %v2872 = vadd.f32 %v2686, %v2856
          %v2873 = vadd.f32 %v2687, %v2857
          %v2874 = vadd.f32 %v2688, %v2858
          %v2875 = vadd.f32 %v2689, %v2859
          %v2876 = vadd.f32 %v2690, %v2860
          %v2877 = vadd.f32 %v2691, %v2861
          %v2878 = vlaneseq
          %v2879 = vshrl.u32 %v2878, 7
          %v2880 = vsub.s32 0, %v2879
          %v2881 = vrot.slane %v423, %v2880
          %v2882 = vlaneseq
          %v2883 = vshrl.u32 %v2882, 7
          %v2884 = vsub.s32 2, %v2883
          %v2885 = vrot.slane %v423, %v2884
          %v2886 = vlaneseq
          %v2887 = vshrl.u32 %v2886, 7
          %v2888 = vsub.s32 4, %v2887
          %v2889 = vrot.slane %v423, %v2888
          %v2890 = vlaneseq
          %v2891 = vshrl.u32 %v2890, 7
          %v2892 = vsub.s32 6, %v2891
          %v2893 = vrot.slane %v423, %v2892
          %v2894 = vlaneseq
          %v2895 = vshrl.u32 %v2894, 7
          %v2896 = vsub.s32 0, %v2895
          %v2897 = vrot.slane %v424, %v2896
          %v2898 = vlaneseq
          %v2899 = vshrl.u32 %v2898, 7
          %v2900 = vsub.s32 2, %v2899
          %v2901 = vrot.slane %v424, %v2900
          %v2902 = vlaneseq
          %v2903 = vshrl.u32 %v2902, 7
          %v2904 = vsub.s32 4, %v2903
          %v2905 = vrot.slane %v424, %v2904
          %v2906 = vlaneseq
          %v2907 = vshrl.u32 %v2906, 7
          %v2908 = vsub.s32 6, %v2907
          %v2909 = vrot.slane %v424, %v2908
          %v2910 = vlaneseq
          %v2911 = vshrl.u32 %v2910, 7
          %v2912 = vsub.s32 0, %v2911
          %v2913 = vrot.slane %v2881, %v2912
          %v2914 = vlaneseq
          %v2915 = vshrl.u32 %v2914, 7
          %v2916 = vsub.s32 0, %v2915
          %v2917 = vrot.slane %v2885, %v2916
          %v2918 = vlaneseq
          %v2919 = vshrl.u32 %v2918, 7
          %v2920 = vsub.s32 0, %v2919
          %v2921 = vrot.slane %v2889, %v2920
          %v2922 = vlaneseq
          %v2923 = vshrl.u32 %v2922, 7
          %v2924 = vsub.s32 0, %v2923
          %v2925 = vrot.slane %v2893, %v2924
          %v2926 = vlaneseq
          %v2927 = vshrl.u32 %v2926, 7
          %v2928 = vsub.s32 0, %v2927
          %v2929 = vrot.slane %v2897, %v2928
          %v2930 = vlaneseq
          %v2931 = vshrl.u32 %v2930, 7
          %v2932 = vsub.s32 0, %v2931
          %v2933 = vrot.slane %v2901, %v2932
          %v2934 = vlaneseq
          %v2935 = vshrl.u32 %v2934, 7
          %v2936 = vsub.s32 0, %v2935
          %v2937 = vrot.slane %v2905, %v2936
          %v2938 = vlaneseq
          %v2939 = vshrl.u32 %v2938, 7
          %v2940 = vsub.s32 0, %v2939
          %v2941 = vrot.slane %v2909, %v2940
          %vm2942 = vcmp.eq.s32.totalorder %v2913, %v458
          %vm2943 = vcmp.eq.s32.totalorder %v2917, %v458
          %vm2944 = vcmp.eq.s32.totalorder %v2921, %v458
          %vm2945 = vcmp.eq.s32.totalorder %v2925, %v458
          %vm2946 = vcmp.eq.s32.totalorder %v2929, %v458
          %vm2947 = vcmp.eq.s32.totalorder %v2933, %v458
          %vm2948 = vcmp.eq.s32.totalorder %v2937, %v458
          %vm2949 = vcmp.eq.s32.totalorder %v2941, %v458
          %vm2950 = vcmp.eq.s32.totalorder %v2913, %v459
          %vm2951 = vcmp.eq.s32.totalorder %v2917, %v459
          %vm2952 = vcmp.eq.s32.totalorder %v2921, %v459
          %vm2953 = vcmp.eq.s32.totalorder %v2925, %v459
          %vm2954 = vcmp.eq.s32.totalorder %v2929, %v459
          %vm2955 = vcmp.eq.s32.totalorder %v2933, %v459
          %vm2956 = vcmp.eq.s32.totalorder %v2937, %v459
          %vm2957 = vcmp.eq.s32.totalorder %v2941, %v459
          %v2960 = vlaneseq
          %v2961 = vshrl.u32 %v2960, 7
          %v2962 = vsub.s32 0, %v2961
          %v2963 = vrot.slane %v425, %v2962
          %v2964 = vlaneseq
          %v2965 = vshrl.u32 %v2964, 7
          %v2966 = vsub.s32 2, %v2965
          %v2967 = vrot.slane %v425, %v2966
          %v2968 = vlaneseq
          %v2969 = vshrl.u32 %v2968, 7
          %v2970 = vsub.s32 4, %v2969
          %v2971 = vrot.slane %v425, %v2970
          %v2972 = vlaneseq
          %v2973 = vshrl.u32 %v2972, 7
          %v2974 = vsub.s32 6, %v2973
          %v2975 = vrot.slane %v425, %v2974
          %v2976 = vlaneseq
          %v2977 = vshrl.u32 %v2976, 7
          %v2978 = vsub.s32 0, %v2977
          %v2979 = vrot.slane %v426, %v2978
          %v2980 = vlaneseq
          %v2981 = vshrl.u32 %v2980, 7
          %v2982 = vsub.s32 2, %v2981
          %v2983 = vrot.slane %v426, %v2982
          %v2984 = vlaneseq
          %v2985 = vshrl.u32 %v2984, 7
          %v2986 = vsub.s32 4, %v2985
          %v2987 = vrot.slane %v426, %v2986
          %v2988 = vlaneseq
          %v2989 = vshrl.u32 %v2988, 7
          %v2990 = vsub.s32 6, %v2989
          %v2991 = vrot.slane %v426, %v2990
          %v3000 = vlaneseq
          %v3001 = vshrl.u32 %v3000, 7
          %v3002 = vsub.s32 0, %v3001
          %v3003 = vrot.slane %v2963, %v3002
          %v3004 = vlaneseq
          %v3005 = vshrl.u32 %v3004, 7
          %v3006 = vsub.s32 0, %v3005
          %v3007 = vrot.slane %v2967, %v3006
          %v3008 = vlaneseq
          %v3009 = vshrl.u32 %v3008, 7
          %v3010 = vsub.s32 0, %v3009
          %v3011 = vrot.slane %v2971, %v3010
          %v3012 = vlaneseq
          %v3013 = vshrl.u32 %v3012, 7
          %v3014 = vsub.s32 0, %v3013
          %v3015 = vrot.slane %v2975, %v3014
          %v3016 = vlaneseq
          %v3017 = vshrl.u32 %v3016, 7
          %v3018 = vsub.s32 0, %v3017
          %v3019 = vrot.slane %v2979, %v3018
          %v3020 = vlaneseq
          %v3021 = vshrl.u32 %v3020, 7
          %v3022 = vsub.s32 0, %v3021
          %v3023 = vrot.slane %v2983, %v3022
          %v3024 = vlaneseq
          %v3025 = vshrl.u32 %v3024, 7
          %v3026 = vsub.s32 0, %v3025
          %v3027 = vrot.slane %v2987, %v3026
          %v3028 = vlaneseq
          %v3029 = vshrl.u32 %v3028, 7
          %v3030 = vsub.s32 0, %v3029
          %v3031 = vrot.slane %v2991, %v3030
          %v3032 = vsel %vm2942, %v3003, 0.0
          %v3033 = vsel %vm2943, %v3007, 0.0
          %v3034 = vsel %vm2944, %v3011, 0.0
          %v3035 = vsel %vm2945, %v3015, 0.0
          %v3036 = vsel %vm2946, %v3019, 0.0
          %v3037 = vsel %vm2947, %v3023, 0.0
          %v3038 = vsel %vm2948, %v3027, 0.0
          %v3039 = vsel %vm2949, %v3031, 0.0
          %v3040 = vsel %vm2950, %v3003, 0.0
          %v3041 = vsel %vm2951, %v3007, 0.0
          %v3042 = vsel %vm2952, %v3011, 0.0
          %v3043 = vsel %vm2953, %v3015, 0.0
          %v3044 = vsel %vm2954, %v3019, 0.0
          %v3045 = vsel %vm2955, %v3023, 0.0
          %v3046 = vsel %vm2956, %v3027, 0.0
          %v3047 = vsel %vm2957, %v3031, 0.0
          %v3048 = vadd.f32 %v2862, %v3032
          %v3049 = vadd.f32 %v2863, %v3033
          %v3050 = vadd.f32 %v2864, %v3034
          %v3051 = vadd.f32 %v2865, %v3035
          %v3052 = vadd.f32 %v2866, %v3036
          %v3053 = vadd.f32 %v2867, %v3037
          %v3054 = vadd.f32 %v2868, %v3038
          %v3055 = vadd.f32 %v2869, %v3039
          %v3056 = vadd.f32 %v2870, %v3040
          %v3057 = vadd.f32 %v2871, %v3041
          %v3058 = vadd.f32 %v2872, %v3042
          %v3059 = vadd.f32 %v2873, %v3043
          %v3060 = vadd.f32 %v2874, %v3044
          %v3061 = vadd.f32 %v2875, %v3045
          %v3062 = vadd.f32 %v2876, %v3046
          %v3063 = vadd.f32 %v2877, %v3047
          %v3064 = vlaneseq
          %v3065 = vshrl.u32 %v3064, 7
          %v3066 = vsub.s32 0, %v3065
          %v3067 = vrot.slane %v429, %v3066
          %v3068 = vlaneseq
          %v3069 = vshrl.u32 %v3068, 7
          %v3070 = vsub.s32 2, %v3069
          %v3071 = vrot.slane %v429, %v3070
          %v3072 = vlaneseq
          %v3073 = vshrl.u32 %v3072, 7
          %v3074 = vsub.s32 4, %v3073
          %v3075 = vrot.slane %v429, %v3074
          %v3076 = vlaneseq
          %v3077 = vshrl.u32 %v3076, 7
          %v3078 = vsub.s32 6, %v3077
          %v3079 = vrot.slane %v429, %v3078
          %v3080 = vlaneseq
          %v3081 = vshrl.u32 %v3080, 7
          %v3082 = vsub.s32 0, %v3081
          %v3083 = vrot.slane %v430, %v3082
          %v3084 = vlaneseq
          %v3085 = vshrl.u32 %v3084, 7
          %v3086 = vsub.s32 2, %v3085
          %v3087 = vrot.slane %v430, %v3086
          %v3088 = vlaneseq
          %v3089 = vshrl.u32 %v3088, 7
          %v3090 = vsub.s32 4, %v3089
          %v3091 = vrot.slane %v430, %v3090
          %v3092 = vlaneseq
          %v3093 = vshrl.u32 %v3092, 7
          %v3094 = vsub.s32 6, %v3093
          %v3095 = vrot.slane %v430, %v3094
          %v3096 = vlaneseq
          %v3097 = vshrl.u32 %v3096, 7
          %v3098 = vsub.s32 0, %v3097
          %v3099 = vrot.slane %v3067, %v3098
          %v3100 = vlaneseq
          %v3101 = vshrl.u32 %v3100, 7
          %v3102 = vsub.s32 0, %v3101
          %v3103 = vrot.slane %v3071, %v3102
          %v3104 = vlaneseq
          %v3105 = vshrl.u32 %v3104, 7
          %v3106 = vsub.s32 0, %v3105
          %v3107 = vrot.slane %v3075, %v3106
          %v3108 = vlaneseq
          %v3109 = vshrl.u32 %v3108, 7
          %v3110 = vsub.s32 0, %v3109
          %v3111 = vrot.slane %v3079, %v3110
          %v3112 = vlaneseq
          %v3113 = vshrl.u32 %v3112, 7
          %v3114 = vsub.s32 0, %v3113
          %v3115 = vrot.slane %v3083, %v3114
          %v3116 = vlaneseq
          %v3117 = vshrl.u32 %v3116, 7
          %v3118 = vsub.s32 0, %v3117
          %v3119 = vrot.slane %v3087, %v3118
          %v3120 = vlaneseq
          %v3121 = vshrl.u32 %v3120, 7
          %v3122 = vsub.s32 0, %v3121
          %v3123 = vrot.slane %v3091, %v3122
          %v3124 = vlaneseq
          %v3125 = vshrl.u32 %v3124, 7
          %v3126 = vsub.s32 0, %v3125
          %v3127 = vrot.slane %v3095, %v3126
          %vm3128 = vcmp.eq.s32.totalorder %v3099, %v458
          %vm3129 = vcmp.eq.s32.totalorder %v3103, %v458
          %vm3130 = vcmp.eq.s32.totalorder %v3107, %v458
          %vm3131 = vcmp.eq.s32.totalorder %v3111, %v458
          %vm3132 = vcmp.eq.s32.totalorder %v3115, %v458
          %vm3133 = vcmp.eq.s32.totalorder %v3119, %v458
          %vm3134 = vcmp.eq.s32.totalorder %v3123, %v458
          %vm3135 = vcmp.eq.s32.totalorder %v3127, %v458
          %vm3136 = vcmp.eq.s32.totalorder %v3099, %v459
          %vm3137 = vcmp.eq.s32.totalorder %v3103, %v459
          %vm3138 = vcmp.eq.s32.totalorder %v3107, %v459
          %vm3139 = vcmp.eq.s32.totalorder %v3111, %v459
          %vm3140 = vcmp.eq.s32.totalorder %v3115, %v459
          %vm3141 = vcmp.eq.s32.totalorder %v3119, %v459
          %vm3142 = vcmp.eq.s32.totalorder %v3123, %v459
          %vm3143 = vcmp.eq.s32.totalorder %v3127, %v459
          %v3146 = vlaneseq
          %v3147 = vshrl.u32 %v3146, 7
          %v3148 = vsub.s32 0, %v3147
          %v3149 = vrot.slane %v431, %v3148
          %v3150 = vlaneseq
          %v3151 = vshrl.u32 %v3150, 7
          %v3152 = vsub.s32 2, %v3151
          %v3153 = vrot.slane %v431, %v3152
          %v3154 = vlaneseq
          %v3155 = vshrl.u32 %v3154, 7
          %v3156 = vsub.s32 4, %v3155
          %v3157 = vrot.slane %v431, %v3156
          %v3158 = vlaneseq
          %v3159 = vshrl.u32 %v3158, 7
          %v3160 = vsub.s32 6, %v3159
          %v3161 = vrot.slane %v431, %v3160
          %v3162 = vlaneseq
          %v3163 = vshrl.u32 %v3162, 7
          %v3164 = vsub.s32 0, %v3163
          %v3165 = vrot.slane %v432, %v3164
          %v3166 = vlaneseq
          %v3167 = vshrl.u32 %v3166, 7
          %v3168 = vsub.s32 2, %v3167
          %v3169 = vrot.slane %v432, %v3168
          %v3170 = vlaneseq
          %v3171 = vshrl.u32 %v3170, 7
          %v3172 = vsub.s32 4, %v3171
          %v3173 = vrot.slane %v432, %v3172
          %v3174 = vlaneseq
          %v3175 = vshrl.u32 %v3174, 7
          %v3176 = vsub.s32 6, %v3175
          %v3177 = vrot.slane %v432, %v3176
          %v3186 = vlaneseq
          %v3187 = vshrl.u32 %v3186, 7
          %v3188 = vsub.s32 0, %v3187
          %v3189 = vrot.slane %v3149, %v3188
          %v3190 = vlaneseq
          %v3191 = vshrl.u32 %v3190, 7
          %v3192 = vsub.s32 0, %v3191
          %v3193 = vrot.slane %v3153, %v3192
          %v3194 = vlaneseq
          %v3195 = vshrl.u32 %v3194, 7
          %v3196 = vsub.s32 0, %v3195
          %v3197 = vrot.slane %v3157, %v3196
          %v3198 = vlaneseq
          %v3199 = vshrl.u32 %v3198, 7
          %v3200 = vsub.s32 0, %v3199
          %v3201 = vrot.slane %v3161, %v3200
          %v3202 = vlaneseq
          %v3203 = vshrl.u32 %v3202, 7
          %v3204 = vsub.s32 0, %v3203
          %v3205 = vrot.slane %v3165, %v3204
          %v3206 = vlaneseq
          %v3207 = vshrl.u32 %v3206, 7
          %v3208 = vsub.s32 0, %v3207
          %v3209 = vrot.slane %v3169, %v3208
          %v3210 = vlaneseq
          %v3211 = vshrl.u32 %v3210, 7
          %v3212 = vsub.s32 0, %v3211
          %v3213 = vrot.slane %v3173, %v3212
          %v3214 = vlaneseq
          %v3215 = vshrl.u32 %v3214, 7
          %v3216 = vsub.s32 0, %v3215
          %v3217 = vrot.slane %v3177, %v3216
          %v3218 = vsel %vm3128, %v3189, 0.0
          %v3219 = vsel %vm3129, %v3193, 0.0
          %v3220 = vsel %vm3130, %v3197, 0.0
          %v3221 = vsel %vm3131, %v3201, 0.0
          %v3222 = vsel %vm3132, %v3205, 0.0
          %v3223 = vsel %vm3133, %v3209, 0.0
          %v3224 = vsel %vm3134, %v3213, 0.0
          %v3225 = vsel %vm3135, %v3217, 0.0
          %v3226 = vsel %vm3136, %v3189, 0.0
          %v3227 = vsel %vm3137, %v3193, 0.0
          %v3228 = vsel %vm3138, %v3197, 0.0
          %v3229 = vsel %vm3139, %v3201, 0.0
          %v3230 = vsel %vm3140, %v3205, 0.0
          %v3231 = vsel %vm3141, %v3209, 0.0
          %v3232 = vsel %vm3142, %v3213, 0.0
          %v3233 = vsel %vm3143, %v3217, 0.0
          %v3234 = vadd.f32 %v3048, %v3218
          %v3235 = vadd.f32 %v3049, %v3219
          %v3236 = vadd.f32 %v3050, %v3220
          %v3237 = vadd.f32 %v3051, %v3221
          %v3238 = vadd.f32 %v3052, %v3222
          %v3239 = vadd.f32 %v3053, %v3223
          %v3240 = vadd.f32 %v3054, %v3224
          %v3241 = vadd.f32 %v3055, %v3225
          %v3242 = vadd.f32 %v3056, %v3226
          %v3243 = vadd.f32 %v3057, %v3227
          %v3244 = vadd.f32 %v3058, %v3228
          %v3245 = vadd.f32 %v3059, %v3229
          %v3246 = vadd.f32 %v3060, %v3230
          %v3247 = vadd.f32 %v3061, %v3231
          %v3248 = vadd.f32 %v3062, %v3232
          %v3249 = vadd.f32 %v3063, %v3233
          %v3250 = vlaneseq
          %v3251 = vshrl.u32 %v3250, 7
          %v3252 = vsub.s32 0, %v3251
          %v3253 = vrot.slane %v435, %v3252
          %v3254 = vlaneseq
          %v3255 = vshrl.u32 %v3254, 7
          %v3256 = vsub.s32 2, %v3255
          %v3257 = vrot.slane %v435, %v3256
          %v3258 = vlaneseq
          %v3259 = vshrl.u32 %v3258, 7
          %v3260 = vsub.s32 4, %v3259
          %v3261 = vrot.slane %v435, %v3260
          %v3262 = vlaneseq
          %v3263 = vshrl.u32 %v3262, 7
          %v3264 = vsub.s32 6, %v3263
          %v3265 = vrot.slane %v435, %v3264
          %v3266 = vlaneseq
          %v3267 = vshrl.u32 %v3266, 7
          %v3268 = vsub.s32 0, %v3267
          %v3269 = vrot.slane %v436, %v3268
          %v3270 = vlaneseq
          %v3271 = vshrl.u32 %v3270, 7
          %v3272 = vsub.s32 2, %v3271
          %v3273 = vrot.slane %v436, %v3272
          %v3274 = vlaneseq
          %v3275 = vshrl.u32 %v3274, 7
          %v3276 = vsub.s32 4, %v3275
          %v3277 = vrot.slane %v436, %v3276
          %v3278 = vlaneseq
          %v3279 = vshrl.u32 %v3278, 7
          %v3280 = vsub.s32 6, %v3279
          %v3281 = vrot.slane %v436, %v3280
          %v3282 = vlaneseq
          %v3283 = vshrl.u32 %v3282, 7
          %v3284 = vsub.s32 0, %v3283
          %v3285 = vrot.slane %v3253, %v3284
          %v3286 = vlaneseq
          %v3287 = vshrl.u32 %v3286, 7
          %v3288 = vsub.s32 0, %v3287
          %v3289 = vrot.slane %v3257, %v3288
          %v3290 = vlaneseq
          %v3291 = vshrl.u32 %v3290, 7
          %v3292 = vsub.s32 0, %v3291
          %v3293 = vrot.slane %v3261, %v3292
          %v3294 = vlaneseq
          %v3295 = vshrl.u32 %v3294, 7
          %v3296 = vsub.s32 0, %v3295
          %v3297 = vrot.slane %v3265, %v3296
          %v3298 = vlaneseq
          %v3299 = vshrl.u32 %v3298, 7
          %v3300 = vsub.s32 0, %v3299
          %v3301 = vrot.slane %v3269, %v3300
          %v3302 = vlaneseq
          %v3303 = vshrl.u32 %v3302, 7
          %v3304 = vsub.s32 0, %v3303
          %v3305 = vrot.slane %v3273, %v3304
          %v3306 = vlaneseq
          %v3307 = vshrl.u32 %v3306, 7
          %v3308 = vsub.s32 0, %v3307
          %v3309 = vrot.slane %v3277, %v3308
          %v3310 = vlaneseq
          %v3311 = vshrl.u32 %v3310, 7
          %v3312 = vsub.s32 0, %v3311
          %v3313 = vrot.slane %v3281, %v3312
          %vm3314 = vcmp.eq.s32.totalorder %v3285, %v458
          %vm3315 = vcmp.eq.s32.totalorder %v3289, %v458
          %vm3316 = vcmp.eq.s32.totalorder %v3293, %v458
          %vm3317 = vcmp.eq.s32.totalorder %v3297, %v458
          %vm3318 = vcmp.eq.s32.totalorder %v3301, %v458
          %vm3319 = vcmp.eq.s32.totalorder %v3305, %v458
          %vm3320 = vcmp.eq.s32.totalorder %v3309, %v458
          %vm3321 = vcmp.eq.s32.totalorder %v3313, %v458
          %vm3322 = vcmp.eq.s32.totalorder %v3285, %v459
          %vm3323 = vcmp.eq.s32.totalorder %v3289, %v459
          %vm3324 = vcmp.eq.s32.totalorder %v3293, %v459
          %vm3325 = vcmp.eq.s32.totalorder %v3297, %v459
          %vm3326 = vcmp.eq.s32.totalorder %v3301, %v459
          %vm3327 = vcmp.eq.s32.totalorder %v3305, %v459
          %vm3328 = vcmp.eq.s32.totalorder %v3309, %v459
          %vm3329 = vcmp.eq.s32.totalorder %v3313, %v459
          %v3332 = vlaneseq
          %v3333 = vshrl.u32 %v3332, 7
          %v3334 = vsub.s32 0, %v3333
          %v3335 = vrot.slane %v437, %v3334
          %v3336 = vlaneseq
          %v3337 = vshrl.u32 %v3336, 7
          %v3338 = vsub.s32 2, %v3337
          %v3339 = vrot.slane %v437, %v3338
          %v3340 = vlaneseq
          %v3341 = vshrl.u32 %v3340, 7
          %v3342 = vsub.s32 4, %v3341
          %v3343 = vrot.slane %v437, %v3342
          %v3344 = vlaneseq
          %v3345 = vshrl.u32 %v3344, 7
          %v3346 = vsub.s32 6, %v3345
          %v3347 = vrot.slane %v437, %v3346
          %v3348 = vlaneseq
          %v3349 = vshrl.u32 %v3348, 7
          %v3350 = vsub.s32 0, %v3349
          %v3351 = vrot.slane %v438, %v3350
          %v3352 = vlaneseq
          %v3353 = vshrl.u32 %v3352, 7
          %v3354 = vsub.s32 2, %v3353
          %v3355 = vrot.slane %v438, %v3354
          %v3356 = vlaneseq
          %v3357 = vshrl.u32 %v3356, 7
          %v3358 = vsub.s32 4, %v3357
          %v3359 = vrot.slane %v438, %v3358
          %v3360 = vlaneseq
          %v3361 = vshrl.u32 %v3360, 7
          %v3362 = vsub.s32 6, %v3361
          %v3363 = vrot.slane %v438, %v3362
          %v3372 = vlaneseq
          %v3373 = vshrl.u32 %v3372, 7
          %v3374 = vsub.s32 0, %v3373
          %v3375 = vrot.slane %v3335, %v3374
          %v3376 = vlaneseq
          %v3377 = vshrl.u32 %v3376, 7
          %v3378 = vsub.s32 0, %v3377
          %v3379 = vrot.slane %v3339, %v3378
          %v3380 = vlaneseq
          %v3381 = vshrl.u32 %v3380, 7
          %v3382 = vsub.s32 0, %v3381
          %v3383 = vrot.slane %v3343, %v3382
          %v3384 = vlaneseq
          %v3385 = vshrl.u32 %v3384, 7
          %v3386 = vsub.s32 0, %v3385
          %v3387 = vrot.slane %v3347, %v3386
          %v3388 = vlaneseq
          %v3389 = vshrl.u32 %v3388, 7
          %v3390 = vsub.s32 0, %v3389
          %v3391 = vrot.slane %v3351, %v3390
          %v3392 = vlaneseq
          %v3393 = vshrl.u32 %v3392, 7
          %v3394 = vsub.s32 0, %v3393
          %v3395 = vrot.slane %v3355, %v3394
          %v3396 = vlaneseq
          %v3397 = vshrl.u32 %v3396, 7
          %v3398 = vsub.s32 0, %v3397
          %v3399 = vrot.slane %v3359, %v3398
          %v3400 = vlaneseq
          %v3401 = vshrl.u32 %v3400, 7
          %v3402 = vsub.s32 0, %v3401
          %v3403 = vrot.slane %v3363, %v3402
          %v3404 = vsel %vm3314, %v3375, 0.0
          %v3405 = vsel %vm3315, %v3379, 0.0
          %v3406 = vsel %vm3316, %v3383, 0.0
          %v3407 = vsel %vm3317, %v3387, 0.0
          %v3408 = vsel %vm3318, %v3391, 0.0
          %v3409 = vsel %vm3319, %v3395, 0.0
          %v3410 = vsel %vm3320, %v3399, 0.0
          %v3411 = vsel %vm3321, %v3403, 0.0
          %v3412 = vsel %vm3322, %v3375, 0.0
          %v3413 = vsel %vm3323, %v3379, 0.0
          %v3414 = vsel %vm3324, %v3383, 0.0
          %v3415 = vsel %vm3325, %v3387, 0.0
          %v3416 = vsel %vm3326, %v3391, 0.0
          %v3417 = vsel %vm3327, %v3395, 0.0
          %v3418 = vsel %vm3328, %v3399, 0.0
          %v3419 = vsel %vm3329, %v3403, 0.0
          %v3420 = vadd.f32 %v3234, %v3404
          %v3421 = vadd.f32 %v3235, %v3405
          %v3422 = vadd.f32 %v3236, %v3406
          %v3423 = vadd.f32 %v3237, %v3407
          %v3424 = vadd.f32 %v3238, %v3408
          %v3425 = vadd.f32 %v3239, %v3409
          %v3426 = vadd.f32 %v3240, %v3410
          %v3427 = vadd.f32 %v3241, %v3411
          %v3428 = vadd.f32 %v3242, %v3412
          %v3429 = vadd.f32 %v3243, %v3413
          %v3430 = vadd.f32 %v3244, %v3414
          %v3431 = vadd.f32 %v3245, %v3415
          %v3432 = vadd.f32 %v3246, %v3416
          %v3433 = vadd.f32 %v3247, %v3417
          %v3434 = vadd.f32 %v3248, %v3418
          %v3435 = vadd.f32 %v3249, %v3419
          %s3436 = smul.u32 %s443, 2
          %s3437 = scalar_lea.vmem %s219, %s3436
          %v3438 = vld [vmem:[%s3437] sm:$0x3]
          %v3439 = vpack.c.bf16 %v3438, %v3438
          %v3440 = vunpack.c.l.bf16 %v3439
          %v3441 = vsub.f32 %v3438, %v3440
          %v3442 = vpack.c.bf16 %v3441, %v3441
          %v3443 = vpack.c.bf16 %v3428, %v3420
          %v3444 = vpack.c.bf16 %v3429, %v3421
          %v3445 = vpack.c.bf16 %v3430, %v3422
          %v3446 = vpack.c.bf16 %v3431, %v3423
          %v3447 = vpack.c.bf16 %v3432, %v3424
          %v3448 = vpack.c.bf16 %v3433, %v3425
          %v3449 = vpack.c.bf16 %v3434, %v3426
          %v3450 = vpack.c.bf16 %v3435, %v3427
          %v3451 = vunpack.c.l.bf16 %v3443
          %v3452 = vunpack.c.l.bf16 %v3444
          %v3453 = vunpack.c.l.bf16 %v3445
          %v3454 = vunpack.c.l.bf16 %v3446
          %v3455 = vunpack.c.l.bf16 %v3447
          %v3456 = vunpack.c.l.bf16 %v3448
          %v3457 = vunpack.c.l.bf16 %v3449
          %v3458 = vunpack.c.l.bf16 %v3450
          %v3459 = vunpack.c.h.bf16 %v3443
          %v3460 = vunpack.c.h.bf16 %v3444
          %v3461 = vunpack.c.h.bf16 %v3445
          %v3462 = vunpack.c.h.bf16 %v3446
          %v3463 = vunpack.c.h.bf16 %v3447
          %v3464 = vunpack.c.h.bf16 %v3448
          %v3465 = vunpack.c.h.bf16 %v3449
          %v3466 = vunpack.c.h.bf16 %v3450
          %v3467 = vsub.f32 %v3420, %v3451
          %v3468 = vsub.f32 %v3421, %v3452
          %v3469 = vsub.f32 %v3422, %v3453
          %v3470 = vsub.f32 %v3423, %v3454
          %v3471 = vsub.f32 %v3424, %v3455
          %v3472 = vsub.f32 %v3425, %v3456
          %v3473 = vsub.f32 %v3426, %v3457
          %v3474 = vsub.f32 %v3427, %v3458
          %v3475 = vsub.f32 %v3428, %v3459
          %v3476 = vsub.f32 %v3429, %v3460
          %v3477 = vsub.f32 %v3430, %v3461
          %v3478 = vsub.f32 %v3431, %v3462
          %v3479 = vsub.f32 %v3432, %v3463
          %v3480 = vsub.f32 %v3433, %v3464
          %v3481 = vsub.f32 %v3434, %v3465
          %v3482 = vsub.f32 %v3435, %v3466
          %v3483 = vpack.c.bf16 %v3475, %v3467
          %v3484 = vpack.c.bf16 %v3476, %v3468
          %v3485 = vpack.c.bf16 %v3477, %v3469
          %v3486 = vpack.c.bf16 %v3478, %v3470
          %v3487 = vpack.c.bf16 %v3479, %v3471
          %v3488 = vpack.c.bf16 %v3480, %v3472
          %v3489 = vpack.c.bf16 %v3481, %v3473
          %v3490 = vpack.c.bf16 %v3482, %v3474
          %vm3491 = vcmask 130048
          %v3493 = vsel %vm3491, %v3439, 0
          %3495 = vmatprep.subr.bf16.mxu0 0
          %3496 = vmatpush1.bf16.msra.mxu0 0
          %3497 = vmatprep.subr.bf16.mxu0 0
          %3498 = vmatpush1.bf16.msra.mxu0 0
          %3499 = vmatprep.subr.bf16.mxu0 0
          %3500 = vmatpush1.bf16.msra.mxu0 0
          %3501 = vmatprep.subr.bf16.mxu0 0
          %3502 = vmatpush1.bf16.msra.mxu0 0
          %3503 = vmatprep.subr.bf16.mxu0 0
          %3504 = vmatpush1.bf16.msra.mxu0 0
          %3505 = vmatprep.subr.bf16.mxu0 0
          %3506 = vmatpush1.bf16.msra.mxu0 0
          %3507 = vmatprep.subr.bf16.mxu0 0
          %3508 = vmatpush1.bf16.msra.mxu0 0
          %3509 = vmatprep.subr.bf16.mxu0 %v3444
          %3510 = vmatpush1.bf16.msra.mxu0 %v3443
          %3511 = vmatprep.subr.bf16.mxu0 0
          %3512 = vmatpush2.bf16.msra.mxu0 0
          %3513 = vmatprep.subr.bf16.mxu0 0
          %3514 = vmatpush2.bf16.msra.mxu0 0
          %3515 = vmatprep.subr.bf16.mxu0 0
          %3516 = vmatpush2.bf16.msra.mxu0 0
          %3517 = vmatprep.subr.bf16.mxu0 0
          %3518 = vmatpush2.bf16.msra.mxu0 0
          %3519 = vmatprep.subr.bf16.mxu0 0
          %3520 = vmatpush2.bf16.msra.mxu0 0
          %3521 = vmatprep.subr.bf16.mxu0 0
          %3522 = vmatpush2.bf16.msra.mxu0 0
          %3523 = vmatprep.subr.bf16.mxu0 0
          %3524 = vmatpush2.bf16.msra.mxu0 0
          %3525 = vmatprep.subr.bf16.mxu0 0
          %3526 = vmatpush2.bf16.msra.mxu0 0
          %3527 = vmatprep.mubr.bf16.mxu0 0
          %3528 = vmatmul.mubr.bf16.gmra.mxu0 %v3493
          %v3529 = vpop.f32.mrf.mxu0
          %v3530 = vadd.f32 0.0, %v3529
          %v3531 = vpop.f32.mrf.mxu0
          %v3532 = vadd.f32 0.0, %v3531
          %v3533 = vpop.f32.mrf.mxu0
          %v3534 = vpop.f32.mrf.mxu0
          %3535 = vdwg.mxu0
          %3536 = vmatprep.subr.bf16.mxu0 0
          %3537 = vmatpush1.bf16.msra.mxu0 0
          %3538 = vmatprep.subr.bf16.mxu0 0
          %3539 = vmatpush1.bf16.msra.mxu0 0
          %3540 = vmatprep.subr.bf16.mxu0 0
          %3541 = vmatpush1.bf16.msra.mxu0 0
          %3542 = vmatprep.subr.bf16.mxu0 0
          %3543 = vmatpush1.bf16.msra.mxu0 0
          %3544 = vmatprep.subr.bf16.mxu0 0
          %3545 = vmatpush1.bf16.msra.mxu0 0
          %3546 = vmatprep.subr.bf16.mxu0 0
          %3547 = vmatpush1.bf16.msra.mxu0 0
          %3548 = vmatprep.subr.bf16.mxu0 0
          %3549 = vmatpush1.bf16.msra.mxu0 0
          %3550 = vmatprep.subr.bf16.mxu0 %v3446
          %3551 = vmatpush1.bf16.msra.mxu0 %v3445
          %3552 = vmatprep.subr.bf16.mxu0 0
          %3553 = vmatpush2.bf16.msra.mxu0 0
          %3554 = vmatprep.subr.bf16.mxu0 0
          %3555 = vmatpush2.bf16.msra.mxu0 0
          %3556 = vmatprep.subr.bf16.mxu0 0
          %3557 = vmatpush2.bf16.msra.mxu0 0
          %3558 = vmatprep.subr.bf16.mxu0 0
          %3559 = vmatpush2.bf16.msra.mxu0 0
          %3560 = vmatprep.subr.bf16.mxu0 0
          %3561 = vmatpush2.bf16.msra.mxu0 0
          %3562 = vmatprep.subr.bf16.mxu0 0
          %3563 = vmatpush2.bf16.msra.mxu0 0
          %3564 = vmatprep.subr.bf16.mxu0 0
          %3565 = vmatpush2.bf16.msra.mxu0 0
          %3566 = vmatprep.subr.bf16.mxu0 0
          %3567 = vmatpush2.bf16.msra.mxu0 0
          %3568 = vmatprep.mubr.bf16.mxu0 0
          %3569 = vmatmul.mubr.bf16.gmra.mxu0 %v3493
          %v3570 = vpop.f32.mrf.mxu0
          %v3571 = vadd.f32 0.0, %v3570
          %v3572 = vpop.f32.mrf.mxu0
          %v3573 = vadd.f32 0.0, %v3572
          %v3574 = vpop.f32.mrf.mxu0
          %v3575 = vpop.f32.mrf.mxu0
          %3576 = vdwg.mxu0
          %3577 = vmatprep.subr.bf16.mxu0 0
          %3578 = vmatpush1.bf16.msra.mxu0 0
          %3579 = vmatprep.subr.bf16.mxu0 0
          %3580 = vmatpush1.bf16.msra.mxu0 0
          %3581 = vmatprep.subr.bf16.mxu0 0
          %3582 = vmatpush1.bf16.msra.mxu0 0
          %3583 = vmatprep.subr.bf16.mxu0 0
          %3584 = vmatpush1.bf16.msra.mxu0 0
          %3585 = vmatprep.subr.bf16.mxu0 0
          %3586 = vmatpush1.bf16.msra.mxu0 0
          %3587 = vmatprep.subr.bf16.mxu0 0
          %3588 = vmatpush1.bf16.msra.mxu0 0
          %3589 = vmatprep.subr.bf16.mxu0 0
          %3590 = vmatpush1.bf16.msra.mxu0 0
          %3591 = vmatprep.subr.bf16.mxu0 %v3448
          %3592 = vmatpush1.bf16.msra.mxu0 %v3447
          %3593 = vmatprep.subr.bf16.mxu0 0
          %3594 = vmatpush2.bf16.msra.mxu0 0
          %3595 = vmatprep.subr.bf16.mxu0 0
          %3596 = vmatpush2.bf16.msra.mxu0 0
          %3597 = vmatprep.subr.bf16.mxu0 0
          %3598 = vmatpush2.bf16.msra.mxu0 0
          %3599 = vmatprep.subr.bf16.mxu0 0
          %3600 = vmatpush2.bf16.msra.mxu0 0
          %3601 = vmatprep.subr.bf16.mxu0 0
          %3602 = vmatpush2.bf16.msra.mxu0 0
          %3603 = vmatprep.subr.bf16.mxu0 0
          %3604 = vmatpush2.bf16.msra.mxu0 0
          %3605 = vmatprep.subr.bf16.mxu0 0
          %3606 = vmatpush2.bf16.msra.mxu0 0
          %3607 = vmatprep.subr.bf16.mxu0 0
          %3608 = vmatpush2.bf16.msra.mxu0 0
          %3609 = vmatprep.mubr.bf16.mxu0 0
          %3610 = vmatmul.mubr.bf16.gmra.mxu0 %v3493
          %v3611 = vpop.f32.mrf.mxu0
          %v3612 = vadd.f32 0.0, %v3611
          %v3613 = vpop.f32.mrf.mxu0
          %v3614 = vadd.f32 0.0, %v3613
          %v3615 = vpop.f32.mrf.mxu0
          %v3616 = vpop.f32.mrf.mxu0
          %3617 = vdwg.mxu0
          %3618 = vmatprep.subr.bf16.mxu0 0
          %3619 = vmatpush1.bf16.msra.mxu0 0
          %3620 = vmatprep.subr.bf16.mxu0 0
          %3621 = vmatpush1.bf16.msra.mxu0 0
          %3622 = vmatprep.subr.bf16.mxu0 0
          %3623 = vmatpush1.bf16.msra.mxu0 0
          %3624 = vmatprep.subr.bf16.mxu0 0
          %3625 = vmatpush1.bf16.msra.mxu0 0
          %3626 = vmatprep.subr.bf16.mxu0 0
          %3627 = vmatpush1.bf16.msra.mxu0 0
          %3628 = vmatprep.subr.bf16.mxu0 0
          %3629 = vmatpush1.bf16.msra.mxu0 0
          %3630 = vmatprep.subr.bf16.mxu0 0
          %3631 = vmatpush1.bf16.msra.mxu0 0
          %3632 = vmatprep.subr.bf16.mxu0 %v3450
          %3633 = vmatpush1.bf16.msra.mxu0 %v3449
          %3634 = vmatprep.subr.bf16.mxu0 0
          %3635 = vmatpush2.bf16.msra.mxu0 0
          %3636 = vmatprep.subr.bf16.mxu0 0
          %3637 = vmatpush2.bf16.msra.mxu0 0
          %3638 = vmatprep.subr.bf16.mxu0 0
          %3639 = vmatpush2.bf16.msra.mxu0 0
          %3640 = vmatprep.subr.bf16.mxu0 0
          %3641 = vmatpush2.bf16.msra.mxu0 0
          %3642 = vmatprep.subr.bf16.mxu0 0
          %3643 = vmatpush2.bf16.msra.mxu0 0
          %3644 = vmatprep.subr.bf16.mxu0 0
          %3645 = vmatpush2.bf16.msra.mxu0 0
          %3646 = vmatprep.subr.bf16.mxu0 0
          %3647 = vmatpush2.bf16.msra.mxu0 0
          %3648 = vmatprep.subr.bf16.mxu0 0
          %3649 = vmatpush2.bf16.msra.mxu0 0
          %3650 = vmatprep.mubr.bf16.mxu0 0
          %3651 = vmatmul.mubr.bf16.gmra.mxu0 %v3493
          %v3652 = vpop.f32.mrf.mxu0
          %v3653 = vadd.f32 0.0, %v3652
          %v3654 = vpop.f32.mrf.mxu0
          %v3655 = vadd.f32 0.0, %v3654
          %v3656 = vpop.f32.mrf.mxu0
          %v3657 = vpop.f32.mrf.mxu0
          %3658 = vdwg.mxu0
          %v3659 = vadd.f32 %v448, %v3530
          %v3660 = vadd.f32 %v449, %v3532
          %v3661 = vadd.f32 %v450, %v3571
          %v3662 = vadd.f32 %v451, %v3573
          %v3663 = vadd.f32 %v452, %v3612
          %v3664 = vadd.f32 %v453, %v3614
          %v3665 = vadd.f32 %v454, %v3653
          %v3666 = vadd.f32 %v455, %v3655
          %3667 = vmatprep.subr.bf16.mxu0 0
          %3668 = vmatpush1.bf16.msra.mxu0 0
          %3669 = vmatprep.subr.bf16.mxu0 0
          %3670 = vmatpush1.bf16.msra.mxu0 0
          %3671 = vmatprep.subr.bf16.mxu0 0
          %3672 = vmatpush1.bf16.msra.mxu0 0
          %3673 = vmatprep.subr.bf16.mxu0 0
          %3674 = vmatpush1.bf16.msra.mxu0 0
          %3675 = vmatprep.subr.bf16.mxu0 0
          %3676 = vmatpush1.bf16.msra.mxu0 0
          %3677 = vmatprep.subr.bf16.mxu0 0
          %3678 = vmatpush1.bf16.msra.mxu0 0
          %3679 = vmatprep.subr.bf16.mxu0 0
          %3680 = vmatpush1.bf16.msra.mxu0 0
          %3681 = vmatprep.subr.bf16.mxu0 %v3484
          %3682 = vmatpush1.bf16.msra.mxu0 %v3483
          %3683 = vmatprep.subr.bf16.mxu0 0
          %3684 = vmatpush2.bf16.msra.mxu0 0
          %3685 = vmatprep.subr.bf16.mxu0 0
          %3686 = vmatpush2.bf16.msra.mxu0 0
          %3687 = vmatprep.subr.bf16.mxu0 0
          %3688 = vmatpush2.bf16.msra.mxu0 0
          %3689 = vmatprep.subr.bf16.mxu0 0
          %3690 = vmatpush2.bf16.msra.mxu0 0
          %3691 = vmatprep.subr.bf16.mxu0 0
          %3692 = vmatpush2.bf16.msra.mxu0 0
          %3693 = vmatprep.subr.bf16.mxu0 0
          %3694 = vmatpush2.bf16.msra.mxu0 0
          %3695 = vmatprep.subr.bf16.mxu0 0
          %3696 = vmatpush2.bf16.msra.mxu0 0
          %3697 = vmatprep.subr.bf16.mxu0 0
          %3698 = vmatpush2.bf16.msra.mxu0 0
          %3699 = vmatprep.mubr.bf16.mxu0 0
          %3700 = vmatmul.mubr.bf16.gmra.mxu0 %v3493
          %v3701 = vpop.f32.mrf.mxu0
          %v3702 = vadd.f32 0.0, %v3701
          %v3703 = vpop.f32.mrf.mxu0
          %v3704 = vadd.f32 0.0, %v3703
          %v3705 = vpop.f32.mrf.mxu0
          %v3706 = vpop.f32.mrf.mxu0
          %3707 = vdwg.mxu0
          %3708 = vmatprep.subr.bf16.mxu0 0
          %3709 = vmatpush1.bf16.msra.mxu0 0
          %3710 = vmatprep.subr.bf16.mxu0 0
          %3711 = vmatpush1.bf16.msra.mxu0 0
          %3712 = vmatprep.subr.bf16.mxu0 0
          %3713 = vmatpush1.bf16.msra.mxu0 0
          %3714 = vmatprep.subr.bf16.mxu0 0
          %3715 = vmatpush1.bf16.msra.mxu0 0
          %3716 = vmatprep.subr.bf16.mxu0 0
          %3717 = vmatpush1.bf16.msra.mxu0 0
          %3718 = vmatprep.subr.bf16.mxu0 0
          %3719 = vmatpush1.bf16.msra.mxu0 0
          %3720 = vmatprep.subr.bf16.mxu0 0
          %3721 = vmatpush1.bf16.msra.mxu0 0
          %3722 = vmatprep.subr.bf16.mxu0 %v3486
          %3723 = vmatpush1.bf16.msra.mxu0 %v3485
          %3724 = vmatprep.subr.bf16.mxu0 0
          %3725 = vmatpush2.bf16.msra.mxu0 0
          %3726 = vmatprep.subr.bf16.mxu0 0
          %3727 = vmatpush2.bf16.msra.mxu0 0
          %3728 = vmatprep.subr.bf16.mxu0 0
          %3729 = vmatpush2.bf16.msra.mxu0 0
          %3730 = vmatprep.subr.bf16.mxu0 0
          %3731 = vmatpush2.bf16.msra.mxu0 0
          %3732 = vmatprep.subr.bf16.mxu0 0
          %3733 = vmatpush2.bf16.msra.mxu0 0
          %3734 = vmatprep.subr.bf16.mxu0 0
          %3735 = vmatpush2.bf16.msra.mxu0 0
          %3736 = vmatprep.subr.bf16.mxu0 0
          %3737 = vmatpush2.bf16.msra.mxu0 0
          %3738 = vmatprep.subr.bf16.mxu0 0
          %3739 = vmatpush2.bf16.msra.mxu0 0
          %3740 = vmatprep.mubr.bf16.mxu0 0
          %3741 = vmatmul.mubr.bf16.gmra.mxu0 %v3493
          %v3742 = vpop.f32.mrf.mxu0
          %v3743 = vadd.f32 0.0, %v3742
          %v3744 = vpop.f32.mrf.mxu0
          %v3745 = vadd.f32 0.0, %v3744
          %v3746 = vpop.f32.mrf.mxu0
          %v3747 = vpop.f32.mrf.mxu0
          %3748 = vdwg.mxu0
          %3749 = vmatprep.subr.bf16.mxu0 0
          %3750 = vmatpush1.bf16.msra.mxu0 0
          %3751 = vmatprep.subr.bf16.mxu0 0
          %3752 = vmatpush1.bf16.msra.mxu0 0
          %3753 = vmatprep.subr.bf16.mxu0 0
          %3754 = vmatpush1.bf16.msra.mxu0 0
          %3755 = vmatprep.subr.bf16.mxu0 0
          %3756 = vmatpush1.bf16.msra.mxu0 0
          %3757 = vmatprep.subr.bf16.mxu0 0
          %3758 = vmatpush1.bf16.msra.mxu0 0
          %3759 = vmatprep.subr.bf16.mxu0 0
          %3760 = vmatpush1.bf16.msra.mxu0 0
          %3761 = vmatprep.subr.bf16.mxu0 0
          %3762 = vmatpush1.bf16.msra.mxu0 0
          %3763 = vmatprep.subr.bf16.mxu0 %v3488
          %3764 = vmatpush1.bf16.msra.mxu0 %v3487
          %3765 = vmatprep.subr.bf16.mxu0 0
          %3766 = vmatpush2.bf16.msra.mxu0 0
          %3767 = vmatprep.subr.bf16.mxu0 0
          %3768 = vmatpush2.bf16.msra.mxu0 0
          %3769 = vmatprep.subr.bf16.mxu0 0
          %3770 = vmatpush2.bf16.msra.mxu0 0
          %3771 = vmatprep.subr.bf16.mxu0 0
          %3772 = vmatpush2.bf16.msra.mxu0 0
          %3773 = vmatprep.subr.bf16.mxu0 0
          %3774 = vmatpush2.bf16.msra.mxu0 0
          %3775 = vmatprep.subr.bf16.mxu0 0
          %3776 = vmatpush2.bf16.msra.mxu0 0
          %3777 = vmatprep.subr.bf16.mxu0 0
          %3778 = vmatpush2.bf16.msra.mxu0 0
          %3779 = vmatprep.subr.bf16.mxu0 0
          %3780 = vmatpush2.bf16.msra.mxu0 0
          %3781 = vmatprep.mubr.bf16.mxu0 0
          %3782 = vmatmul.mubr.bf16.gmra.mxu0 %v3493
          %v3783 = vpop.f32.mrf.mxu0
          %v3784 = vadd.f32 0.0, %v3783
          %v3785 = vpop.f32.mrf.mxu0
          %v3786 = vadd.f32 0.0, %v3785
          %v3787 = vpop.f32.mrf.mxu0
          %v3788 = vpop.f32.mrf.mxu0
          %3789 = vdwg.mxu0
          %3790 = vmatprep.subr.bf16.mxu0 0
          %3791 = vmatpush1.bf16.msra.mxu0 0
          %3792 = vmatprep.subr.bf16.mxu0 0
          %3793 = vmatpush1.bf16.msra.mxu0 0
          %3794 = vmatprep.subr.bf16.mxu0 0
          %3795 = vmatpush1.bf16.msra.mxu0 0
          %3796 = vmatprep.subr.bf16.mxu0 0
          %3797 = vmatpush1.bf16.msra.mxu0 0
          %3798 = vmatprep.subr.bf16.mxu0 0
          %3799 = vmatpush1.bf16.msra.mxu0 0
          %3800 = vmatprep.subr.bf16.mxu0 0
          %3801 = vmatpush1.bf16.msra.mxu0 0
          %3802 = vmatprep.subr.bf16.mxu0 0
          %3803 = vmatpush1.bf16.msra.mxu0 0
          %3804 = vmatprep.subr.bf16.mxu0 %v3490
          %3805 = vmatpush1.bf16.msra.mxu0 %v3489
          %3806 = vmatprep.subr.bf16.mxu0 0
          %3807 = vmatpush2.bf16.msra.mxu0 0
          %3808 = vmatprep.subr.bf16.mxu0 0
          %3809 = vmatpush2.bf16.msra.mxu0 0
          %3810 = vmatprep.subr.bf16.mxu0 0
          %3811 = vmatpush2.bf16.msra.mxu0 0
          %3812 = vmatprep.subr.bf16.mxu0 0
          %3813 = vmatpush2.bf16.msra.mxu0 0
          %3814 = vmatprep.subr.bf16.mxu0 0
          %3815 = vmatpush2.bf16.msra.mxu0 0
          %3816 = vmatprep.subr.bf16.mxu0 0
          %3817 = vmatpush2.bf16.msra.mxu0 0
          %3818 = vmatprep.subr.bf16.mxu0 0
          %3819 = vmatpush2.bf16.msra.mxu0 0
          %3820 = vmatprep.subr.bf16.mxu0 0
          %3821 = vmatpush2.bf16.msra.mxu0 0
          %3822 = vmatprep.mubr.bf16.mxu0 0
          %3823 = vmatmul.mubr.bf16.gmra.mxu0 %v3493
          %v3824 = vpop.f32.mrf.mxu0
          %v3825 = vadd.f32 0.0, %v3824
          %v3826 = vpop.f32.mrf.mxu0
          %v3827 = vadd.f32 0.0, %v3826
          %v3828 = vpop.f32.mrf.mxu0
          %v3829 = vpop.f32.mrf.mxu0
          %3830 = vdwg.mxu0
          %v3831 = vadd.f32 %v3659, %v3702
          %v3832 = vadd.f32 %v3660, %v3704
          %v3833 = vadd.f32 %v3661, %v3743
          %v3834 = vadd.f32 %v3662, %v3745
          %v3835 = vadd.f32 %v3663, %v3784
          %v3836 = vadd.f32 %v3664, %v3786
          %v3837 = vadd.f32 %v3665, %v3825
          %v3838 = vadd.f32 %v3666, %v3827
          %v3840 = vsel %vm3491, %v3442, 0
          %3842 = vmatprep.subr.bf16.mxu0 0
          %3843 = vmatpush1.bf16.msra.mxu0 0
          %3844 = vmatprep.subr.bf16.mxu0 0
          %3845 = vmatpush1.bf16.msra.mxu0 0
          %3846 = vmatprep.subr.bf16.mxu0 0
          %3847 = vmatpush1.bf16.msra.mxu0 0
          %3848 = vmatprep.subr.bf16.mxu0 0
          %3849 = vmatpush1.bf16.msra.mxu0 0
          %3850 = vmatprep.subr.bf16.mxu0 0
          %3851 = vmatpush1.bf16.msra.mxu0 0
          %3852 = vmatprep.subr.bf16.mxu0 0
          %3853 = vmatpush1.bf16.msra.mxu0 0
          %3854 = vmatprep.subr.bf16.mxu0 0
          %3855 = vmatpush1.bf16.msra.mxu0 0
          %3856 = vmatprep.subr.bf16.mxu0 %v3444
          %3857 = vmatpush1.bf16.msra.mxu0 %v3443
          %3858 = vmatprep.subr.bf16.mxu0 0
          %3859 = vmatpush2.bf16.msra.mxu0 0
          %3860 = vmatprep.subr.bf16.mxu0 0
          %3861 = vmatpush2.bf16.msra.mxu0 0
          %3862 = vmatprep.subr.bf16.mxu0 0
          %3863 = vmatpush2.bf16.msra.mxu0 0
          %3864 = vmatprep.subr.bf16.mxu0 0
          %3865 = vmatpush2.bf16.msra.mxu0 0
          %3866 = vmatprep.subr.bf16.mxu0 0
          %3867 = vmatpush2.bf16.msra.mxu0 0
          %3868 = vmatprep.subr.bf16.mxu0 0
          %3869 = vmatpush2.bf16.msra.mxu0 0
          %3870 = vmatprep.subr.bf16.mxu0 0
          %3871 = vmatpush2.bf16.msra.mxu0 0
          %3872 = vmatprep.subr.bf16.mxu0 0
          %3873 = vmatpush2.bf16.msra.mxu0 0
          %3874 = vmatprep.mubr.bf16.mxu0 0
          %3875 = vmatmul.mubr.bf16.gmra.mxu0 %v3840
          %v3876 = vpop.f32.mrf.mxu0
          %v3877 = vadd.f32 0.0, %v3876
          %v3878 = vpop.f32.mrf.mxu0
          %v3879 = vadd.f32 0.0, %v3878
          %v3880 = vpop.f32.mrf.mxu0
          %v3881 = vpop.f32.mrf.mxu0
          %3882 = vdwg.mxu0
          %3883 = vmatprep.subr.bf16.mxu0 0
          %3884 = vmatpush1.bf16.msra.mxu0 0
          %3885 = vmatprep.subr.bf16.mxu0 0
          %3886 = vmatpush1.bf16.msra.mxu0 0
          %3887 = vmatprep.subr.bf16.mxu0 0
          %3888 = vmatpush1.bf16.msra.mxu0 0
          %3889 = vmatprep.subr.bf16.mxu0 0
          %3890 = vmatpush1.bf16.msra.mxu0 0
          %3891 = vmatprep.subr.bf16.mxu0 0
          %3892 = vmatpush1.bf16.msra.mxu0 0
          %3893 = vmatprep.subr.bf16.mxu0 0
          %3894 = vmatpush1.bf16.msra.mxu0 0
          %3895 = vmatprep.subr.bf16.mxu0 0
          %3896 = vmatpush1.bf16.msra.mxu0 0
          %3897 = vmatprep.subr.bf16.mxu0 %v3446
          %3898 = vmatpush1.bf16.msra.mxu0 %v3445
          %3899 = vmatprep.subr.bf16.mxu0 0
          %3900 = vmatpush2.bf16.msra.mxu0 0
          %3901 = vmatprep.subr.bf16.mxu0 0
          %3902 = vmatpush2.bf16.msra.mxu0 0
          %3903 = vmatprep.subr.bf16.mxu0 0
          %3904 = vmatpush2.bf16.msra.mxu0 0
          %3905 = vmatprep.subr.bf16.mxu0 0
          %3906 = vmatpush2.bf16.msra.mxu0 0
          %3907 = vmatprep.subr.bf16.mxu0 0
          %3908 = vmatpush2.bf16.msra.mxu0 0
          %3909 = vmatprep.subr.bf16.mxu0 0
          %3910 = vmatpush2.bf16.msra.mxu0 0
          %3911 = vmatprep.subr.bf16.mxu0 0
          %3912 = vmatpush2.bf16.msra.mxu0 0
          %3913 = vmatprep.subr.bf16.mxu0 0
          %3914 = vmatpush2.bf16.msra.mxu0 0
          %3915 = vmatprep.mubr.bf16.mxu0 0
          %3916 = vmatmul.mubr.bf16.gmra.mxu0 %v3840
          %v3917 = vpop.f32.mrf.mxu0
          %v3918 = vadd.f32 0.0, %v3917
          %v3919 = vpop.f32.mrf.mxu0
          %v3920 = vadd.f32 0.0, %v3919
          %v3921 = vpop.f32.mrf.mxu0
          %v3922 = vpop.f32.mrf.mxu0
          %3923 = vdwg.mxu0
          %3924 = vmatprep.subr.bf16.mxu0 0
          %3925 = vmatpush1.bf16.msra.mxu0 0
          %3926 = vmatprep.subr.bf16.mxu0 0
          %3927 = vmatpush1.bf16.msra.mxu0 0
          %3928 = vmatprep.subr.bf16.mxu0 0
          %3929 = vmatpush1.bf16.msra.mxu0 0
          %3930 = vmatprep.subr.bf16.mxu0 0
          %3931 = vmatpush1.bf16.msra.mxu0 0
          %3932 = vmatprep.subr.bf16.mxu0 0
          %3933 = vmatpush1.bf16.msra.mxu0 0
          %3934 = vmatprep.subr.bf16.mxu0 0
          %3935 = vmatpush1.bf16.msra.mxu0 0
          %3936 = vmatprep.subr.bf16.mxu0 0
          %3937 = vmatpush1.bf16.msra.mxu0 0
          %3938 = vmatprep.subr.bf16.mxu0 %v3448
          %3939 = vmatpush1.bf16.msra.mxu0 %v3447
          %3940 = vmatprep.subr.bf16.mxu0 0
          %3941 = vmatpush2.bf16.msra.mxu0 0
          %3942 = vmatprep.subr.bf16.mxu0 0
          %3943 = vmatpush2.bf16.msra.mxu0 0
          %3944 = vmatprep.subr.bf16.mxu0 0
          %3945 = vmatpush2.bf16.msra.mxu0 0
          %3946 = vmatprep.subr.bf16.mxu0 0
          %3947 = vmatpush2.bf16.msra.mxu0 0
          %3948 = vmatprep.subr.bf16.mxu0 0
          %3949 = vmatpush2.bf16.msra.mxu0 0
          %3950 = vmatprep.subr.bf16.mxu0 0
          %3951 = vmatpush2.bf16.msra.mxu0 0
          %3952 = vmatprep.subr.bf16.mxu0 0
          %3953 = vmatpush2.bf16.msra.mxu0 0
          %3954 = vmatprep.subr.bf16.mxu0 0
          %3955 = vmatpush2.bf16.msra.mxu0 0
          %3956 = vmatprep.mubr.bf16.mxu0 0
          %3957 = vmatmul.mubr.bf16.gmra.mxu0 %v3840
          %v3958 = vpop.f32.mrf.mxu0
          %v3959 = vadd.f32 0.0, %v3958
          %v3960 = vpop.f32.mrf.mxu0
          %v3961 = vadd.f32 0.0, %v3960
          %v3962 = vpop.f32.mrf.mxu0
          %v3963 = vpop.f32.mrf.mxu0
          %3964 = vdwg.mxu0
          %3965 = vmatprep.subr.bf16.mxu0 0
          %3966 = vmatpush1.bf16.msra.mxu0 0
          %3967 = vmatprep.subr.bf16.mxu0 0
          %3968 = vmatpush1.bf16.msra.mxu0 0
          %3969 = vmatprep.subr.bf16.mxu0 0
          %3970 = vmatpush1.bf16.msra.mxu0 0
          %3971 = vmatprep.subr.bf16.mxu0 0
          %3972 = vmatpush1.bf16.msra.mxu0 0
          %3973 = vmatprep.subr.bf16.mxu0 0
          %3974 = vmatpush1.bf16.msra.mxu0 0
          %3975 = vmatprep.subr.bf16.mxu0 0
          %3976 = vmatpush1.bf16.msra.mxu0 0
          %3977 = vmatprep.subr.bf16.mxu0 0
          %3978 = vmatpush1.bf16.msra.mxu0 0
          %3979 = vmatprep.subr.bf16.mxu0 %v3450
          %3980 = vmatpush1.bf16.msra.mxu0 %v3449
          %3981 = vmatprep.subr.bf16.mxu0 0
          %3982 = vmatpush2.bf16.msra.mxu0 0
          %3983 = vmatprep.subr.bf16.mxu0 0
          %3984 = vmatpush2.bf16.msra.mxu0 0
          %3985 = vmatprep.subr.bf16.mxu0 0
          %3986 = vmatpush2.bf16.msra.mxu0 0
          %3987 = vmatprep.subr.bf16.mxu0 0
          %3988 = vmatpush2.bf16.msra.mxu0 0
          %3989 = vmatprep.subr.bf16.mxu0 0
          %3990 = vmatpush2.bf16.msra.mxu0 0
          %3991 = vmatprep.subr.bf16.mxu0 0
          %3992 = vmatpush2.bf16.msra.mxu0 0
          %3993 = vmatprep.subr.bf16.mxu0 0
          %3994 = vmatpush2.bf16.msra.mxu0 0
          %3995 = vmatprep.subr.bf16.mxu0 0
          %3996 = vmatpush2.bf16.msra.mxu0 0
          %3997 = vmatprep.mubr.bf16.mxu0 0
          %3998 = vmatmul.mubr.bf16.gmra.mxu0 %v3840
          %v3999 = vpop.f32.mrf.mxu0
          %v4000 = vadd.f32 0.0, %v3999
          %v4001 = vpop.f32.mrf.mxu0
          %v4002 = vadd.f32 0.0, %v4001
          %v4003 = vpop.f32.mrf.mxu0
          %v4004 = vpop.f32.mrf.mxu0
          %4005 = vdwg.mxu0
          %v4006 = vadd.f32 %v3831, %v3877
          %v4007 = vadd.f32 %v3832, %v3879
          %v4008 = vadd.f32 %v3833, %v3918
          %v4009 = vadd.f32 %v3834, %v3920
          %v4010 = vadd.f32 %v3835, %v3959
          %v4011 = vadd.f32 %v3836, %v3961
          %v4012 = vadd.f32 %v3837, %v4000
          %v4013 = vadd.f32 %v3838, %v4002
          %4014 = vmatprep.subr.bf16.mxu0 0
          %4015 = vmatpush1.bf16.msra.mxu0 0
          %4016 = vmatprep.subr.bf16.mxu0 0
          %4017 = vmatpush1.bf16.msra.mxu0 0
          %4018 = vmatprep.subr.bf16.mxu0 0
          %4019 = vmatpush1.bf16.msra.mxu0 0
          %4020 = vmatprep.subr.bf16.mxu0 0
          %4021 = vmatpush1.bf16.msra.mxu0 0
          %4022 = vmatprep.subr.bf16.mxu0 0
          %4023 = vmatpush1.bf16.msra.mxu0 0
          %4024 = vmatprep.subr.bf16.mxu0 0
          %4025 = vmatpush1.bf16.msra.mxu0 0
          %4026 = vmatprep.subr.bf16.mxu0 0
          %4027 = vmatpush1.bf16.msra.mxu0 0
          %4028 = vmatprep.subr.bf16.mxu0 %v3484
          %4029 = vmatpush1.bf16.msra.mxu0 %v3483
          %4030 = vmatprep.subr.bf16.mxu0 0
          %4031 = vmatpush2.bf16.msra.mxu0 0
          %4032 = vmatprep.subr.bf16.mxu0 0
          %4033 = vmatpush2.bf16.msra.mxu0 0
          %4034 = vmatprep.subr.bf16.mxu0 0
          %4035 = vmatpush2.bf16.msra.mxu0 0
          %4036 = vmatprep.subr.bf16.mxu0 0
          %4037 = vmatpush2.bf16.msra.mxu0 0
          %4038 = vmatprep.subr.bf16.mxu0 0
          %4039 = vmatpush2.bf16.msra.mxu0 0
          %4040 = vmatprep.subr.bf16.mxu0 0
          %4041 = vmatpush2.bf16.msra.mxu0 0
          %4042 = vmatprep.subr.bf16.mxu0 0
          %4043 = vmatpush2.bf16.msra.mxu0 0
          %4044 = vmatprep.subr.bf16.mxu0 0
          %4045 = vmatpush2.bf16.msra.mxu0 0
          %4046 = vmatprep.mubr.bf16.mxu0 0
          %4047 = vmatmul.mubr.bf16.gmra.mxu0 %v3840
          %v4048 = vpop.f32.mrf.mxu0
          %v4049 = vadd.f32 0.0, %v4048
          %v4050 = vpop.f32.mrf.mxu0
          %v4051 = vadd.f32 0.0, %v4050
          %v4052 = vpop.f32.mrf.mxu0
          %v4053 = vpop.f32.mrf.mxu0
          %4054 = vdwg.mxu0
          %4055 = vmatprep.subr.bf16.mxu0 0
          %4056 = vmatpush1.bf16.msra.mxu0 0
          %4057 = vmatprep.subr.bf16.mxu0 0
          %4058 = vmatpush1.bf16.msra.mxu0 0
          %4059 = vmatprep.subr.bf16.mxu0 0
          %4060 = vmatpush1.bf16.msra.mxu0 0
          %4061 = vmatprep.subr.bf16.mxu0 0
          %4062 = vmatpush1.bf16.msra.mxu0 0
          %4063 = vmatprep.subr.bf16.mxu0 0
          %4064 = vmatpush1.bf16.msra.mxu0 0
          %4065 = vmatprep.subr.bf16.mxu0 0
          %4066 = vmatpush1.bf16.msra.mxu0 0
          %4067 = vmatprep.subr.bf16.mxu0 0
          %4068 = vmatpush1.bf16.msra.mxu0 0
          %4069 = vmatprep.subr.bf16.mxu0 %v3486
          %4070 = vmatpush1.bf16.msra.mxu0 %v3485
          %4071 = vmatprep.subr.bf16.mxu0 0
          %4072 = vmatpush2.bf16.msra.mxu0 0
          %4073 = vmatprep.subr.bf16.mxu0 0
          %4074 = vmatpush2.bf16.msra.mxu0 0
          %4075 = vmatprep.subr.bf16.mxu0 0
          %4076 = vmatpush2.bf16.msra.mxu0 0
          %4077 = vmatprep.subr.bf16.mxu0 0
          %4078 = vmatpush2.bf16.msra.mxu0 0
          %4079 = vmatprep.subr.bf16.mxu0 0
          %4080 = vmatpush2.bf16.msra.mxu0 0
          %4081 = vmatprep.subr.bf16.mxu0 0
          %4082 = vmatpush2.bf16.msra.mxu0 0
          %4083 = vmatprep.subr.bf16.mxu0 0
          %4084 = vmatpush2.bf16.msra.mxu0 0
          %4085 = vmatprep.subr.bf16.mxu0 0
          %4086 = vmatpush2.bf16.msra.mxu0 0
          %4087 = vmatprep.mubr.bf16.mxu0 0
          %4088 = vmatmul.mubr.bf16.gmra.mxu0 %v3840
          %v4089 = vpop.f32.mrf.mxu0
          %v4090 = vadd.f32 0.0, %v4089
          %v4091 = vpop.f32.mrf.mxu0
          %v4092 = vadd.f32 0.0, %v4091
          %v4093 = vpop.f32.mrf.mxu0
          %v4094 = vpop.f32.mrf.mxu0
          %4095 = vdwg.mxu0
          %4096 = vmatprep.subr.bf16.mxu0 0
          %4097 = vmatpush1.bf16.msra.mxu0 0
          %4098 = vmatprep.subr.bf16.mxu0 0
          %4099 = vmatpush1.bf16.msra.mxu0 0
          %4100 = vmatprep.subr.bf16.mxu0 0
          %4101 = vmatpush1.bf16.msra.mxu0 0
          %4102 = vmatprep.subr.bf16.mxu0 0
          %4103 = vmatpush1.bf16.msra.mxu0 0
          %4104 = vmatprep.subr.bf16.mxu0 0
          %4105 = vmatpush1.bf16.msra.mxu0 0
          %4106 = vmatprep.subr.bf16.mxu0 0
          %4107 = vmatpush1.bf16.msra.mxu0 0
          %4108 = vmatprep.subr.bf16.mxu0 0
          %4109 = vmatpush1.bf16.msra.mxu0 0
          %4110 = vmatprep.subr.bf16.mxu0 %v3488
          %4111 = vmatpush1.bf16.msra.mxu0 %v3487
          %4112 = vmatprep.subr.bf16.mxu0 0
          %4113 = vmatpush2.bf16.msra.mxu0 0
          %4114 = vmatprep.subr.bf16.mxu0 0
          %4115 = vmatpush2.bf16.msra.mxu0 0
          %4116 = vmatprep.subr.bf16.mxu0 0
          %4117 = vmatpush2.bf16.msra.mxu0 0
          %4118 = vmatprep.subr.bf16.mxu0 0
          %4119 = vmatpush2.bf16.msra.mxu0 0
          %4120 = vmatprep.subr.bf16.mxu0 0
          %4121 = vmatpush2.bf16.msra.mxu0 0
          %4122 = vmatprep.subr.bf16.mxu0 0
          %4123 = vmatpush2.bf16.msra.mxu0 0
          %4124 = vmatprep.subr.bf16.mxu0 0
          %4125 = vmatpush2.bf16.msra.mxu0 0
          %4126 = vmatprep.subr.bf16.mxu0 0
          %4127 = vmatpush2.bf16.msra.mxu0 0
          %4128 = vmatprep.mubr.bf16.mxu0 0
          %4129 = vmatmul.mubr.bf16.gmra.mxu0 %v3840
          %v4130 = vpop.f32.mrf.mxu0
          %v4131 = vadd.f32 0.0, %v4130
          %v4132 = vpop.f32.mrf.mxu0
          %v4133 = vadd.f32 0.0, %v4132
          %v4134 = vpop.f32.mrf.mxu0
          %v4135 = vpop.f32.mrf.mxu0
          %4136 = vdwg.mxu0
          %4137 = vmatprep.subr.bf16.mxu0 0
          %4138 = vmatpush1.bf16.msra.mxu0 0
          %4139 = vmatprep.subr.bf16.mxu0 0
          %4140 = vmatpush1.bf16.msra.mxu0 0
          %4141 = vmatprep.subr.bf16.mxu0 0
          %4142 = vmatpush1.bf16.msra.mxu0 0
          %4143 = vmatprep.subr.bf16.mxu0 0
          %4144 = vmatpush1.bf16.msra.mxu0 0
          %4145 = vmatprep.subr.bf16.mxu0 0
          %4146 = vmatpush1.bf16.msra.mxu0 0
          %4147 = vmatprep.subr.bf16.mxu0 0
          %4148 = vmatpush1.bf16.msra.mxu0 0
          %4149 = vmatprep.subr.bf16.mxu0 0
          %4150 = vmatpush1.bf16.msra.mxu0 0
          %4151 = vmatprep.subr.bf16.mxu0 %v3490
          %4152 = vmatpush1.bf16.msra.mxu0 %v3489
          %4153 = vmatprep.subr.bf16.mxu0 0
          %4154 = vmatpush2.bf16.msra.mxu0 0
          %4155 = vmatprep.subr.bf16.mxu0 0
          %4156 = vmatpush2.bf16.msra.mxu0 0
          %4157 = vmatprep.subr.bf16.mxu0 0
          %4158 = vmatpush2.bf16.msra.mxu0 0
          %4159 = vmatprep.subr.bf16.mxu0 0
          %4160 = vmatpush2.bf16.msra.mxu0 0
          %4161 = vmatprep.subr.bf16.mxu0 0
          %4162 = vmatpush2.bf16.msra.mxu0 0
          %4163 = vmatprep.subr.bf16.mxu0 0
          %4164 = vmatpush2.bf16.msra.mxu0 0
          %4165 = vmatprep.subr.bf16.mxu0 0
          %4166 = vmatpush2.bf16.msra.mxu0 0
          %4167 = vmatprep.subr.bf16.mxu0 0
          %4168 = vmatpush2.bf16.msra.mxu0 0
          %4169 = vmatprep.mubr.bf16.mxu0 0
          %4170 = vmatmul.mubr.bf16.gmra.mxu0 %v3840
          %v4171 = vpop.f32.mrf.mxu0
          %v4172 = vadd.f32 0.0, %v4171
          %v4173 = vpop.f32.mrf.mxu0
          %v4174 = vadd.f32 0.0, %v4173
          %v4175 = vpop.f32.mrf.mxu0
          %v4176 = vpop.f32.mrf.mxu0
          %4177 = vdwg.mxu0
          %v4178 = vadd.f32 %v4006, %v4049
          %v4179 = vadd.f32 %v4007, %v4051
          %v4180 = vadd.f32 %v4008, %v4090
          %v4181 = vadd.f32 %v4009, %v4092
          %v4182 = vadd.f32 %v4010, %v4131
          %v4183 = vadd.f32 %v4011, %v4133
          %v4184 = vadd.f32 %v4012, %v4172
          %v4185 = vadd.f32 %v4013, %v4174
        $region41: #{my_encoding_cubic_forward.1} parent=31 // loop_footer
          %s447 = sadd.s32 1, %s443
        $region42: #{my_encoding_cubic_forward.1} parent=31 // loop_footer_branch
          %442 = sbr.rel target = $region38
        $region43: #{my_encoding_cubic_forward.1} parent=31 // loop_exit
          _
        %v4194 = vcombine.low %v448, %v449
        %v4195 = vcombine.low %v450, %v451
        %v4197 = vunpack.c.l.s4 1983009808
        %v4198 = vunpack.c.0.s8 %v4197
        %v4199 = vlaneseq
        %v4200 = vshrl.u32 %v4199, 7
        %v4201 = vsub.s32 %v4198, %v4200
        %v4202 = vrot.slane %v4194, %v4201
        %v4204 = vunpack.c.l.s4 1983009808
        %v4205 = vunpack.c.0.s8 %v4204
        %v4206 = vlaneseq
        %v4207 = vshrl.u32 %v4206, 7
        %v4208 = vsub.s32 %v4205, %v4207
        %v4209 = vrot.slane %v4195, %v4208
        %v4210 = vcombine.low %v4202, %v4209
        %v4211 = vcombine.low %v452, %v453
        %v4212 = vcombine.low %v454, %v455
        %v4214 = vunpack.c.l.s4 1983009808
        %v4215 = vunpack.c.0.s8 %v4214
        %v4216 = vlaneseq
        %v4217 = vshrl.u32 %v4216, 7
        %v4218 = vsub.s32 %v4215, %v4217
        %v4219 = vrot.slane %v4211, %v4218
        %v4221 = vunpack.c.l.s4 1983009808
        %v4222 = vunpack.c.0.s8 %v4221
        %v4223 = vlaneseq
        %v4224 = vshrl.u32 %v4223, 7
        %v4225 = vsub.s32 %v4222, %v4224
        %v4226 = vrot.slane %v4212, %v4225
        %v4227 = vcombine.low %v4219, %v4226
        %4230 = vst [vmem:[%s228] sm:$0xff] %v4210
        %4231 = vst [vmem:[%s228 + $0x8] sm:$0xff] %v4227
        %s4232 = smul.u32 8, %s20
        %p4233 = scmp.lt.s32.totalorder %s19, 7
        %s4234 = scalar_select %p4233, %s19, 7
        %p4235 = scmp.lt.s32.totalorder %s4232, 15
        %s4236 = scalar_select %p4235, %s4232, 15
        %s4237 = smul.addr %s4234, 16
        %s4238 = sadd.s32 %s4236, %s4237
        %s4239 = smul.addr %s4238, 2
        %s4240 = scalar_lea.vmem %s3, %s4239
        // Predicated region
        $region44: #{my_encoding_cubic_forward.1} parent=31 // pred_check
          %p4241 = pneg %p120
        $region45: #{my_encoding_cubic_forward.1} parent=31 // pred_check_branch
          %4243 = sbr.rel (%p4241) target = $region47
        $region46: #{my_encoding_cubic_forward.1} parent=31 // pred_region
          %s4244 = smul.u32 8, %s20
        $region47: #{my_encoding_cubic_forward.1} parent=31 // pred_fallthru
          _
      $region32: #{my_encoding_cubic_forward.1} parent=5 // pred_fallthru
        _
      %p4245 = scmp.le.s32.totalorder 2, %s10
      // Predicated region
      $region48: #{my_encoding_cubic_forward.1} parent=5 // pred_check
        %p4246 = pneg %p4245
      $region49: #{my_encoding_cubic_forward.1} parent=5 // pred_check_branch
        %4248 = sbr.rel (%p4246) target = $region51
      $region50: #{my_encoding_cubic_forward.1} parent=5 // pred_region
        %s4249 = ssub.s32 %s10, 2
        // Predicated region
        $region52: #{my_encoding_cubic_forward.1} parent=50 // pred_check
          %p4250 = pneg %p126
        $region53: #{my_encoding_cubic_forward.1} parent=50 // pred_check_branch
          %4252 = sbr.rel (%p4250) target = $region55
        $region54: #{my_encoding_cubic_forward.1} parent=50 // pred_region
          %s4253 = smul.u32 8, %s22
          %p4254 = scmp.lt.s32.totalorder %s21, 7
          %s4255 = scalar_select %p4254, %s21, 7
          %p4256 = scmp.lt.s32.totalorder %s4253, 15
          %s4257 = scalar_select %p4256, %s4253, 15
          %s4258 = smul.addr %s4255, 16
          %s4259 = sadd.s32 %s4257, %s4258
          %s4260 = smul.addr %s4259, 2
          %s4261 = scalar_lea.vmem %s3, %s4260
        $region55: #{my_encoding_cubic_forward.1} parent=50 // pred_fallthru
          _
      $region51: #{my_encoding_cubic_forward.1} parent=5 // pred_fallthru
        _
    $region6: #{my_encoding_cubic_forward.1} parent=1 // loop_footer
      %s14 = sadd.s32 1, %s10
    $region7: #{my_encoding_cubic_forward.1} parent=1 // loop_footer_branch
      %9 = sbr.rel target = $region3
    $region8: #{my_encoding_cubic_forward.1} parent=1 // loop_exit
      _
    %4262 = vsyncpa [#allocation3], 1
    %s4263 = scalar_lea.sflag [#allocation3], 1
    %4264 = vsyncpa %s4263, 1

</llo_original>
